<compile_context>
chip_gen: v5e
topology: v5e:2x2
jax: 0.10.0
libtpu: 0.0.40
codegen_flags: <defaults>
</compile_context>

<pallas_src>
import functools

import jax
import jax.numpy as jnp
from jax import lax
from jax.experimental import pallas as pl
from jax.experimental.pallas import tpu as pltpu

BN_EPS = 1e-5


# ---------------------------------------------------------------------------
# Pass 1: h1 = relu(fps @ W1 + b1); accumulate per-feature sum / sum-of-sq.
# ---------------------------------------------------------------------------
def _linear_relu_stats_kernel(x_ref, w_ref, b_ref, h_ref, stats_ref):
    i = pl.program_id(0)

    h = jnp.dot(x_ref[...], w_ref[...],
                preferred_element_type=jnp.float32) + b_ref[...]
    h = jnp.maximum(h, 0.0)
    h_ref[...] = h

    upd = jnp.concatenate(
        [jnp.sum(h, axis=0, keepdims=True),
         jnp.sum(h * h, axis=0, keepdims=True)], axis=0)      # (2, F)

    @pl.when(i == 0)
    def _():
        stats_ref[...] = jnp.zeros_like(stats_ref)

    stats_ref[...] += upd


# ---------------------------------------------------------------------------
# Pass 2: y = relu(BN_512(h1) @ W2 + b2); accumulate per-feature stats of y.
# ---------------------------------------------------------------------------
def _bn_linear_relu_stats_kernel(h_ref, stats1_ref, g_ref, be_ref,
                                 w_ref, b_ref, y_ref, stats2_ref,
                                 *, inv_b):
    i = pl.program_id(0)

    st = stats1_ref[...]                                       # (2, F)
    mean = st[0:1, :] * inv_b
    var = jnp.maximum(st[1:2, :] * inv_b - mean * mean, 0.0)
    scale = g_ref[...] * lax.rsqrt(var + BN_EPS)               # fold BN affine
    shift = be_ref[...] - mean * scale
    hn = h_ref[...] * scale + shift                            # one FMA / elem

    y = jnp.dot(hn.astype(jnp.bfloat16), w_ref[...],
                preferred_element_type=jnp.float32) + b_ref[...]
    y = jnp.maximum(y, 0.0)
    y_ref[...] = y

    upd = jnp.concatenate(
        [jnp.sum(y, axis=0, keepdims=True),
         jnp.sum(y * y, axis=0, keepdims=True)], axis=0)

    @pl.when(i == 0)
    def _():
        stats2_ref[...] = jnp.zeros_like(stats2_ref)

    stats2_ref[...] += upd


# ---------------------------------------------------------------------------
# Pass 3: out = relu(BN_256(y)).
# ---------------------------------------------------------------------------
def _bn_relu_kernel(y_ref, stats_ref, g_ref, be_ref, out_ref, *, inv_b):
    st = stats_ref[...]
    mean = st[0:1, :] * inv_b
    var = jnp.maximum(st[1:2, :] * inv_b - mean * mean, 0.0)
    scale = g_ref[...] * lax.rsqrt(var + BN_EPS)
    shift = be_ref[...] - mean * scale
    out_ref[...] = jnp.maximum(y_ref[...] * scale + shift, 0.0)


# ---------------------------------------------------------------------------
# Wrapper.
# ---------------------------------------------------------------------------
def mol_fp_encoder(fps, params, block_b=128):
    """fps: (B, init_dim) float32 binary fingerprints; params: dict."""
    B, D = fps.shape
    H1 = params["w1"].shape[1]
    H2 = params["w2"].shape[1]

    # BN uses full-batch statistics, so rows cannot be zero-padded (padding
    # would corrupt the batch stats).  If B doesn't tile evenly, fall back to
    # a single block over the whole batch.
    if B % block_b != 0:
        block_b = B
    nbt = B // block_b

    # Binary {0,1} fingerprints are exact in bf16 -> halve the streaming DMA
    # and feed the native bf16 MXU path directly.
    x = fps.astype(jnp.bfloat16)

    def pinned(shape):
        return pl.BlockSpec(shape, lambda i: (0,) * len(shape))

    def tiled(shape):
        return pl.BlockSpec(shape, lambda i: (i,) + (0,) * (len(shape) - 1))

    cparams_acc = pltpu.CompilerParams(
        dimension_semantics=("arbitrary",),      # stats accumulate across tiles
        vmem_limit_bytes=32 << 20)               # v7x-safe (64 MiB physical)
    cparams_par = pltpu.CompilerParams(
        dimension_semantics=("parallel",),
        vmem_limit_bytes=32 << 20)

    inv_b = 1.0 / float(B)

    # ---- pass 1: Linear(D, H1) + ReLU, per-feature sum / sumsq -------------
    h1, stats1 = pl.pallas_call(
        _linear_relu_stats_kernel,
        out_shape=(jax.ShapeDtypeStruct((B, H1), jnp.float32),
                   jax.ShapeDtypeStruct((2, H1), jnp.float32)),
        grid=(nbt,),
        in_specs=[tiled((block_b, D)),           # fps tiles stream
                  pinned((D, H1)),               # W1 resident (bf16, 2 MiB)
                  pinned((1, H1))],
        out_specs=(tiled((block_b, H1)), pinned((2, H1))),
        compiler_params=cparams_acc,
    )(x, params["w1"], params["b1"])

    # ---- pass 2: BN(H1) + Linear(H1, H2) + ReLU, sum / sumsq of y ----------
    y, stats2 = pl.pallas_call(
        functools.partial(_bn_linear_relu_stats_kernel, inv_b=inv_b),
        out_shape=(jax.ShapeDtypeStruct((B, H2), jnp.float32),
                   jax.ShapeDtypeStruct((2, H2), jnp.float32)),
        grid=(nbt,),
        in_specs=[tiled((block_b, H1)),
                  pinned((2, H1)),
                  pinned((1, H1)), pinned((1, H1)),
                  pinned((H1, H2)),              # W2 resident (bf16)
                  pinned((1, H2))],
        out_specs=(tiled((block_b, H2)), pinned((2, H2))),
        compiler_params=cparams_acc,
    )(h1, stats1, params["g1"], params["be1"], params["w2"], params["b2"])

    # ---- pass 3: outer BN(H2) + ReLU ---------------------------------------
    out = pl.pallas_call(
        functools.partial(_bn_relu_kernel, inv_b=inv_b),
        out_shape=jax.ShapeDtypeStruct((B, H2), jnp.float32),
        grid=(nbt,),
        in_specs=[tiled((block_b, H2)),
                  pinned((2, H2)),
                  pinned((1, H2)), pinned((1, H2))],
        out_specs=tiled((block_b, H2)),
        compiler_params=cparams_par,
    )(y, stats2, params["g2"], params["be2"])

    return out


# ---------------------------------------------------------------------------
# Parameter init (matches init_emb: xavier_uniform weights, zero biases,
# default BatchNorm affine = gamma 1 / beta 0).  Linear weights are stored
# pre-transposed (in_F, out_F) and in bf16 for the MXU.
# ---------------------------------------------------------------------------
def xavier_uniform(key, fan_in, fan_out):
    bound = (6.0 / (fan_in + fan_out)) ** 0.5
    return jax.random.uniform(key, (fan_in, fan_out), jnp.float32, -bound, bound)


def init_params(key, init_dim=2048, hidden=512, emb_dim=256):
    k1, k2 = jax.random.split(key)
    return {
        "w1": xavier_uniform(k1, init_dim, hidden).astype(jnp.bfloat16),
        "b1": jnp.zeros((1, hidden), jnp.float32),
        "g1": jnp.ones((1, hidden), jnp.float32),
        "be1": jnp.zeros((1, hidden), jnp.float32),
        "w2": xavier_uniform(k2, hidden, emb_dim).astype(jnp.bfloat16),
        "b2": jnp.zeros((1, emb_dim), jnp.float32),
        "g2": jnp.ones((1, emb_dim), jnp.float32),
        "be2": jnp.zeros((1, emb_dim), jnp.float32),
    }


# ---------------------------------------------------------------------------
# Matched-precision pure-JAX reference (bf16 matmul inputs, f32 accumulation,
# one-pass biased batch variance), mirroring the kernel's numerics.
# ---------------------------------------------------------------------------
def reference(fps, p):
    def bn(x, g, b):
        mean = jnp.mean(x, axis=0, keepdims=True)
        var = jnp.maximum(
            jnp.mean(x * x, axis=0, keepdims=True) - mean * mean, 0.0)
        return (x - mean) * lax.rsqrt(var + BN_EPS) * g + b

    h = jnp.dot(fps.astype(jnp.bfloat16), p["w1"],
                preferred_element_type=jnp.float32) + p["b1"]
    h = jnp.maximum(h, 0.0)
    h = bn(h, p["g1"], p["be1"])
    y = jnp.dot(h.astype(jnp.bfloat16), p["w2"],
                preferred_element_type=jnp.float32) + p["b2"]
    y = jnp.maximum(y, 0.0)
    return jnp.maximum(bn(y, p["g2"], p["be2"]), 0.0)


if __name__ == "__main__":
    key = jax.random.PRNGKey(0)
    k_fp, k_param = jax.random.split(key)

    B, INIT_DIM = 128, 2048            # fp_type='morgan' -> 2048-bit fingerprint
    # Synthetic binary fingerprints, cast to float as in forward (.float()).
    fps = jax.random.bernoulli(k_fp, 0.1, (B, INIT_DIM)).astype(jnp.float32)

    params = init_params(k_param, init_dim=INIT_DIM, hidden=512, emb_dim=256)

    # block_b=64 -> 2 B-tiles per pass, exercising the cross-tile BN-stat
    # accumulation path.
    out = jax.block_until_ready(mol_fp_encoder(fps, params, block_b=64))
    ref = jax.block_until_ready(reference(fps, params))

    assert out.shape == (B, 256) and out.dtype == jnp.float32
    assert jnp.allclose(out, ref, atol=1e-2, rtol=1e-2), \
        float(jnp.max(jnp.abs(out - ref)))

    print("KERNEL_OK")
</pallas_src>

<mosaic_0001>
module attributes {stable_mosaic.version = 11 : i64} {
  func.func @_linear_relu_stats_kernel(%arg0: i32, %arg1: memref<64x2048xbf16, #tpu.memory_space<vmem>>, %arg2: memref<2048x512xbf16, #tpu.memory_space<vmem>>, %arg3: memref<1x512xf32, #tpu.memory_space<vmem>>, %arg4: memref<64x512xf32, #tpu.memory_space<vmem>>, %arg5: memref<2x512xf32, #tpu.memory_space<vmem>>) attributes {dimension_semantics = [#tpu.dimension_semantics<arbitrary>], iteration_bounds = array<i64: 2>, scalar_prefetch = 0 : i64, scratch_operands = 0 : i64, tpu.core_type = #tpu.core_type<tc>, window_params = [{transform_indices = @transform_0, window_bounds = array<i64: 64, 2048>}, {pipeline_mode = #tpu.pipeline_mode<synchronous>, transform_indices = @transform_1, window_bounds = array<i64: 2048, 512>}, {pipeline_mode = #tpu.pipeline_mode<synchronous>, transform_indices = @transform_2, window_bounds = array<i64: 1, 512>}, {transform_indices = @transform_3, window_bounds = array<i64: 64, 512>}, {pipeline_mode = #tpu.pipeline_mode<synchronous>, transform_indices = @transform_4, window_bounds = array<i64: 2, 512>}]} {
    %c0 = arith.constant 0 : index
    %c0_0 = arith.constant 0 : index
    %0 = vector.load %arg1[%c0, %c0_0] : memref<64x2048xbf16, #tpu.memory_space<vmem>>, vector<64x2048xbf16>
    %c0_1 = arith.constant 0 : index
    %c0_2 = arith.constant 0 : index
    %1 = vector.load %arg2[%c0_1, %c0_2] : memref<2048x512xbf16, #tpu.memory_space<vmem>>, vector<2048x512xbf16>
    %cst = arith.constant dense<0.000000e+00> : vector<64x512xf32>
    %2 = tpu.matmul %0, %1, %cst {dimension_numbers = #tpu.dot_dimension_numbers<[1], [0], [0], [1], [0, 0, 1, 1], [], []>} : vector<64x2048xbf16>, vector<2048x512xbf16>, vector<64x512xf32> -> vector<64x512xf32>
    %c0_3 = arith.constant 0 : index
    %c0_4 = arith.constant 0 : index
    %3 = vector.load %arg3[%c0_3, %c0_4] : memref<1x512xf32, #tpu.memory_space<vmem>>, vector<1x512xf32>
    %4 = vector.broadcast %3 : vector<1x512xf32> to vector<64x512xf32>
    %5 = arith.addf %2, %4 : vector<64x512xf32>
    %cst_5 = arith.constant 0.000000e+00 : f32
    %6 = vector.broadcast %cst_5 : f32 to vector<64x512xf32>
    %7 = arith.maximumf %5, %6 : vector<64x512xf32>
    %c0_6 = arith.constant 0 : index
    %c0_7 = arith.constant 0 : index
    %8 = vector.load %arg4[%c0_6, %c0_7] : memref<64x512xf32, #tpu.memory_space<vmem>>, vector<64x512xf32>
    tpu.vector_store %arg4[%c0_6, %c0_7], %7 {strides = array<i32>} : memref<64x512xf32, #tpu.memory_space<vmem>>, vector<64x512xf32>,
    %cst_8 = arith.constant dense<0.000000e+00> : vector<512xf32>
    %9 = vector.multi_reduction <add>, %7, %cst_8 [0] : vector<64x512xf32> to vector<512xf32>
    %10 = vector.shape_cast %9 : vector<512xf32> to vector<1x512xf32>
    %11 = arith.mulf %7, %7 : vector<64x512xf32>
    %cst_9 = arith.constant dense<0.000000e+00> : vector<512xf32>
    %12 = vector.multi_reduction <add>, %11, %cst_9 [0] : vector<64x512xf32> to vector<512xf32>
    %13 = vector.shape_cast %12 : vector<512xf32> to vector<1x512xf32>
    %14 = tpu.concatenate %10, %13 in 0 : vector<1x512xf32>, vector<1x512xf32> -> vector<2x512xf32>
    %c0_i32 = arith.constant 0 : i32
    %15 = arith.cmpi eq, %arg0, %c0_i32 : i32
    %16 = arith.extui %15 : i1 to i32
    %c0_i32_10 = arith.constant 0 : i32
    %17 = arith.cmpi ne, %16, %c0_i32_10 : i32
    scf.if %17 {
      %cst_15 = arith.constant 0.000000e+00 : f32
      %21 = vector.broadcast %cst_15 : f32 to vector<2x512xf32>
      %c0_16 = arith.constant 0 : index
      %c0_17 = arith.constant 0 : index
      %22 = vector.load %arg5[%c0_16, %c0_17] : memref<2x512xf32, #tpu.memory_space<vmem>>, vector<2x512xf32>
      tpu.vector_store %arg5[%c0_16, %c0_17], %21 {strides = array<i32>} : memref<2x512xf32, #tpu.memory_space<vmem>>, vector<2x512xf32>,
    } else {
    }
    %c0_11 = arith.constant 0 : index
    %c0_12 = arith.constant 0 : index
    %18 = vector.load %arg5[%c0_11, %c0_12] : memref<2x512xf32, #tpu.memory_space<vmem>>, vector<2x512xf32>
    %19 = arith.addf %18, %14 : vector<2x512xf32>
    %c0_13 = arith.constant 0 : index
    %c0_14 = arith.constant 0 : index
    %20 = vector.load %arg5[%c0_13, %c0_14] : memref<2x512xf32, #tpu.memory_space<vmem>>, vector<2x512xf32>
    tpu.vector_store %arg5[%c0_13, %c0_14], %19 {strides = array<i32>} : memref<2x512xf32, #tpu.memory_space<vmem>>, vector<2x512xf32>,
    return
  }
  func.func @transform_0(%arg0: i32) -> (i32, i32) {
    %c0_i32 = arith.constant 0 : i32
    %c0_i32_0 = arith.constant 0 : i32
    return %arg0, %c0_i32 : i32, i32
  }
  func.func @transform_1(%arg0: i32) -> (i32, i32) {
    %c0_i32 = arith.constant 0 : i32
    %c0_i32_0 = arith.constant 0 : i32
    %c0_i32_1 = arith.constant 0 : i32
    return %c0_i32, %c0_i32_0 : i32, i32
  }
  func.func @transform_2(%arg0: i32) -> (i32, i32) {
    %c0_i32 = arith.constant 0 : i32
    %c0_i32_0 = arith.constant 0 : i32
    %c0_i32_1 = arith.constant 0 : i32
    return %c0_i32, %c0_i32_0 : i32, i32
  }
  func.func @transform_3(%arg0: i32) -> (i32, i32) {
    %c0_i32 = arith.constant 0 : i32
    %c0_i32_0 = arith.constant 0 : i32
    return %arg0, %c0_i32 : i32, i32
  }
  func.func @transform_4(%arg0: i32) -> (i32, i32) {
    %c0_i32 = arith.constant 0 : i32
    %c0_i32_0 = arith.constant 0 : i32
    %c0_i32_1 = arith.constant 0 : i32
    return %c0_i32, %c0_i32_0 : i32, i32
  }
}

</mosaic_0001>

<llo_original>
// kernel: tpu_custom_call.1
$region0: #{tpu_custom_call.1}
  #allocation0 [shape = 'u32[]', space=smem, size = 0x4, offset = 0x4, fixed_abs, tag = 'smem constant byte address 0x4 - core index']
  #allocation1 [shape = 'u32[72,128]{1,0:T(1,128)}', space=vmem, size = 0x9000, scoped, tag = 'internal scratch']
  %s0 = inlined_call_operand.hbm [shape: bf16[128,2048], index: 0, kind: input, shape index: {}]
  %s1 = inlined_call_operand.hbm [shape: bf16[2048,512], index: 1, kind: input, shape index: {}]
  %s2 = inlined_call_operand.hbm [shape: f32[1,512], index: 2, kind: input, shape index: {}]
  %s3 = inlined_call_operand.hbm [shape: f32[128,512], index: 3, kind: output, shape index: {0}]
  %s4 = inlined_call_operand.hbm [shape: f32[2,512], index: 4, kind: output, shape index: {1}]
  %5 = xla_tuple %s3, %s4
  %s6 = sld [smem:[#allocation0]]
  $region69: #{tpu_custom_call.1} parent=0
    _
  %s8 = ssub.s32 1, %s6
  %s9 = scalar_select 0, %s8, %s6
  $region1: #{tpu_custom_call.1} parent=0
    #allocation2 [shape = 'u8[524288]{0}', space=vmem, size = 0x80000, scoped, tag = 'input window, operand 0']
    #allocation3 [shape = 's32[2]{0}', space=sflag, size = 0x8, scoped, tag = 'scoped memory for tpu_custom_call.1']
    #allocation4 [shape = 's32[2]{0}', space=sflag, size = 0x8, scoped, tag = 'scoped memory for tpu_custom_call.1']
    #allocation5 [shape = 'u8[2097152]{0}', space=vmem, size = 0x200000, scoped, tag = 'input window, operand 1, single buffered']
    #allocation6 [shape = 's32[1]{0}', space=sflag, size = 0x4, scoped, tag = 'scoped memory for tpu_custom_call.1']
    #allocation7 [shape = 'u8[2048]{0}', space=vmem, size = 0x800, scoped, tag = 'input window, operand 2, single buffered']
    #allocation8 [shape = 'u8[262144]{0}', space=vmem, size = 0x40000, scoped, tag = 'output window, operand 0']
    #allocation9 [shape = 'u8[4096]{0}', space=vmem, size = 0x1000, scoped, tag = 'output window, operand 1, single buffered']
    #allocation10 [shape = 's32[1]{0}', space=sflag, size = 0x4, scoped, tag = 'scoped memory for tpu_custom_call.1']
    %10 = vsyncpa [#allocation3], 0
    %s11 = scalar_lea.sflag [#allocation3], 1
    %12 = vsyncpa %s11, 0
    %13 = vsyncpa [#allocation6], 0
    %14 = vsyncpa [#allocation4], 0
    %s15 = scalar_lea.sflag [#allocation4], 1
    %16 = vsyncpa %s15, 0
    %17 = vsyncpa [#allocation10], 0
    loop: start=0, step=1, limit=4
    $region2: #{tpu_custom_call.1} parent=1 // loop_pre_header
      _
    $region3: #{tpu_custom_call.1} parent=1 // loop_header
      %s19 = sphi 0, %s23
      %p20 = scmp.ge.s32.totalorder %s19, 4
      %s29 = sphi 0, %s31
      %s32 = sphi 0, %s29
      %s33 = sphi 0, %s32
      %s49 = sphi 0, %s33
      %s53 = sphi 0, %s53
      %s55 = sphi 0, %s53
      %s56 = sphi 0, %s55
      %s70 = sphi 0, %s56
      %s74 = sphi 0, %s74
      %s76 = sphi 0, %s74
      %s77 = sphi 0, %s76
      %s91 = sphi 0, %s77
      %s97 = sphi 0, %s99
      %s100 = sphi 0, %s97
      %s101 = sphi 0, %s100
      %s117 = sphi 0, %s101
      %s121 = sphi 0, %s121
      %s123 = sphi 0, %s121
      %s124 = sphi 0, %s123
      %s138 = sphi 0, %s124
    $region4: #{tpu_custom_call.1} parent=1 // loop_header_branch
      %22 = sbr.rel (%p20) target = $region8
    $region5: #{tpu_custom_call.1} parent=1 // loop_body
      %s24 = ssub.s32 %s19, 1
      %s25 = ssub.s32 %s19, 2
      %s26 = sadd.s32 %s19, 1
      %s27 = ssub.s32 %s19, %s26
      %p28 = scmp.eq.s32.totalorder %s27, 0
      %s30 = sadd.s32 %s29, 1
      %s31 = scalar_select %p28, %s29, %s30
      %p34 = pneg %p28
      %p35 = scmp.eq.s32.totalorder %s19, 1
      %p36 = por %p34, %p35
      %p37 = scmp.ne.s32.totalorder %s29, %s32
      %p38 = scmp.eq.s32.totalorder %s19, 0
      %p39 = por %p37, %p38
      %p40 = scmp.ne.s32.totalorder %s29, %s32
      %p41 = scmp.eq.s32.totalorder %s24, 1
      %p42 = por %p40, %p41
      %p43 = scmp.ne.s32.totalorder %s32, %s33
      %p44 = scmp.eq.s32.totalorder %s24, 0
      %p45 = por %p43, %p44
      %p46 = scmp.ne.s32.totalorder %s32, %s33
      %p47 = scmp.eq.s32.totalorder %s25, 1
      %p48 = por %p46, %p47
      %p50 = scmp.ne.s32.totalorder %s33, %s49
      %p51 = scmp.eq.s32.totalorder %s25, 0
      %p52 = por %p50, %p51
      %s54 = sadd.s32 %s53, 1
      %p57 = scmp.eq.s32.totalorder %s19, 1
      %p58 = scmp.ne.s32.totalorder %s53, %s55
      %p59 = scmp.eq.s32.totalorder %s19, 0
      %p60 = por %p58, %p59
      %p61 = scmp.ne.s32.totalorder %s53, %s55
      %p62 = scmp.eq.s32.totalorder %s24, 1
      %p63 = por %p61, %p62
      %p64 = scmp.ne.s32.totalorder %s55, %s56
      %p65 = scmp.eq.s32.totalorder %s24, 0
      %p66 = por %p64, %p65
      %p67 = scmp.ne.s32.totalorder %s55, %s56
      %p68 = scmp.eq.s32.totalorder %s25, 1
      %p69 = por %p67, %p68
      %p71 = scmp.ne.s32.totalorder %s56, %s70
      %p72 = scmp.eq.s32.totalorder %s25, 0
      %p73 = por %p71, %p72
      %s75 = sadd.s32 %s74, 1
      %p78 = scmp.eq.s32.totalorder %s19, 1
      %p79 = scmp.ne.s32.totalorder %s74, %s76
      %p80 = scmp.eq.s32.totalorder %s19, 0
      %p81 = por %p79, %p80
      %p82 = scmp.ne.s32.totalorder %s74, %s76
      %p83 = scmp.eq.s32.totalorder %s24, 1
      %p84 = por %p82, %p83
      %p85 = scmp.ne.s32.totalorder %s76, %s77
      %p86 = scmp.eq.s32.totalorder %s24, 0
      %p87 = por %p85, %p86
      %p88 = scmp.ne.s32.totalorder %s76, %s77
      %p89 = scmp.eq.s32.totalorder %s25, 1
      %p90 = por %p88, %p89
      %p92 = scmp.ne.s32.totalorder %s77, %s91
      %p93 = scmp.eq.s32.totalorder %s25, 0
      %p94 = por %p92, %p93
      %s95 = ssub.s32 %s19, %s26
      %p96 = scmp.eq.s32.totalorder %s95, 0
      %s98 = sadd.s32 %s97, 1
      %s99 = scalar_select %p96, %s97, %s98
      %p102 = pneg %p96
      %p103 = scmp.eq.s32.totalorder %s19, 1
      %p104 = por %p102, %p103
      %p105 = scmp.ne.s32.totalorder %s97, %s100
      %p106 = scmp.eq.s32.totalorder %s19, 0
      %p107 = por %p105, %p106
      %p108 = scmp.ne.s32.totalorder %s97, %s100
      %p109 = scmp.eq.s32.totalorder %s24, 1
      %p110 = por %p108, %p109
      %p111 = scmp.ne.s32.totalorder %s100, %s101
      %p112 = scmp.eq.s32.totalorder %s24, 0
      %p113 = por %p111, %p112
      %p114 = scmp.ne.s32.totalorder %s100, %s101
      %p115 = scmp.eq.s32.totalorder %s25, 1
      %p116 = por %p114, %p115
      %p118 = scmp.ne.s32.totalorder %s101, %s117
      %p119 = scmp.eq.s32.totalorder %s25, 0
      %p120 = por %p118, %p119
      %s122 = sadd.s32 %s121, 1
      %p125 = scmp.eq.s32.totalorder %s19, 1
      %p126 = scmp.ne.s32.totalorder %s121, %s123
      %p127 = scmp.eq.s32.totalorder %s19, 0
      %p128 = por %p126, %p127
      %p129 = scmp.ne.s32.totalorder %s121, %s123
      %p130 = scmp.eq.s32.totalorder %s24, 1
      %p131 = por %p129, %p130
      %p132 = scmp.ne.s32.totalorder %s123, %s124
      %p133 = scmp.eq.s32.totalorder %s24, 0
      %p134 = por %p132, %p133
      %p135 = scmp.ne.s32.totalorder %s123, %s124
      %p136 = scmp.eq.s32.totalorder %s25, 1
      %p137 = por %p135, %p136
      %p139 = scmp.ne.s32.totalorder %s124, %s138
      %p140 = scmp.eq.s32.totalorder %s25, 0
      %p141 = por %p139, %p140
      %p142 = scmp.le.s32.totalorder 1, %s19
      %p143 = scmp.lt.s32.totalorder %s19, 3
      %p144 = pnand %p142, %p143
      %p145 = pneg %p144
      // Predicated region
      $region9: #{tpu_custom_call.1} parent=5 // pred_check
        _
      $region10: #{tpu_custom_call.1} parent=5 // pred_check_branch
        %147 = sbr.rel (%p144) target = $region12
      $region11: #{tpu_custom_call.1} parent=5 // pred_region
        %s148 = ssub.s32 %s19, 1
        // Predicated region
        $region13: #{tpu_custom_call.1} parent=11 // pred_check
          %p149 = pneg %p66
        $region14: #{tpu_custom_call.1} parent=11 // pred_check_branch
          %151 = sbr.rel (%p149) target = $region16
        $region15: #{tpu_custom_call.1} parent=11 // pred_region
          %153 = vsyncadd [#allocation6], 0
          %s154 = sshll.u32 %s1, 4
          %s155 = int_to_ptr.hbm [resolvable:$true] %s154
          %s156 = sshll.u32 [#allocation5], 4
          %s157 = int_to_ptr.vmem [resolvable:$true] %s156
          %162 = dma.hbm_to_vmem [thread:$0]  %s155, 65536, %s157, [#allocation6], 256, 256, 16
        $region16: #{tpu_custom_call.1} parent=11 // pred_fallthru
          _
        // Predicated region
        $region17: #{tpu_custom_call.1} parent=11 // pred_check
          %p163 = pneg %p87
        $region18: #{tpu_custom_call.1} parent=11 // pred_check_branch
          %165 = sbr.rel (%p163) target = $region20
        $region19: #{tpu_custom_call.1} parent=11 // pred_region
          %167 = vsyncadd [#allocation6], 0
          %s169 = sshll.u32 %s2, 4
          %s170 = int_to_ptr.hbm [resolvable:$true] %s169
          %s171 = sshll.u32 [#allocation7], 4
          %s172 = int_to_ptr.vmem [resolvable:$true] %s171
          %174 = dma.hbm_to_vmem [thread:$0]  %s170, 64, %s172, [#allocation6]
        $region20: #{tpu_custom_call.1} parent=11 // pred_fallthru
          _
      $region12: #{tpu_custom_call.1} parent=5 // pred_fallthru
        _
      %p175 = scmp.lt.s32.totalorder %s19, 2
      // Predicated region
      $region21: #{tpu_custom_call.1} parent=5 // pred_check
        %p176 = pneg %p175
      $region22: #{tpu_custom_call.1} parent=5 // pred_check_branch
        %178 = sbr.rel (%p176) target = $region24
      $region23: #{tpu_custom_call.1} parent=5 // pred_region
        // Predicated region
        $region25: #{tpu_custom_call.1} parent=23 // pred_check
          %p179 = pneg %p39
        $region26: #{tpu_custom_call.1} parent=23 // pred_check_branch
          %181 = sbr.rel (%p179) target = $region28
        $region27: #{tpu_custom_call.1} parent=23 // pred_region
          %s182 = sand.u32 %s29, 1
          %s183 = scalar_lea.sflag [#allocation3], %s182
          %s184 = sand.u32 %s29, 1
          %s185 = smul.addr %s184, 512
          %s186 = scalar_lea.vmem [#allocation2], %s185
          %s187 = smul.u32 8, %s19
          %189 = vsyncadd %s183, 0
          %s190 = smul.addr %s187, 16
          %s191 = smul.addr %s190, 4
          %s192 = scalar_lea.hbm %s0, %s191
          %s193 = sshll.u32 %s192, 4
          %s194 = int_to_ptr.hbm [resolvable:$true] %s193
          %s195 = sshll.u32 %s186, 4
          %s196 = int_to_ptr.vmem [resolvable:$true] %s195
          %201 = dma.hbm_to_vmem [thread:$0]  %s194, 8192, %s196, %s183, 1024, 1024, 64
        $region28: #{tpu_custom_call.1} parent=23 // pred_fallthru
          _
      $region24: #{tpu_custom_call.1} parent=5 // pred_fallthru
        _
      %p202 = scmp.le.s32.totalorder 1, %s19
      %p203 = scmp.lt.s32.totalorder %s19, 3
      %p204 = pnand %p202, %p203
      %p205 = pneg %p204
      // Predicated region
      $region29: #{tpu_custom_call.1} parent=5 // pred_check
        _
      $region30: #{tpu_custom_call.1} parent=5 // pred_check_branch
        %207 = sbr.rel (%p204) target = $region32
      $region31: #{tpu_custom_call.1} parent=5 // pred_region
        %s208 = ssub.s32 %s19, 1
        %s209 = sand.u32 %s32, 1
        %s210 = scalar_lea.sflag [#allocation3], %s209
        %s211 = sand.u32 %s32, 1
        %s212 = smul.addr %s211, 512
        %s213 = scalar_lea.vmem [#allocation2], %s212
        // Predicated region
        $region33: #{tpu_custom_call.1} parent=31 // pred_check
          %p214 = pneg %p45
        $region34: #{tpu_custom_call.1} parent=31 // pred_check_branch
          %216 = sbr.rel (%p214) target = $region36
        $region35: #{tpu_custom_call.1} parent=31 // pred_region
          %218 = dma.done %s210, 8192
        $region36: #{tpu_custom_call.1} parent=31 // pred_fallthru
          _
        // Predicated region
        $region37: #{tpu_custom_call.1} parent=31 // pred_check
          %p219 = pneg %p66
        $region38: #{tpu_custom_call.1} parent=31 // pred_check_branch
          %221 = sbr.rel (%p219) target = $region40
        $region39: #{tpu_custom_call.1} parent=31 // pred_region
          %223 = dma.done [#allocation6], 65536
        $region40: #{tpu_custom_call.1} parent=31 // pred_fallthru
          _
        // Predicated region
        $region41: #{tpu_custom_call.1} parent=31 // pred_check
          %p224 = pneg %p87
        $region42: #{tpu_custom_call.1} parent=31 // pred_check_branch
          %226 = sbr.rel (%p224) target = $region44
        $region43: #{tpu_custom_call.1} parent=31 // pred_region
          %228 = dma.done [#allocation6], 64
        $region44: #{tpu_custom_call.1} parent=31 // pred_fallthru
          _
        %s229 = sand.u32 %s32, 1
        %s230 = scalar_lea.sflag [#allocation3], %s229
        %s231 = sand.u32 %s32, 1
        %s232 = smul.addr %s231, 512
        %s233 = scalar_lea.vmem [#allocation2], %s232
        %p234 = pneg %p45
        %p235 = pneg %p42
        %p236 = pneg %p66
        %p237 = pneg %p63
        %p238 = pneg %p87
        %p239 = pneg %p84
        %p240 = pneg %p113
        %p241 = pneg %p110
        %s242 = sand.u32 %s100, 1
        %s243 = scalar_lea.sflag [#allocation4], %s242
        %s244 = sand.u32 %s100, 1
        %s245 = smul.addr %s244, 256
        %s246 = scalar_lea.vmem [#allocation8], %s245
        %p247 = pneg %p134
        %p248 = pneg %p131
        %s249 = smul.u32 8, %s24
        %s250 = smul.u32 8, %s24
        %v251 = vld [vmem:[%s213] sm:$0xff]
        %v252 = vld [vmem:[%s213 + $0x8] sm:$0xff]
        %v253 = vld [vmem:[%s213 + $0x10] sm:$0xff]
        %v254 = vld [vmem:[%s213 + $0x18] sm:$0xff]
        %v255 = vld [vmem:[%s213 + $0x20] sm:$0xff]
        %v256 = vld [vmem:[%s213 + $0x28] sm:$0xff]
        %v257 = vld [vmem:[%s213 + $0x30] sm:$0xff]
        %v258 = vld [vmem:[%s213 + $0x38] sm:$0xff]
        %v259 = vld [vmem:[%s213 + $0x40] sm:$0xff]
        %v260 = vld [vmem:[%s213 + $0x48] sm:$0xff]
        %v261 = vld [vmem:[%s213 + $0x50] sm:$0xff]
        %v262 = vld [vmem:[%s213 + $0x58] sm:$0xff]
        %v263 = vld [vmem:[%s213 + $0x60] sm:$0xff]
        %v264 = vld [vmem:[%s213 + $0x68] sm:$0xff]
        %v265 = vld [vmem:[%s213 + $0x70] sm:$0xff]
        %v266 = vld [vmem:[%s213 + $0x78] sm:$0xff]
        %v267 = vld [vmem:[%s213 + $0x80] sm:$0xff]
        %v268 = vld [vmem:[%s213 + $0x88] sm:$0xff]
        %v269 = vld [vmem:[%s213 + $0x90] sm:$0xff]
        %v270 = vld [vmem:[%s213 + $0x98] sm:$0xff]
        %v271 = vld [vmem:[%s213 + $0xa0] sm:$0xff]
        %v272 = vld [vmem:[%s213 + $0xa8] sm:$0xff]
        %v273 = vld [vmem:[%s213 + $0xb0] sm:$0xff]
        %v274 = vld [vmem:[%s213 + $0xb8] sm:$0xff]
        %v275 = vld [vmem:[%s213 + $0xc0] sm:$0xff]
        %v276 = vld [vmem:[%s213 + $0xc8] sm:$0xff]
        %v277 = vld [vmem:[%s213 + $0xd0] sm:$0xff]
        %v278 = vld [vmem:[%s213 + $0xd8] sm:$0xff]
        %v279 = vld [vmem:[%s213 + $0xe0] sm:$0xff]
        %v280 = vld [vmem:[%s213 + $0xe8] sm:$0xff]
        %v281 = vld [vmem:[%s213 + $0xf0] sm:$0xff]
        %v282 = vld [vmem:[%s213 + $0xf8] sm:$0xff]
        %v283 = vld [vmem:[%s213 + $0x100] sm:$0xff]
        %v284 = vld [vmem:[%s213 + $0x108] sm:$0xff]
        %v285 = vld [vmem:[%s213 + $0x110] sm:$0xff]
        %v286 = vld [vmem:[%s213 + $0x118] sm:$0xff]
        %v287 = vld [vmem:[%s213 + $0x120] sm:$0xff]
        %v288 = vld [vmem:[%s213 + $0x128] sm:$0xff]
        %v289 = vld [vmem:[%s213 + $0x130] sm:$0xff]
        %v290 = vld [vmem:[%s213 + $0x138] sm:$0xff]
        %v291 = vld [vmem:[%s213 + $0x140] sm:$0xff]
        %v292 = vld [vmem:[%s213 + $0x148] sm:$0xff]
        %v293 = vld [vmem:[%s213 + $0x150] sm:$0xff]
        %v294 = vld [vmem:[%s213 + $0x158] sm:$0xff]
        %v295 = vld [vmem:[%s213 + $0x160] sm:$0xff]
        %v296 = vld [vmem:[%s213 + $0x168] sm:$0xff]
        %v297 = vld [vmem:[%s213 + $0x170] sm:$0xff]
        %v298 = vld [vmem:[%s213 + $0x178] sm:$0xff]
        %v299 = vld [vmem:[%s213 + $0x180] sm:$0xff]
        %v300 = vld [vmem:[%s213 + $0x188] sm:$0xff]
        %v301 = vld [vmem:[%s213 + $0x190] sm:$0xff]
        %v302 = vld [vmem:[%s213 + $0x198] sm:$0xff]
        %v303 = vld [vmem:[%s213 + $0x1a0] sm:$0xff]
        %v304 = vld [vmem:[%s213 + $0x1a8] sm:$0xff]
        %v305 = vld [vmem:[%s213 + $0x1b0] sm:$0xff]
        %v306 = vld [vmem:[%s213 + $0x1b8] sm:$0xff]
        %v307 = vld [vmem:[%s213 + $0x1c0] sm:$0xff]
        %v308 = vld [vmem:[%s213 + $0x1c8] sm:$0xff]
        %v309 = vld [vmem:[%s213 + $0x1d0] sm:$0xff]
        %v310 = vld [vmem:[%s213 + $0x1d8] sm:$0xff]
        %v311 = vld [vmem:[%s213 + $0x1e0] sm:$0xff]
        %v312 = vld [vmem:[%s213 + $0x1e8] sm:$0xff]
        %v313 = vld [vmem:[%s213 + $0x1f0] sm:$0xff]
        %v314 = vld [vmem:[%s213 + $0x1f8] sm:$0xff]
        %v315 = vld [vmem:[#allocation5] sm:$0xff]
        %v316 = vld [vmem:[#allocation5 + $0x8] sm:$0xff]
        %v317 = vld [vmem:[#allocation5 + $0x10] sm:$0xff]
        %v318 = vld [vmem:[#allocation5 + $0x18] sm:$0xff]
        %v319 = vld [vmem:[#allocation5 + $0x20] sm:$0xff]
        %v320 = vld [vmem:[#allocation5 + $0x28] sm:$0xff]
        %v321 = vld [vmem:[#allocation5 + $0x30] sm:$0xff]
        %v322 = vld [vmem:[#allocation5 + $0x38] sm:$0xff]
        %v323 = vld [vmem:[#allocation5 + $0x40] sm:$0xff]
        %v324 = vld [vmem:[#allocation5 + $0x48] sm:$0xff]
        %v325 = vld [vmem:[#allocation5 + $0x50] sm:$0xff]
        %v326 = vld [vmem:[#allocation5 + $0x58] sm:$0xff]
        %v327 = vld [vmem:[#allocation5 + $0x60] sm:$0xff]
        %v328 = vld [vmem:[#allocation5 + $0x68] sm:$0xff]
        %v329 = vld [vmem:[#allocation5 + $0x70] sm:$0xff]
        %v330 = vld [vmem:[#allocation5 + $0x78] sm:$0xff]
        %v331 = vld [vmem:[#allocation5 + $0x80] sm:$0xff]
        %v332 = vld [vmem:[#allocation5 + $0x88] sm:$0xff]
        %v333 = vld [vmem:[#allocation5 + $0x90] sm:$0xff]
        %v334 = vld [vmem:[#allocation5 + $0x98] sm:$0xff]
        %v335 = vld [vmem:[#allocation5 + $0xa0] sm:$0xff]
        %v336 = vld [vmem:[#allocation5 + $0xa8] sm:$0xff]
        %v337 = vld [vmem:[#allocation5 + $0xb0] sm:$0xff]
        %v338 = vld [vmem:[#allocation5 + $0xb8] sm:$0xff]
        %v339 = vld [vmem:[#allocation5 + $0xc0] sm:$0xff]
        %v340 = vld [vmem:[#allocation5 + $0xc8] sm:$0xff]
        %v341 = vld [vmem:[#allocation5 + $0xd0] sm:$0xff]
        %v342 = vld [vmem:[#allocation5 + $0xd8] sm:$0xff]
        %v343 = vld [vmem:[#allocation5 + $0xe0] sm:$0xff]
        %v344 = vld [vmem:[#allocation5 + $0xe8] sm:$0xff]
        %v345 = vld [vmem:[#allocation5 + $0xf0] sm:$0xff]
        %v346 = vld [vmem:[#allocation5 + $0xf8] sm:$0xff]
        %v347 = vld [vmem:[#allocation5 + $0x100] sm:$0xff]
        %v348 = vld [vmem:[#allocation5 + $0x108] sm:$0xff]
        %v349 = vld [vmem:[#allocation5 + $0x110] sm:$0xff]
        %v350 = vld [vmem:[#allocation5 + $0x118] sm:$0xff]
        %v351 = vld [vmem:[#allocation5 + $0x120] sm:$0xff]
        %v352 = vld [vmem:[#allocation5 + $0x128] sm:$0xff]
        %v353 = vld [vmem:[#allocation5 + $0x130] sm:$0xff]
        %v354 = vld [vmem:[#allocation5 + $0x138] sm:$0xff]
        %v355 = vld [vmem:[#allocation5 + $0x140] sm:$0xff]
        %v356 = vld [vmem:[#allocation5 + $0x148] sm:$0xff]
        %v357 = vld [vmem:[#allocation5 + $0x150] sm:$0xff]
        %v358 = vld [vmem:[#allocation5 + $0x158] sm:$0xff]
        %v359 = vld [vmem:[#allocation5 + $0x160] sm:$0xff]
        %v360 = vld [vmem:[#allocation5 + $0x168] sm:$0xff]
        %v361 = vld [vmem:[#allocation5 + $0x170] sm:$0xff]
        %v362 = vld [vmem:[#allocation5 + $0x178] sm:$0xff]
        %v363 = vld [vmem:[#allocation5 + $0x180] sm:$0xff]
        %v364 = vld [vmem:[#allocation5 + $0x188] sm:$0xff]
        %v365 = vld [vmem:[#allocation5 + $0x190] sm:$0xff]
        %v366 = vld [vmem:[#allocation5 + $0x198] sm:$0xff]
        %v367 = vld [vmem:[#allocation5 + $0x1a0] sm:$0xff]
        %v368 = vld [vmem:[#allocation5 + $0x1a8] sm:$0xff]
        %v369 = vld [vmem:[#allocation5 + $0x1b0] sm:$0xff]
        %v370 = vld [vmem:[#allocation5 + $0x1b8] sm:$0xff]
        %v371 = vld [vmem:[#allocation5 + $0x1c0] sm:$0xff]
        %v372 = vld [vmem:[#allocation5 + $0x1c8] sm:$0xff]
        %v373 = vld [vmem:[#allocation5 + $0x1d0] sm:$0xff]
        %v374 = vld [vmem:[#allocation5 + $0x1d8] sm:$0xff]
        %v375 = vld [vmem:[#allocation5 + $0x1e0] sm:$0xff]
        %v376 = vld [vmem:[#allocation5 + $0x1e8] sm:$0xff]
        %v377 = vld [vmem:[#allocation5 + $0x1f0] sm:$0xff]
        %v378 = vld [vmem:[#allocation5 + $0x1f8] sm:$0xff]
        %v379 = vld [vmem:[#allocation5 + $0x200] sm:$0xff]
        %v380 = vld [vmem:[#allocation5 + $0x208] sm:$0xff]
        %v381 = vld [vmem:[#allocation5 + $0x210] sm:$0xff]
        %v382 = vld [vmem:[#allocation5 + $0x218] sm:$0xff]
        %v383 = vld [vmem:[#allocation5 + $0x220] sm:$0xff]
        %v384 = vld [vmem:[#allocation5 + $0x228] sm:$0xff]
        %v385 = vld [vmem:[#allocation5 + $0x230] sm:$0xff]
        %v386 = vld [vmem:[#allocation5 + $0x238] sm:$0xff]
        %v387 = vld [vmem:[#allocation5 + $0x240] sm:$0xff]
        %v388 = vld [vmem:[#allocation5 + $0x248] sm:$0xff]
        %v389 = vld [vmem:[#allocation5 + $0x250] sm:$0xff]
        %v390 = vld [vmem:[#allocation5 + $0x258] sm:$0xff]
        %v391 = vld [vmem:[#allocation5 + $0x260] sm:$0xff]
        %v392 = vld [vmem:[#allocation5 + $0x268] sm:$0xff]
        %v393 = vld [vmem:[#allocation5 + $0x270] sm:$0xff]
        %v394 = vld [vmem:[#allocation5 + $0x278] sm:$0xff]
        %v395 = vld [vmem:[#allocation5 + $0x280] sm:$0xff]
        %v396 = vld [vmem:[#allocation5 + $0x288] sm:$0xff]
        %v397 = vld [vmem:[#allocation5 + $0x290] sm:$0xff]
        %v398 = vld [vmem:[#allocation5 + $0x298] sm:$0xff]
        %v399 = vld [vmem:[#allocation5 + $0x2a0] sm:$0xff]
        %v400 = vld [vmem:[#allocation5 + $0x2a8] sm:$0xff]
        %v401 = vld [vmem:[#allocation5 + $0x2b0] sm:$0xff]
        %v402 = vld [vmem:[#allocation5 + $0x2b8] sm:$0xff]
        %v403 = vld [vmem:[#allocation5 + $0x2c0] sm:$0xff]
        %v404 = vld [vmem:[#allocation5 + $0x2c8] sm:$0xff]
        %v405 = vld [vmem:[#allocation5 + $0x2d0] sm:$0xff]
        %v406 = vld [vmem:[#allocation5 + $0x2d8] sm:$0xff]
        %v407 = vld [vmem:[#allocation5 + $0x2e0] sm:$0xff]
        %v408 = vld [vmem:[#allocation5 + $0x2e8] sm:$0xff]
        %v409 = vld [vmem:[#allocation5 + $0x2f0] sm:$0xff]
        %v410 = vld [vmem:[#allocation5 + $0x2f8] sm:$0xff]
        %v411 = vld [vmem:[#allocation5 + $0x300] sm:$0xff]
        %v412 = vld [vmem:[#allocation5 + $0x308] sm:$0xff]
        %v413 = vld [vmem:[#allocation5 + $0x310] sm:$0xff]
        %v414 = vld [vmem:[#allocation5 + $0x318] sm:$0xff]
        %v415 = vld [vmem:[#allocation5 + $0x320] sm:$0xff]
        %v416 = vld [vmem:[#allocation5 + $0x328] sm:$0xff]
        %v417 = vld [vmem:[#allocation5 + $0x330] sm:$0xff]
        %v418 = vld [vmem:[#allocation5 + $0x338] sm:$0xff]
        %v419 = vld [vmem:[#allocation5 + $0x340] sm:$0xff]
        %v420 = vld [vmem:[#allocation5 + $0x348] sm:$0xff]
        %v421 = vld [vmem:[#allocation5 + $0x350] sm:$0xff]
        %v422 = vld [vmem:[#allocation5 + $0x358] sm:$0xff]
        %v423 = vld [vmem:[#allocation5 + $0x360] sm:$0xff]
        %v424 = vld [vmem:[#allocation5 + $0x368] sm:$0xff]
        %v425 = vld [vmem:[#allocation5 + $0x370] sm:$0xff]
        %v426 = vld [vmem:[#allocation5 + $0x378] sm:$0xff]
        %v427 = vld [vmem:[#allocation5 + $0x380] sm:$0xff]
        %v428 = vld [vmem:[#allocation5 + $0x388] sm:$0xff]
        %v429 = vld [vmem:[#allocation5 + $0x390] sm:$0xff]
        %v430 = vld [vmem:[#allocation5 + $0x398] sm:$0xff]
        %v431 = vld [vmem:[#allocation5 + $0x3a0] sm:$0xff]
        %v432 = vld [vmem:[#allocation5 + $0x3a8] sm:$0xff]
        %v433 = vld [vmem:[#allocation5 + $0x3b0] sm:$0xff]
        %v434 = vld [vmem:[#allocation5 + $0x3b8] sm:$0xff]
        %v435 = vld [vmem:[#allocation5 + $0x3c0] sm:$0xff]
        %v436 = vld [vmem:[#allocation5 + $0x3c8] sm:$0xff]
        %v437 = vld [vmem:[#allocation5 + $0x3d0] sm:$0xff]
        %v438 = vld [vmem:[#allocation5 + $0x3d8] sm:$0xff]
        %v439 = vld [vmem:[#allocation5 + $0x3e0] sm:$0xff]
        %v440 = vld [vmem:[#allocation5 + $0x3e8] sm:$0xff]
        %v441 = vld [vmem:[#allocation5 + $0x3f0] sm:$0xff]
        %v442 = vld [vmem:[#allocation5 + $0x3f8] sm:$0xff]
        %v443 = vld [vmem:[#allocation5 + $0x400] sm:$0xff]
        %v444 = vld [vmem:[#allocation5 + $0x408] sm:$0xff]
        %v445 = vld [vmem:[#allocation5 + $0x410] sm:$0xff]
        %v446 = vld [vmem:[#allocation5 + $0x418] sm:$0xff]
        %v447 = vld [vmem:[#allocation5 + $0x420] sm:$0xff]
        %v448 = vld [vmem:[#allocation5 + $0x428] sm:$0xff]
        %v449 = vld [vmem:[#allocation5 + $0x430] sm:$0xff]
        %v450 = vld [vmem:[#allocation5 + $0x438] sm:$0xff]
        %v451 = vld [vmem:[#allocation5 + $0x440] sm:$0xff]
        %v452 = vld [vmem:[#allocation5 + $0x448] sm:$0xff]
        %v453 = vld [vmem:[#allocation5 + $0x450] sm:$0xff]
        %v454 = vld [vmem:[#allocation5 + $0x458] sm:$0xff]
        %v455 = vld [vmem:[#allocation5 + $0x460] sm:$0xff]
        %v456 = vld [vmem:[#allocation5 + $0x468] sm:$0xff]
        %v457 = vld [vmem:[#allocation5 + $0x470] sm:$0xff]
        %v458 = vld [vmem:[#allocation5 + $0x478] sm:$0xff]
        %v459 = vld [vmem:[#allocation5 + $0x480] sm:$0xff]
        %v460 = vld [vmem:[#allocation5 + $0x488] sm:$0xff]
        %v461 = vld [vmem:[#allocation5 + $0x490] sm:$0xff]
        %v462 = vld [vmem:[#allocation5 + $0x498] sm:$0xff]
        %v463 = vld [vmem:[#allocation5 + $0x4a0] sm:$0xff]
        %v464 = vld [vmem:[#allocation5 + $0x4a8] sm:$0xff]
        %v465 = vld [vmem:[#allocation5 + $0x4b0] sm:$0xff]
        %v466 = vld [vmem:[#allocation5 + $0x4b8] sm:$0xff]
        %v467 = vld [vmem:[#allocation5 + $0x4c0] sm:$0xff]
        %v468 = vld [vmem:[#allocation5 + $0x4c8] sm:$0xff]
        %v469 = vld [vmem:[#allocation5 + $0x4d0] sm:$0xff]
        %v470 = vld [vmem:[#allocation5 + $0x4d8] sm:$0xff]
        %v471 = vld [vmem:[#allocation5 + $0x4e0] sm:$0xff]
        %v472 = vld [vmem:[#allocation5 + $0x4e8] sm:$0xff]
        %v473 = vld [vmem:[#allocation5 + $0x4f0] sm:$0xff]
        %v474 = vld [vmem:[#allocation5 + $0x4f8] sm:$0xff]
        %v475 = vld [vmem:[#allocation5 + $0x500] sm:$0xff]
        %v476 = vld [vmem:[#allocation5 + $0x508] sm:$0xff]
        %v477 = vld [vmem:[#allocation5 + $0x510] sm:$0xff]
        %v478 = vld [vmem:[#allocation5 + $0x518] sm:$0xff]
        %v479 = vld [vmem:[#allocation5 + $0x520] sm:$0xff]
        %v480 = vld [vmem:[#allocation5 + $0x528] sm:$0xff]
        %v481 = vld [vmem:[#allocation5 + $0x530] sm:$0xff]
        %v482 = vld [vmem:[#allocation5 + $0x538] sm:$0xff]
        %v483 = vld [vmem:[#allocation5 + $0x540] sm:$0xff]
        %v484 = vld [vmem:[#allocation5 + $0x548] sm:$0xff]
        %v485 = vld [vmem:[#allocation5 + $0x550] sm:$0xff]
        %v486 = vld [vmem:[#allocation5 + $0x558] sm:$0xff]
        %v487 = vld [vmem:[#allocation5 + $0x560] sm:$0xff]
        %v488 = vld [vmem:[#allocation5 + $0x568] sm:$0xff]
        %v489 = vld [vmem:[#allocation5 + $0x570] sm:$0xff]
        %v490 = vld [vmem:[#allocation5 + $0x578] sm:$0xff]
        %v491 = vld [vmem:[#allocation5 + $0x580] sm:$0xff]
        %v492 = vld [vmem:[#allocation5 + $0x588] sm:$0xff]
        %v493 = vld [vmem:[#allocation5 + $0x590] sm:$0xff]
        %v494 = vld [vmem:[#allocation5 + $0x598] sm:$0xff]
        %v495 = vld [vmem:[#allocation5 + $0x5a0] sm:$0xff]
        %v496 = vld [vmem:[#allocation5 + $0x5a8] sm:$0xff]
        %v497 = vld [vmem:[#allocation5 + $0x5b0] sm:$0xff]
        %v498 = vld [vmem:[#allocation5 + $0x5b8] sm:$0xff]
        %v499 = vld [vmem:[#allocation5 + $0x5c0] sm:$0xff]
        %v500 = vld [vmem:[#allocation5 + $0x5c8] sm:$0xff]
        %v501 = vld [vmem:[#allocation5 + $0x5d0] sm:$0xff]
        %v502 = vld [vmem:[#allocation5 + $0x5d8] sm:$0xff]
        %v503 = vld [vmem:[#allocation5 + $0x5e0] sm:$0xff]
        %v504 = vld [vmem:[#allocation5 + $0x5e8] sm:$0xff]
        %v505 = vld [vmem:[#allocation5 + $0x5f0] sm:$0xff]
        %v506 = vld [vmem:[#allocation5 + $0x5f8] sm:$0xff]
        %v507 = vld [vmem:[#allocation5 + $0x600] sm:$0xff]
        %v508 = vld [vmem:[#allocation5 + $0x608] sm:$0xff]
        %v509 = vld [vmem:[#allocation5 + $0x610] sm:$0xff]
        %v510 = vld [vmem:[#allocation5 + $0x618] sm:$0xff]
        %v511 = vld [vmem:[#allocation5 + $0x620] sm:$0xff]
        %v512 = vld [vmem:[#allocation5 + $0x628] sm:$0xff]
        %v513 = vld [vmem:[#allocation5 + $0x630] sm:$0xff]
        %v514 = vld [vmem:[#allocation5 + $0x638] sm:$0xff]
        %v515 = vld [vmem:[#allocation5 + $0x640] sm:$0xff]
        %v516 = vld [vmem:[#allocation5 + $0x648] sm:$0xff]
        %v517 = vld [vmem:[#allocation5 + $0x650] sm:$0xff]
        %v518 = vld [vmem:[#allocation5 + $0x658] sm:$0xff]
        %v519 = vld [vmem:[#allocation5 + $0x660] sm:$0xff]
        %v520 = vld [vmem:[#allocation5 + $0x668] sm:$0xff]
        %v521 = vld [vmem:[#allocation5 + $0x670] sm:$0xff]
        %v522 = vld [vmem:[#allocation5 + $0x678] sm:$0xff]
        %v523 = vld [vmem:[#allocation5 + $0x680] sm:$0xff]
        %v524 = vld [vmem:[#allocation5 + $0x688] sm:$0xff]
        %v525 = vld [vmem:[#allocation5 + $0x690] sm:$0xff]
        %v526 = vld [vmem:[#allocation5 + $0x698] sm:$0xff]
        %v527 = vld [vmem:[#allocation5 + $0x6a0] sm:$0xff]
        %v528 = vld [vmem:[#allocation5 + $0x6a8] sm:$0xff]
        %v529 = vld [vmem:[#allocation5 + $0x6b0] sm:$0xff]
        %v530 = vld [vmem:[#allocation5 + $0x6b8] sm:$0xff]
        %v531 = vld [vmem:[#allocation5 + $0x6c0] sm:$0xff]
        %v532 = vld [vmem:[#allocation5 + $0x6c8] sm:$0xff]
        %v533 = vld [vmem:[#allocation5 + $0x6d0] sm:$0xff]
        %v534 = vld [vmem:[#allocation5 + $0x6d8] sm:$0xff]
        %v535 = vld [vmem:[#allocation5 + $0x6e0] sm:$0xff]
        %v536 = vld [vmem:[#allocation5 + $0x6e8] sm:$0xff]
        %v537 = vld [vmem:[#allocation5 + $0x6f0] sm:$0xff]
        %v538 = vld [vmem:[#allocation5 + $0x6f8] sm:$0xff]
        %v539 = vld [vmem:[#allocation5 + $0x700] sm:$0xff]
        %v540 = vld [vmem:[#allocation5 + $0x708] sm:$0xff]
        %v541 = vld [vmem:[#allocation5 + $0x710] sm:$0xff]
        %v542 = vld [vmem:[#allocation5 + $0x718] sm:$0xff]
        %v543 = vld [vmem:[#allocation5 + $0x720] sm:$0xff]
        %v544 = vld [vmem:[#allocation5 + $0x728] sm:$0xff]
        %v545 = vld [vmem:[#allocation5 + $0x730] sm:$0xff]
        %v546 = vld [vmem:[#allocation5 + $0x738] sm:$0xff]
        %v547 = vld [vmem:[#allocation5 + $0x740] sm:$0xff]
        %v548 = vld [vmem:[#allocation5 + $0x748] sm:$0xff]
        %v549 = vld [vmem:[#allocation5 + $0x750] sm:$0xff]
        %v550 = vld [vmem:[#allocation5 + $0x758] sm:$0xff]
        %v551 = vld [vmem:[#allocation5 + $0x760] sm:$0xff]
        %v552 = vld [vmem:[#allocation5 + $0x768] sm:$0xff]
        %v553 = vld [vmem:[#allocation5 + $0x770] sm:$0xff]
        %v554 = vld [vmem:[#allocation5 + $0x778] sm:$0xff]
        %v555 = vld [vmem:[#allocation5 + $0x780] sm:$0xff]
        %v556 = vld [vmem:[#allocation5 + $0x788] sm:$0xff]
        %v557 = vld [vmem:[#allocation5 + $0x790] sm:$0xff]
        %v558 = vld [vmem:[#allocation5 + $0x798] sm:$0xff]
        %v559 = vld [vmem:[#allocation5 + $0x7a0] sm:$0xff]
        %v560 = vld [vmem:[#allocation5 + $0x7a8] sm:$0xff]
        %v561 = vld [vmem:[#allocation5 + $0x7b0] sm:$0xff]
        %v562 = vld [vmem:[#allocation5 + $0x7b8] sm:$0xff]
        %v563 = vld [vmem:[#allocation5 + $0x7c0] sm:$0xff]
        %v564 = vld [vmem:[#allocation5 + $0x7c8] sm:$0xff]
        %v565 = vld [vmem:[#allocation5 + $0x7d0] sm:$0xff]
        %v566 = vld [vmem:[#allocation5 + $0x7d8] sm:$0xff]
        %v567 = vld [vmem:[#allocation5 + $0x7e0] sm:$0xff]
        %v568 = vld [vmem:[#allocation5 + $0x7e8] sm:$0xff]
        %v569 = vld [vmem:[#allocation5 + $0x7f0] sm:$0xff]
        %v570 = vld [vmem:[#allocation5 + $0x7f8] sm:$0xff]
        %v571 = vld [vmem:[#allocation5 + $0x800] sm:$0xff]
        %v572 = vld [vmem:[#allocation5 + $0x808] sm:$0xff]
        %v573 = vld [vmem:[#allocation5 + $0x810] sm:$0xff]
        %v574 = vld [vmem:[#allocation5 + $0x818] sm:$0xff]
        %v575 = vld [vmem:[#allocation5 + $0x820] sm:$0xff]
        %v576 = vld [vmem:[#allocation5 + $0x828] sm:$0xff]
        %v577 = vld [vmem:[#allocation5 + $0x830] sm:$0xff]
        %v578 = vld [vmem:[#allocation5 + $0x838] sm:$0xff]
        %v579 = vld [vmem:[#allocation5 + $0x840] sm:$0xff]
        %v580 = vld [vmem:[#allocation5 + $0x848] sm:$0xff]
        %v581 = vld [vmem:[#allocation5 + $0x850] sm:$0xff]
        %v582 = vld [vmem:[#allocation5 + $0x858] sm:$0xff]
        %v583 = vld [vmem:[#allocation5 + $0x860] sm:$0xff]
        %v584 = vld [vmem:[#allocation5 + $0x868] sm:$0xff]
        %v585 = vld [vmem:[#allocation5 + $0x870] sm:$0xff]
        %v586 = vld [vmem:[#allocation5 + $0x878] sm:$0xff]
        %v587 = vld [vmem:[#allocation5 + $0x880] sm:$0xff]
        %v588 = vld [vmem:[#allocation5 + $0x888] sm:$0xff]
        %v589 = vld [vmem:[#allocation5 + $0x890] sm:$0xff]
        %v590 = vld [vmem:[#allocation5 + $0x898] sm:$0xff]
        %v591 = vld [vmem:[#allocation5 + $0x8a0] sm:$0xff]
        %v592 = vld [vmem:[#allocation5 + $0x8a8] sm:$0xff]
        %v593 = vld [vmem:[#allocation5 + $0x8b0] sm:$0xff]
        %v594 = vld [vmem:[#allocation5 + $0x8b8] sm:$0xff]
        %v595 = vld [vmem:[#allocation5 + $0x8c0] sm:$0xff]
        %v596 = vld [vmem:[#allocation5 + $0x8c8] sm:$0xff]
        %v597 = vld [vmem:[#allocation5 + $0x8d0] sm:$0xff]
        %v598 = vld [vmem:[#allocation5 + $0x8d8] sm:$0xff]
        %v599 = vld [vmem:[#allocation5 + $0x8e0] sm:$0xff]
        %v600 = vld [vmem:[#allocation5 + $0x8e8] sm:$0xff]
        %v601 = vld [vmem:[#allocation5 + $0x8f0] sm:$0xff]
        %v602 = vld [vmem:[#allocation5 + $0x8f8] sm:$0xff]
        %v603 = vld [vmem:[#allocation5 + $0x900] sm:$0xff]
        %v604 = vld [vmem:[#allocation5 + $0x908] sm:$0xff]
        %v605 = vld [vmem:[#allocation5 + $0x910] sm:$0xff]
        %v606 = vld [vmem:[#allocation5 + $0x918] sm:$0xff]
        %v607 = vld [vmem:[#allocation5 + $0x920] sm:$0xff]
        %v608 = vld [vmem:[#allocation5 + $0x928] sm:$0xff]
        %v609 = vld [vmem:[#allocation5 + $0x930] sm:$0xff]
        %v610 = vld [vmem:[#allocation5 + $0x938] sm:$0xff]
        %v611 = vld [vmem:[#allocation5 + $0x940] sm:$0xff]
        %v612 = vld [vmem:[#allocation5 + $0x948] sm:$0xff]
        %v613 = vld [vmem:[#allocation5 + $0x950] sm:$0xff]
        %v614 = vld [vmem:[#allocation5 + $0x958] sm:$0xff]
        %v615 = vld [vmem:[#allocation5 + $0x960] sm:$0xff]
        %v616 = vld [vmem:[#allocation5 + $0x968] sm:$0xff]
        %v617 = vld [vmem:[#allocation5 + $0x970] sm:$0xff]
        %v618 = vld [vmem:[#allocation5 + $0x978] sm:$0xff]
        %v619 = vld [vmem:[#allocation5 + $0x980] sm:$0xff]
        %v620 = vld [vmem:[#allocation5 + $0x988] sm:$0xff]
        %v621 = vld [vmem:[#allocation5 + $0x990] sm:$0xff]
        %v622 = vld [vmem:[#allocation5 + $0x998] sm:$0xff]
        %v623 = vld [vmem:[#allocation5 + $0x9a0] sm:$0xff]
        %v624 = vld [vmem:[#allocation5 + $0x9a8] sm:$0xff]
        %v625 = vld [vmem:[#allocation5 + $0x9b0] sm:$0xff]
        %v626 = vld [vmem:[#allocation5 + $0x9b8] sm:$0xff]
        %v627 = vld [vmem:[#allocation5 + $0x9c0] sm:$0xff]
        %v628 = vld [vmem:[#allocation5 + $0x9c8] sm:$0xff]
        %v629 = vld [vmem:[#allocation5 + $0x9d0] sm:$0xff]
        %v630 = vld [vmem:[#allocation5 + $0x9d8] sm:$0xff]
        %v631 = vld [vmem:[#allocation5 + $0x9e0] sm:$0xff]
        %v632 = vld [vmem:[#allocation5 + $0x9e8] sm:$0xff]
        %v633 = vld [vmem:[#allocation5 + $0x9f0] sm:$0xff]
        %v634 = vld [vmem:[#allocation5 + $0x9f8] sm:$0xff]
        %v635 = vld [vmem:[#allocation5 + $0xa00] sm:$0xff]
        %v636 = vld [vmem:[#allocation5 + $0xa08] sm:$0xff]
        %v637 = vld [vmem:[#allocation5 + $0xa10] sm:$0xff]
        %v638 = vld [vmem:[#allocation5 + $0xa18] sm:$0xff]
        %v639 = vld [vmem:[#allocation5 + $0xa20] sm:$0xff]
        %v640 = vld [vmem:[#allocation5 + $0xa28] sm:$0xff]
        %v641 = vld [vmem:[#allocation5 + $0xa30] sm:$0xff]
        %v642 = vld [vmem:[#allocation5 + $0xa38] sm:$0xff]
        %v643 = vld [vmem:[#allocation5 + $0xa40] sm:$0xff]
        %v644 = vld [vmem:[#allocation5 + $0xa48] sm:$0xff]
        %v645 = vld [vmem:[#allocation5 + $0xa50] sm:$0xff]
        %v646 = vld [vmem:[#allocation5 + $0xa58] sm:$0xff]
        %v647 = vld [vmem:[#allocation5 + $0xa60] sm:$0xff]
        %v648 = vld [vmem:[#allocation5 + $0xa68] sm:$0xff]
        %v649 = vld [vmem:[#allocation5 + $0xa70] sm:$0xff]
        %v650 = vld [vmem:[#allocation5 + $0xa78] sm:$0xff]
        %v651 = vld [vmem:[#allocation5 + $0xa80] sm:$0xff]
        %v652 = vld [vmem:[#allocation5 + $0xa88] sm:$0xff]
        %v653 = vld [vmem:[#allocation5 + $0xa90] sm:$0xff]
        %v654 = vld [vmem:[#allocation5 + $0xa98] sm:$0xff]
        %v655 = vld [vmem:[#allocation5 + $0xaa0] sm:$0xff]
        %v656 = vld [vmem:[#allocation5 + $0xaa8] sm:$0xff]
        %v657 = vld [vmem:[#allocation5 + $0xab0] sm:$0xff]
        %v658 = vld [vmem:[#allocation5 + $0xab8] sm:$0xff]
        %v659 = vld [vmem:[#allocation5 + $0xac0] sm:$0xff]
        %v660 = vld [vmem:[#allocation5 + $0xac8] sm:$0xff]
        %v661 = vld [vmem:[#allocation5 + $0xad0] sm:$0xff]
        %v662 = vld [vmem:[#allocation5 + $0xad8] sm:$0xff]
        %v663 = vld [vmem:[#allocation5 + $0xae0] sm:$0xff]
        %v664 = vld [vmem:[#allocation5 + $0xae8] sm:$0xff]
        %v665 = vld [vmem:[#allocation5 + $0xaf0] sm:$0xff]
        %v666 = vld [vmem:[#allocation5 + $0xaf8] sm:$0xff]
        %v667 = vld [vmem:[#allocation5 + $0xb00] sm:$0xff]
        %v668 = vld [vmem:[#allocation5 + $0xb08] sm:$0xff]
        %v669 = vld [vmem:[#allocation5 + $0xb10] sm:$0xff]
        %v670 = vld [vmem:[#allocation5 + $0xb18] sm:$0xff]
        %v671 = vld [vmem:[#allocation5 + $0xb20] sm:$0xff]
        %v672 = vld [vmem:[#allocation5 + $0xb28] sm:$0xff]
        %v673 = vld [vmem:[#allocation5 + $0xb30] sm:$0xff]
        %v674 = vld [vmem:[#allocation5 + $0xb38] sm:$0xff]
        %v675 = vld [vmem:[#allocation5 + $0xb40] sm:$0xff]
        %v676 = vld [vmem:[#allocation5 + $0xb48] sm:$0xff]
        %v677 = vld [vmem:[#allocation5 + $0xb50] sm:$0xff]
        %v678 = vld [vmem:[#allocation5 + $0xb58] sm:$0xff]
        %v679 = vld [vmem:[#allocation5 + $0xb60] sm:$0xff]
        %v680 = vld [vmem:[#allocation5 + $0xb68] sm:$0xff]
        %v681 = vld [vmem:[#allocation5 + $0xb70] sm:$0xff]
        %v682 = vld [vmem:[#allocation5 + $0xb78] sm:$0xff]
        %v683 = vld [vmem:[#allocation5 + $0xb80] sm:$0xff]
        %v684 = vld [vmem:[#allocation5 + $0xb88] sm:$0xff]
        %v685 = vld [vmem:[#allocation5 + $0xb90] sm:$0xff]
        %v686 = vld [vmem:[#allocation5 + $0xb98] sm:$0xff]
        %v687 = vld [vmem:[#allocation5 + $0xba0] sm:$0xff]
        %v688 = vld [vmem:[#allocation5 + $0xba8] sm:$0xff]
        %v689 = vld [vmem:[#allocation5 + $0xbb0] sm:$0xff]
        %v690 = vld [vmem:[#allocation5 + $0xbb8] sm:$0xff]
        %v691 = vld [vmem:[#allocation5 + $0xbc0] sm:$0xff]
        %v692 = vld [vmem:[#allocation5 + $0xbc8] sm:$0xff]
        %v693 = vld [vmem:[#allocation5 + $0xbd0] sm:$0xff]
        %v694 = vld [vmem:[#allocation5 + $0xbd8] sm:$0xff]
        %v695 = vld [vmem:[#allocation5 + $0xbe0] sm:$0xff]
        %v696 = vld [vmem:[#allocation5 + $0xbe8] sm:$0xff]
        %v697 = vld [vmem:[#allocation5 + $0xbf0] sm:$0xff]
        %v698 = vld [vmem:[#allocation5 + $0xbf8] sm:$0xff]
        %v699 = vld [vmem:[#allocation5 + $0xc00] sm:$0xff]
        %v700 = vld [vmem:[#allocation5 + $0xc08] sm:$0xff]
        %v701 = vld [vmem:[#allocation5 + $0xc10] sm:$0xff]
        %v702 = vld [vmem:[#allocation5 + $0xc18] sm:$0xff]
        %v703 = vld [vmem:[#allocation5 + $0xc20] sm:$0xff]
        %v704 = vld [vmem:[#allocation5 + $0xc28] sm:$0xff]
        %v705 = vld [vmem:[#allocation5 + $0xc30] sm:$0xff]
        %v706 = vld [vmem:[#allocation5 + $0xc38] sm:$0xff]
        %v707 = vld [vmem:[#allocation5 + $0xc40] sm:$0xff]
        %v708 = vld [vmem:[#allocation5 + $0xc48] sm:$0xff]
        %v709 = vld [vmem:[#allocation5 + $0xc50] sm:$0xff]
        %v710 = vld [vmem:[#allocation5 + $0xc58] sm:$0xff]
        %v711 = vld [vmem:[#allocation5 + $0xc60] sm:$0xff]
        %v712 = vld [vmem:[#allocation5 + $0xc68] sm:$0xff]
        %v713 = vld [vmem:[#allocation5 + $0xc70] sm:$0xff]
        %v714 = vld [vmem:[#allocation5 + $0xc78] sm:$0xff]
        %v715 = vld [vmem:[#allocation5 + $0xc80] sm:$0xff]
        %v716 = vld [vmem:[#allocation5 + $0xc88] sm:$0xff]
        %v717 = vld [vmem:[#allocation5 + $0xc90] sm:$0xff]
        %v718 = vld [vmem:[#allocation5 + $0xc98] sm:$0xff]
        %v719 = vld [vmem:[#allocation5 + $0xca0] sm:$0xff]
        %v720 = vld [vmem:[#allocation5 + $0xca8] sm:$0xff]
        %v721 = vld [vmem:[#allocation5 + $0xcb0] sm:$0xff]
        %v722 = vld [vmem:[#allocation5 + $0xcb8] sm:$0xff]
        %v723 = vld [vmem:[#allocation5 + $0xcc0] sm:$0xff]
        %v724 = vld [vmem:[#allocation5 + $0xcc8] sm:$0xff]
        %v725 = vld [vmem:[#allocation5 + $0xcd0] sm:$0xff]
        %v726 = vld [vmem:[#allocation5 + $0xcd8] sm:$0xff]
        %v727 = vld [vmem:[#allocation5 + $0xce0] sm:$0xff]
        %v728 = vld [vmem:[#allocation5 + $0xce8] sm:$0xff]
        %v729 = vld [vmem:[#allocation5 + $0xcf0] sm:$0xff]
        %v730 = vld [vmem:[#allocation5 + $0xcf8] sm:$0xff]
        %v731 = vld [vmem:[#allocation5 + $0xd00] sm:$0xff]
        %v732 = vld [vmem:[#allocation5 + $0xd08] sm:$0xff]
        %v733 = vld [vmem:[#allocation5 + $0xd10] sm:$0xff]
        %v734 = vld [vmem:[#allocation5 + $0xd18] sm:$0xff]
        %v735 = vld [vmem:[#allocation5 + $0xd20] sm:$0xff]
        %v736 = vld [vmem:[#allocation5 + $0xd28] sm:$0xff]
        %v737 = vld [vmem:[#allocation5 + $0xd30] sm:$0xff]
        %v738 = vld [vmem:[#allocation5 + $0xd38] sm:$0xff]
        %v739 = vld [vmem:[#allocation5 + $0xd40] sm:$0xff]
        %v740 = vld [vmem:[#allocation5 + $0xd48] sm:$0xff]
        %v741 = vld [vmem:[#allocation5 + $0xd50] sm:$0xff]
        %v742 = vld [vmem:[#allocation5 + $0xd58] sm:$0xff]
        %v743 = vld [vmem:[#allocation5 + $0xd60] sm:$0xff]
        %v744 = vld [vmem:[#allocation5 + $0xd68] sm:$0xff]
        %v745 = vld [vmem:[#allocation5 + $0xd70] sm:$0xff]
        %v746 = vld [vmem:[#allocation5 + $0xd78] sm:$0xff]
        %v747 = vld [vmem:[#allocation5 + $0xd80] sm:$0xff]
        %v748 = vld [vmem:[#allocation5 + $0xd88] sm:$0xff]
        %v749 = vld [vmem:[#allocation5 + $0xd90] sm:$0xff]
        %v750 = vld [vmem:[#allocation5 + $0xd98] sm:$0xff]
        %v751 = vld [vmem:[#allocation5 + $0xda0] sm:$0xff]
        %v752 = vld [vmem:[#allocation5 + $0xda8] sm:$0xff]
        %v753 = vld [vmem:[#allocation5 + $0xdb0] sm:$0xff]
        %v754 = vld [vmem:[#allocation5 + $0xdb8] sm:$0xff]
        %v755 = vld [vmem:[#allocation5 + $0xdc0] sm:$0xff]
        %v756 = vld [vmem:[#allocation5 + $0xdc8] sm:$0xff]
        %v757 = vld [vmem:[#allocation5 + $0xdd0] sm:$0xff]
        %v758 = vld [vmem:[#allocation5 + $0xdd8] sm:$0xff]
        %v759 = vld [vmem:[#allocation5 + $0xde0] sm:$0xff]
        %v760 = vld [vmem:[#allocation5 + $0xde8] sm:$0xff]
        %v761 = vld [vmem:[#allocation5 + $0xdf0] sm:$0xff]
        %v762 = vld [vmem:[#allocation5 + $0xdf8] sm:$0xff]
        %v763 = vld [vmem:[#allocation5 + $0xe00] sm:$0xff]
        %v764 = vld [vmem:[#allocation5 + $0xe08] sm:$0xff]
        %v765 = vld [vmem:[#allocation5 + $0xe10] sm:$0xff]
        %v766 = vld [vmem:[#allocation5 + $0xe18] sm:$0xff]
        %v767 = vld [vmem:[#allocation5 + $0xe20] sm:$0xff]
        %v768 = vld [vmem:[#allocation5 + $0xe28] sm:$0xff]
        %v769 = vld [vmem:[#allocation5 + $0xe30] sm:$0xff]
        %v770 = vld [vmem:[#allocation5 + $0xe38] sm:$0xff]
        %v771 = vld [vmem:[#allocation5 + $0xe40] sm:$0xff]
        %v772 = vld [vmem:[#allocation5 + $0xe48] sm:$0xff]
        %v773 = vld [vmem:[#allocation5 + $0xe50] sm:$0xff]
        %v774 = vld [vmem:[#allocation5 + $0xe58] sm:$0xff]
        %v775 = vld [vmem:[#allocation5 + $0xe60] sm:$0xff]
        %v776 = vld [vmem:[#allocation5 + $0xe68] sm:$0xff]
        %v777 = vld [vmem:[#allocation5 + $0xe70] sm:$0xff]
        %v778 = vld [vmem:[#allocation5 + $0xe78] sm:$0xff]
        %v779 = vld [vmem:[#allocation5 + $0xe80] sm:$0xff]
        %v780 = vld [vmem:[#allocation5 + $0xe88] sm:$0xff]
        %v781 = vld [vmem:[#allocation5 + $0xe90] sm:$0xff]
        %v782 = vld [vmem:[#allocation5 + $0xe98] sm:$0xff]
        %v783 = vld [vmem:[#allocation5 + $0xea0] sm:$0xff]
        %v784 = vld [vmem:[#allocation5 + $0xea8] sm:$0xff]
        %v785 = vld [vmem:[#allocation5 + $0xeb0] sm:$0xff]
        %v786 = vld [vmem:[#allocation5 + $0xeb8] sm:$0xff]
        %v787 = vld [vmem:[#allocation5 + $0xec0] sm:$0xff]
        %v788 = vld [vmem:[#allocation5 + $0xec8] sm:$0xff]
        %v789 = vld [vmem:[#allocation5 + $0xed0] sm:$0xff]
        %v790 = vld [vmem:[#allocation5 + $0xed8] sm:$0xff]
        %v791 = vld [vmem:[#allocation5 + $0xee0] sm:$0xff]
        %v792 = vld [vmem:[#allocation5 + $0xee8] sm:$0xff]
        %v793 = vld [vmem:[#allocation5 + $0xef0] sm:$0xff]
        %v794 = vld [vmem:[#allocation5 + $0xef8] sm:$0xff]
        %v795 = vld [vmem:[#allocation5 + $0xf00] sm:$0xff]
        %v796 = vld [vmem:[#allocation5 + $0xf08] sm:$0xff]
        %v797 = vld [vmem:[#allocation5 + $0xf10] sm:$0xff]
        %v798 = vld [vmem:[#allocation5 + $0xf18] sm:$0xff]
        %v799 = vld [vmem:[#allocation5 + $0xf20] sm:$0xff]
        %v800 = vld [vmem:[#allocation5 + $0xf28] sm:$0xff]
        %v801 = vld [vmem:[#allocation5 + $0xf30] sm:$0xff]
        %v802 = vld [vmem:[#allocation5 + $0xf38] sm:$0xff]
        %v803 = vld [vmem:[#allocation5 + $0xf40] sm:$0xff]
        %v804 = vld [vmem:[#allocation5 + $0xf48] sm:$0xff]
        %v805 = vld [vmem:[#allocation5 + $0xf50] sm:$0xff]
        %v806 = vld [vmem:[#allocation5 + $0xf58] sm:$0xff]
        %v807 = vld [vmem:[#allocation5 + $0xf60] sm:$0xff]
        %v808 = vld [vmem:[#allocation5 + $0xf68] sm:$0xff]
        %v809 = vld [vmem:[#allocation5 + $0xf70] sm:$0xff]
        %v810 = vld [vmem:[#allocation5 + $0xf78] sm:$0xff]
        %v811 = vld [vmem:[#allocation5 + $0xf80] sm:$0xff]
        %v812 = vld [vmem:[#allocation5 + $0xf88] sm:$0xff]
        %v813 = vld [vmem:[#allocation5 + $0xf90] sm:$0xff]
        %v814 = vld [vmem:[#allocation5 + $0xf98] sm:$0xff]
        %v815 = vld [vmem:[#allocation5 + $0xfa0] sm:$0xff]
        %v816 = vld [vmem:[#allocation5 + $0xfa8] sm:$0xff]
        %v817 = vld [vmem:[#allocation5 + $0xfb0] sm:$0xff]
        %v818 = vld [vmem:[#allocation5 + $0xfb8] sm:$0xff]
        %v819 = vld [vmem:[#allocation5 + $0xfc0] sm:$0xff]
        %v820 = vld [vmem:[#allocation5 + $0xfc8] sm:$0xff]
        %v821 = vld [vmem:[#allocation5 + $0xfd0] sm:$0xff]
        %v822 = vld [vmem:[#allocation5 + $0xfd8] sm:$0xff]
        %v823 = vld [vmem:[#allocation5 + $0xfe0] sm:$0xff]
        %v824 = vld [vmem:[#allocation5 + $0xfe8] sm:$0xff]
        %v825 = vld [vmem:[#allocation5 + $0xff0] sm:$0xff]
        %v826 = vld [vmem:[#allocation5 + $0xff8] sm:$0xff]
        %v827 = vld [vmem:[#allocation7] sm:$0xf]
        %v829 = vperm.slane %v827, 0
        %v830 = vperm.slane %v827, 1
        %v831 = vperm.slane %v827, 2
        %v832 = vperm.slane %v827, 3
        %v901 = vunpack.c.l.b16 %v251
        %v902 = vunpack.c.h.b16 %v251
        %v903 = vunpack.c.l.b16 %v252
        %v904 = vunpack.c.h.b16 %v252
        %v905 = vunpack.c.l.b16 %v253
        %v906 = vunpack.c.h.b16 %v253
        %v907 = vunpack.c.l.b16 %v254
        %v908 = vunpack.c.h.b16 %v254
        %v909 = vunpack.c.l.b16 %v255
        %v910 = vunpack.c.h.b16 %v255
        %v911 = vunpack.c.l.b16 %v256
        %v912 = vunpack.c.h.b16 %v256
        %v913 = vunpack.c.l.b16 %v257
        %v914 = vunpack.c.h.b16 %v257
        %v915 = vunpack.c.l.b16 %v258
        %v916 = vunpack.c.h.b16 %v258
        %v917 = vunpack.c.l.b16 %v259
        %v918 = vunpack.c.h.b16 %v259
        %v919 = vunpack.c.l.b16 %v260
        %v920 = vunpack.c.h.b16 %v260
        %v921 = vunpack.c.l.b16 %v261
        %v922 = vunpack.c.h.b16 %v261
        %v923 = vunpack.c.l.b16 %v262
        %v924 = vunpack.c.h.b16 %v262
        %v925 = vunpack.c.l.b16 %v263
        %v926 = vunpack.c.h.b16 %v263
        %v927 = vunpack.c.l.b16 %v264
        %v928 = vunpack.c.h.b16 %v264
        %v929 = vunpack.c.l.b16 %v265
        %v930 = vunpack.c.h.b16 %v265
        %v931 = vunpack.c.l.b16 %v266
        %v932 = vunpack.c.h.b16 %v266
        %v933 = vunpack.c.l.b16 %v267
        %v934 = vunpack.c.h.b16 %v267
        %v935 = vunpack.c.l.b16 %v268
        %v936 = vunpack.c.h.b16 %v268
        %v937 = vunpack.c.l.b16 %v269
        %v938 = vunpack.c.h.b16 %v269
        %v939 = vunpack.c.l.b16 %v270
        %v940 = vunpack.c.h.b16 %v270
        %v941 = vunpack.c.l.b16 %v271
        %v942 = vunpack.c.h.b16 %v271
        %v943 = vunpack.c.l.b16 %v272
        %v944 = vunpack.c.h.b16 %v272
        %v945 = vunpack.c.l.b16 %v273
        %v946 = vunpack.c.h.b16 %v273
        %v947 = vunpack.c.l.b16 %v274
        %v948 = vunpack.c.h.b16 %v274
        %v949 = vunpack.c.l.b16 %v275
        %v950 = vunpack.c.h.b16 %v275
        %v951 = vunpack.c.l.b16 %v276
        %v952 = vunpack.c.h.b16 %v276
        %v953 = vunpack.c.l.b16 %v277
        %v954 = vunpack.c.h.b16 %v277
        %v955 = vunpack.c.l.b16 %v278
        %v956 = vunpack.c.h.b16 %v278
        %v957 = vunpack.c.l.b16 %v279
        %v958 = vunpack.c.h.b16 %v279
        %v959 = vunpack.c.l.b16 %v280
        %v960 = vunpack.c.h.b16 %v280
        %v961 = vunpack.c.l.b16 %v281
        %v962 = vunpack.c.h.b16 %v281
        %v963 = vunpack.c.l.b16 %v282
        %v964 = vunpack.c.h.b16 %v282
        %v965 = vunpack.c.l.b16 %v283
        %v966 = vunpack.c.h.b16 %v283
        %v967 = vunpack.c.l.b16 %v284
        %v968 = vunpack.c.h.b16 %v284
        %v969 = vunpack.c.l.b16 %v285
        %v970 = vunpack.c.h.b16 %v285
        %v971 = vunpack.c.l.b16 %v286
        %v972 = vunpack.c.h.b16 %v286
        %v973 = vunpack.c.l.b16 %v287
        %v974 = vunpack.c.h.b16 %v287
        %v975 = vunpack.c.l.b16 %v288
        %v976 = vunpack.c.h.b16 %v288
        %v977 = vunpack.c.l.b16 %v289
        %v978 = vunpack.c.h.b16 %v289
        %v979 = vunpack.c.l.b16 %v290
        %v980 = vunpack.c.h.b16 %v290
        %v981 = vunpack.c.l.b16 %v291
        %v982 = vunpack.c.h.b16 %v291
        %v983 = vunpack.c.l.b16 %v292
        %v984 = vunpack.c.h.b16 %v292
        %v985 = vunpack.c.l.b16 %v293
        %v986 = vunpack.c.h.b16 %v293
        %v987 = vunpack.c.l.b16 %v294
        %v988 = vunpack.c.h.b16 %v294
        %v989 = vunpack.c.l.b16 %v295
        %v990 = vunpack.c.h.b16 %v295
        %v991 = vunpack.c.l.b16 %v296
        %v992 = vunpack.c.h.b16 %v296
        %v993 = vunpack.c.l.b16 %v297
        %v994 = vunpack.c.h.b16 %v297
        %v995 = vunpack.c.l.b16 %v298
        %v996 = vunpack.c.h.b16 %v298
        %v997 = vunpack.c.l.b16 %v299
        %v998 = vunpack.c.h.b16 %v299
        %v999 = vunpack.c.l.b16 %v300
        %v1000 = vunpack.c.h.b16 %v300
        %v1001 = vunpack.c.l.b16 %v301
        %v1002 = vunpack.c.h.b16 %v301
        %v1003 = vunpack.c.l.b16 %v302
        %v1004 = vunpack.c.h.b16 %v302
        %v1005 = vunpack.c.l.b16 %v303
        %v1006 = vunpack.c.h.b16 %v303
        %v1007 = vunpack.c.l.b16 %v304
        %v1008 = vunpack.c.h.b16 %v304
        %v1009 = vunpack.c.l.b16 %v305
        %v1010 = vunpack.c.h.b16 %v305
        %v1011 = vunpack.c.l.b16 %v306
        %v1012 = vunpack.c.h.b16 %v306
        %v1013 = vunpack.c.l.b16 %v307
        %v1014 = vunpack.c.h.b16 %v307
        %v1015 = vunpack.c.l.b16 %v308
        %v1016 = vunpack.c.h.b16 %v308
        %v1017 = vunpack.c.l.b16 %v309
        %v1018 = vunpack.c.h.b16 %v309
        %v1019 = vunpack.c.l.b16 %v310
        %v1020 = vunpack.c.h.b16 %v310
        %v1021 = vunpack.c.l.b16 %v311
        %v1022 = vunpack.c.h.b16 %v311
        %v1023 = vunpack.c.l.b16 %v312
        %v1024 = vunpack.c.h.b16 %v312
        %v1025 = vunpack.c.l.b16 %v313
        %v1026 = vunpack.c.h.b16 %v313
        %v1027 = vunpack.c.l.b16 %v314
        %v1028 = vunpack.c.h.b16 %v314
        %v1029 = vpack.c.b16 %v917, %v901
        %v1030 = vpack.c.b16 %v918, %v902
        %v1031 = vpack.c.b16 %v919, %v903
        %v1032 = vpack.c.b16 %v920, %v904
        %v1033 = vpack.c.b16 %v921, %v905
        %v1034 = vpack.c.b16 %v922, %v906
        %v1035 = vpack.c.b16 %v923, %v907
        %v1036 = vpack.c.b16 %v924, %v908
        %v1037 = vpack.c.b16 %v925, %v909
        %v1038 = vpack.c.b16 %v926, %v910
        %v1039 = vpack.c.b16 %v927, %v911
        %v1040 = vpack.c.b16 %v928, %v912
        %v1041 = vpack.c.b16 %v929, %v913
        %v1042 = vpack.c.b16 %v930, %v914
        %v1043 = vpack.c.b16 %v931, %v915
        %v1044 = vpack.c.b16 %v932, %v916
        %v1045 = vpack.c.b16 %v949, %v933
        %v1046 = vpack.c.b16 %v950, %v934
        %v1047 = vpack.c.b16 %v951, %v935
        %v1048 = vpack.c.b16 %v952, %v936
        %v1049 = vpack.c.b16 %v953, %v937
        %v1050 = vpack.c.b16 %v954, %v938
        %v1051 = vpack.c.b16 %v955, %v939
        %v1052 = vpack.c.b16 %v956, %v940
        %v1053 = vpack.c.b16 %v957, %v941
        %v1054 = vpack.c.b16 %v958, %v942
        %v1055 = vpack.c.b16 %v959, %v943
        %v1056 = vpack.c.b16 %v960, %v944
        %v1057 = vpack.c.b16 %v961, %v945
        %v1058 = vpack.c.b16 %v962, %v946
        %v1059 = vpack.c.b16 %v963, %v947
        %v1060 = vpack.c.b16 %v964, %v948
        %v1061 = vpack.c.b16 %v981, %v965
        %v1062 = vpack.c.b16 %v982, %v966
        %v1063 = vpack.c.b16 %v983, %v967
        %v1064 = vpack.c.b16 %v984, %v968
        %v1065 = vpack.c.b16 %v985, %v969
        %v1066 = vpack.c.b16 %v986, %v970
        %v1067 = vpack.c.b16 %v987, %v971
        %v1068 = vpack.c.b16 %v988, %v972
        %v1069 = vpack.c.b16 %v989, %v973
        %v1070 = vpack.c.b16 %v990, %v974
        %v1071 = vpack.c.b16 %v991, %v975
        %v1072 = vpack.c.b16 %v992, %v976
        %v1073 = vpack.c.b16 %v993, %v977
        %v1074 = vpack.c.b16 %v994, %v978
        %v1075 = vpack.c.b16 %v995, %v979
        %v1076 = vpack.c.b16 %v996, %v980
        %v1077 = vpack.c.b16 %v1013, %v997
        %v1078 = vpack.c.b16 %v1014, %v998
        %v1079 = vpack.c.b16 %v1015, %v999
        %v1080 = vpack.c.b16 %v1016, %v1000
        %v1081 = vpack.c.b16 %v1017, %v1001
        %v1082 = vpack.c.b16 %v1018, %v1002
        %v1083 = vpack.c.b16 %v1019, %v1003
        %v1084 = vpack.c.b16 %v1020, %v1004
        %v1085 = vpack.c.b16 %v1021, %v1005
        %v1086 = vpack.c.b16 %v1022, %v1006
        %v1087 = vpack.c.b16 %v1023, %v1007
        %v1088 = vpack.c.b16 %v1024, %v1008
        %v1089 = vpack.c.b16 %v1025, %v1009
        %v1090 = vpack.c.b16 %v1026, %v1010
        %v1091 = vpack.c.b16 %v1027, %v1011
        %v1092 = vpack.c.b16 %v1028, %v1012
        %v1669 = vunpack.c.l.b16 %v315
        %v1670 = vunpack.c.h.b16 %v315
        %v1671 = vunpack.c.l.b16 %v316
        %v1672 = vunpack.c.h.b16 %v316
        %v1673 = vunpack.c.l.b16 %v317
        %v1674 = vunpack.c.h.b16 %v317
        %v1675 = vunpack.c.l.b16 %v318
        %v1676 = vunpack.c.h.b16 %v318
        %v1677 = vunpack.c.l.b16 %v319
        %v1678 = vunpack.c.h.b16 %v319
        %v1679 = vunpack.c.l.b16 %v320
        %v1680 = vunpack.c.h.b16 %v320
        %v1681 = vunpack.c.l.b16 %v321
        %v1682 = vunpack.c.h.b16 %v321
        %v1683 = vunpack.c.l.b16 %v322
        %v1684 = vunpack.c.h.b16 %v322
        %v1685 = vunpack.c.l.b16 %v323
        %v1686 = vunpack.c.h.b16 %v323
        %v1687 = vunpack.c.l.b16 %v324
        %v1688 = vunpack.c.h.b16 %v324
        %v1689 = vunpack.c.l.b16 %v325
        %v1690 = vunpack.c.h.b16 %v325
        %v1691 = vunpack.c.l.b16 %v326
        %v1692 = vunpack.c.h.b16 %v326
        %v1693 = vunpack.c.l.b16 %v327
        %v1694 = vunpack.c.h.b16 %v327
        %v1695 = vunpack.c.l.b16 %v328
        %v1696 = vunpack.c.h.b16 %v328
        %v1697 = vunpack.c.l.b16 %v329
        %v1698 = vunpack.c.h.b16 %v329
        %v1699 = vunpack.c.l.b16 %v330
        %v1700 = vunpack.c.h.b16 %v330
        %v1701 = vunpack.c.l.b16 %v331
        %v1702 = vunpack.c.h.b16 %v331
        %v1703 = vunpack.c.l.b16 %v332
        %v1704 = vunpack.c.h.b16 %v332
        %v1705 = vunpack.c.l.b16 %v333
        %v1706 = vunpack.c.h.b16 %v333
        %v1707 = vunpack.c.l.b16 %v334
        %v1708 = vunpack.c.h.b16 %v334
        %v1709 = vunpack.c.l.b16 %v335
        %v1710 = vunpack.c.h.b16 %v335
        %v1711 = vunpack.c.l.b16 %v336
        %v1712 = vunpack.c.h.b16 %v336
        %v1713 = vunpack.c.l.b16 %v337
        %v1714 = vunpack.c.h.b16 %v337
        %v1715 = vunpack.c.l.b16 %v338
        %v1716 = vunpack.c.h.b16 %v338
        %v1717 = vunpack.c.l.b16 %v339
        %v1718 = vunpack.c.h.b16 %v339
        %v1719 = vunpack.c.l.b16 %v340
        %v1720 = vunpack.c.h.b16 %v340
        %v1721 = vunpack.c.l.b16 %v341
        %v1722 = vunpack.c.h.b16 %v341
        %v1723 = vunpack.c.l.b16 %v342
        %v1724 = vunpack.c.h.b16 %v342
        %v1725 = vunpack.c.l.b16 %v343
        %v1726 = vunpack.c.h.b16 %v343
        %v1727 = vunpack.c.l.b16 %v344
        %v1728 = vunpack.c.h.b16 %v344
        %v1729 = vunpack.c.l.b16 %v345
        %v1730 = vunpack.c.h.b16 %v345
        %v1731 = vunpack.c.l.b16 %v346
        %v1732 = vunpack.c.h.b16 %v346
        %v1733 = vunpack.c.l.b16 %v347
        %v1734 = vunpack.c.h.b16 %v347
        %v1735 = vunpack.c.l.b16 %v348
        %v1736 = vunpack.c.h.b16 %v348
        %v1737 = vunpack.c.l.b16 %v349
        %v1738 = vunpack.c.h.b16 %v349
        %v1739 = vunpack.c.l.b16 %v350
        %v1740 = vunpack.c.h.b16 %v350
        %v1741 = vunpack.c.l.b16 %v351
        %v1742 = vunpack.c.h.b16 %v351
        %v1743 = vunpack.c.l.b16 %v352
        %v1744 = vunpack.c.h.b16 %v352
        %v1745 = vunpack.c.l.b16 %v353
        %v1746 = vunpack.c.h.b16 %v353
        %v1747 = vunpack.c.l.b16 %v354
        %v1748 = vunpack.c.h.b16 %v354
        %v1749 = vunpack.c.l.b16 %v355
        %v1750 = vunpack.c.h.b16 %v355
        %v1751 = vunpack.c.l.b16 %v356
        %v1752 = vunpack.c.h.b16 %v356
        %v1753 = vunpack.c.l.b16 %v357
        %v1754 = vunpack.c.h.b16 %v357
        %v1755 = vunpack.c.l.b16 %v358
        %v1756 = vunpack.c.h.b16 %v358
        %v1757 = vunpack.c.l.b16 %v359
        %v1758 = vunpack.c.h.b16 %v359
        %v1759 = vunpack.c.l.b16 %v360
        %v1760 = vunpack.c.h.b16 %v360
        %v1761 = vunpack.c.l.b16 %v361
        %v1762 = vunpack.c.h.b16 %v361
        %v1763 = vunpack.c.l.b16 %v362
        %v1764 = vunpack.c.h.b16 %v362
        %v1765 = vunpack.c.l.b16 %v363
        %v1766 = vunpack.c.h.b16 %v363
        %v1767 = vunpack.c.l.b16 %v364
        %v1768 = vunpack.c.h.b16 %v364
        %v1769 = vunpack.c.l.b16 %v365
        %v1770 = vunpack.c.h.b16 %v365
        %v1771 = vunpack.c.l.b16 %v366
        %v1772 = vunpack.c.h.b16 %v366
        %v1773 = vunpack.c.l.b16 %v367
        %v1774 = vunpack.c.h.b16 %v367
        %v1775 = vunpack.c.l.b16 %v368
        %v1776 = vunpack.c.h.b16 %v368
        %v1777 = vunpack.c.l.b16 %v369
        %v1778 = vunpack.c.h.b16 %v369
        %v1779 = vunpack.c.l.b16 %v370
        %v1780 = vunpack.c.h.b16 %v370
        %v1781 = vunpack.c.l.b16 %v371
        %v1782 = vunpack.c.h.b16 %v371
        %v1783 = vunpack.c.l.b16 %v372
        %v1784 = vunpack.c.h.b16 %v372
        %v1785 = vunpack.c.l.b16 %v373
        %v1786 = vunpack.c.h.b16 %v373
        %v1787 = vunpack.c.l.b16 %v374
        %v1788 = vunpack.c.h.b16 %v374
        %v1789 = vunpack.c.l.b16 %v375
        %v1790 = vunpack.c.h.b16 %v375
        %v1791 = vunpack.c.l.b16 %v376
        %v1792 = vunpack.c.h.b16 %v376
        %v1793 = vunpack.c.l.b16 %v377
        %v1794 = vunpack.c.h.b16 %v377
        %v1795 = vunpack.c.l.b16 %v378
        %v1796 = vunpack.c.h.b16 %v378
        %v1797 = vunpack.c.l.b16 %v379
        %v1798 = vunpack.c.h.b16 %v379
        %v1799 = vunpack.c.l.b16 %v380
        %v1800 = vunpack.c.h.b16 %v380
        %v1801 = vunpack.c.l.b16 %v381
        %v1802 = vunpack.c.h.b16 %v381
        %v1803 = vunpack.c.l.b16 %v382
        %v1804 = vunpack.c.h.b16 %v382
        %v1805 = vunpack.c.l.b16 %v383
        %v1806 = vunpack.c.h.b16 %v383
        %v1807 = vunpack.c.l.b16 %v384
        %v1808 = vunpack.c.h.b16 %v384
        %v1809 = vunpack.c.l.b16 %v385
        %v1810 = vunpack.c.h.b16 %v385
        %v1811 = vunpack.c.l.b16 %v386
        %v1812 = vunpack.c.h.b16 %v386
        %v1813 = vunpack.c.l.b16 %v387
        %v1814 = vunpack.c.h.b16 %v387
        %v1815 = vunpack.c.l.b16 %v388
        %v1816 = vunpack.c.h.b16 %v388
        %v1817 = vunpack.c.l.b16 %v389
        %v1818 = vunpack.c.h.b16 %v389
        %v1819 = vunpack.c.l.b16 %v390
        %v1820 = vunpack.c.h.b16 %v390
        %v1821 = vunpack.c.l.b16 %v391
        %v1822 = vunpack.c.h.b16 %v391
        %v1823 = vunpack.c.l.b16 %v392
        %v1824 = vunpack.c.h.b16 %v392
        %v1825 = vunpack.c.l.b16 %v393
        %v1826 = vunpack.c.h.b16 %v393
        %v1827 = vunpack.c.l.b16 %v394
        %v1828 = vunpack.c.h.b16 %v394
        %v1829 = vunpack.c.l.b16 %v395
        %v1830 = vunpack.c.h.b16 %v395
        %v1831 = vunpack.c.l.b16 %v396
        %v1832 = vunpack.c.h.b16 %v396
        %v1833 = vunpack.c.l.b16 %v397
        %v1834 = vunpack.c.h.b16 %v397
        %v1835 = vunpack.c.l.b16 %v398
        %v1836 = vunpack.c.h.b16 %v398
        %v1837 = vunpack.c.l.b16 %v399
        %v1838 = vunpack.c.h.b16 %v399
        %v1839 = vunpack.c.l.b16 %v400
        %v1840 = vunpack.c.h.b16 %v400
        %v1841 = vunpack.c.l.b16 %v401
        %v1842 = vunpack.c.h.b16 %v401
        %v1843 = vunpack.c.l.b16 %v402
        %v1844 = vunpack.c.h.b16 %v402
        %v1845 = vunpack.c.l.b16 %v403
        %v1846 = vunpack.c.h.b16 %v403
        %v1847 = vunpack.c.l.b16 %v404
        %v1848 = vunpack.c.h.b16 %v404
        %v1849 = vunpack.c.l.b16 %v405
        %v1850 = vunpack.c.h.b16 %v405
        %v1851 = vunpack.c.l.b16 %v406
        %v1852 = vunpack.c.h.b16 %v406
        %v1853 = vunpack.c.l.b16 %v407
        %v1854 = vunpack.c.h.b16 %v407
        %v1855 = vunpack.c.l.b16 %v408
        %v1856 = vunpack.c.h.b16 %v408
        %v1857 = vunpack.c.l.b16 %v409
        %v1858 = vunpack.c.h.b16 %v409
        %v1859 = vunpack.c.l.b16 %v410
        %v1860 = vunpack.c.h.b16 %v410
        %v1861 = vunpack.c.l.b16 %v411
        %v1862 = vunpack.c.h.b16 %v411
        %v1863 = vunpack.c.l.b16 %v412
        %v1864 = vunpack.c.h.b16 %v412
        %v1865 = vunpack.c.l.b16 %v413
        %v1866 = vunpack.c.h.b16 %v413
        %v1867 = vunpack.c.l.b16 %v414
        %v1868 = vunpack.c.h.b16 %v414
        %v1869 = vunpack.c.l.b16 %v415
        %v1870 = vunpack.c.h.b16 %v415
        %v1871 = vunpack.c.l.b16 %v416
        %v1872 = vunpack.c.h.b16 %v416
        %v1873 = vunpack.c.l.b16 %v417
        %v1874 = vunpack.c.h.b16 %v417
        %v1875 = vunpack.c.l.b16 %v418
        %v1876 = vunpack.c.h.b16 %v418
        %v1877 = vunpack.c.l.b16 %v419
        %v1878 = vunpack.c.h.b16 %v419
        %v1879 = vunpack.c.l.b16 %v420
        %v1880 = vunpack.c.h.b16 %v420
        %v1881 = vunpack.c.l.b16 %v421
        %v1882 = vunpack.c.h.b16 %v421
        %v1883 = vunpack.c.l.b16 %v422
        %v1884 = vunpack.c.h.b16 %v422
        %v1885 = vunpack.c.l.b16 %v423
        %v1886 = vunpack.c.h.b16 %v423
        %v1887 = vunpack.c.l.b16 %v424
        %v1888 = vunpack.c.h.b16 %v424
        %v1889 = vunpack.c.l.b16 %v425
        %v1890 = vunpack.c.h.b16 %v425
        %v1891 = vunpack.c.l.b16 %v426
        %v1892 = vunpack.c.h.b16 %v426
        %v1893 = vunpack.c.l.b16 %v427
        %v1894 = vunpack.c.h.b16 %v427
        %v1895 = vunpack.c.l.b16 %v428
        %v1896 = vunpack.c.h.b16 %v428
        %v1897 = vunpack.c.l.b16 %v429
        %v1898 = vunpack.c.h.b16 %v429
        %v1899 = vunpack.c.l.b16 %v430
        %v1900 = vunpack.c.h.b16 %v430
        %v1901 = vunpack.c.l.b16 %v431
        %v1902 = vunpack.c.h.b16 %v431
        %v1903 = vunpack.c.l.b16 %v432
        %v1904 = vunpack.c.h.b16 %v432
        %v1905 = vunpack.c.l.b16 %v433
        %v1906 = vunpack.c.h.b16 %v433
        %v1907 = vunpack.c.l.b16 %v434
        %v1908 = vunpack.c.h.b16 %v434
        %v1909 = vunpack.c.l.b16 %v435
        %v1910 = vunpack.c.h.b16 %v435
        %v1911 = vunpack.c.l.b16 %v436
        %v1912 = vunpack.c.h.b16 %v436
        %v1913 = vunpack.c.l.b16 %v437
        %v1914 = vunpack.c.h.b16 %v437
        %v1915 = vunpack.c.l.b16 %v438
        %v1916 = vunpack.c.h.b16 %v438
        %v1917 = vunpack.c.l.b16 %v439
        %v1918 = vunpack.c.h.b16 %v439
        %v1919 = vunpack.c.l.b16 %v440
        %v1920 = vunpack.c.h.b16 %v440
        %v1921 = vunpack.c.l.b16 %v441
        %v1922 = vunpack.c.h.b16 %v441
        %v1923 = vunpack.c.l.b16 %v442
        %v1924 = vunpack.c.h.b16 %v442
        %v1925 = vunpack.c.l.b16 %v443
        %v1926 = vunpack.c.h.b16 %v443
        %v1927 = vunpack.c.l.b16 %v444
        %v1928 = vunpack.c.h.b16 %v444
        %v1929 = vunpack.c.l.b16 %v445
        %v1930 = vunpack.c.h.b16 %v445
        %v1931 = vunpack.c.l.b16 %v446
        %v1932 = vunpack.c.h.b16 %v446
        %v1933 = vunpack.c.l.b16 %v447
        %v1934 = vunpack.c.h.b16 %v447
        %v1935 = vunpack.c.l.b16 %v448
        %v1936 = vunpack.c.h.b16 %v448
        %v1937 = vunpack.c.l.b16 %v449
        %v1938 = vunpack.c.h.b16 %v449
        %v1939 = vunpack.c.l.b16 %v450
        %v1940 = vunpack.c.h.b16 %v450
        %v1941 = vunpack.c.l.b16 %v451
        %v1942 = vunpack.c.h.b16 %v451
        %v1943 = vunpack.c.l.b16 %v452
        %v1944 = vunpack.c.h.b16 %v452
        %v1945 = vunpack.c.l.b16 %v453
        %v1946 = vunpack.c.h.b16 %v453
        %v1947 = vunpack.c.l.b16 %v454
        %v1948 = vunpack.c.h.b16 %v454
        %v1949 = vunpack.c.l.b16 %v455
        %v1950 = vunpack.c.h.b16 %v455
        %v1951 = vunpack.c.l.b16 %v456
        %v1952 = vunpack.c.h.b16 %v456
        %v1953 = vunpack.c.l.b16 %v457
        %v1954 = vunpack.c.h.b16 %v457
        %v1955 = vunpack.c.l.b16 %v458
        %v1956 = vunpack.c.h.b16 %v458
        %v1957 = vunpack.c.l.b16 %v459
        %v1958 = vunpack.c.h.b16 %v459
        %v1959 = vunpack.c.l.b16 %v460
        %v1960 = vunpack.c.h.b16 %v460
        %v1961 = vunpack.c.l.b16 %v461
        %v1962 = vunpack.c.h.b16 %v461
        %v1963 = vunpack.c.l.b16 %v462
        %v1964 = vunpack.c.h.b16 %v462
        %v1965 = vunpack.c.l.b16 %v463
        %v1966 = vunpack.c.h.b16 %v463
        %v1967 = vunpack.c.l.b16 %v464
        %v1968 = vunpack.c.h.b16 %v464
        %v1969 = vunpack.c.l.b16 %v465
        %v1970 = vunpack.c.h.b16 %v465
        %v1971 = vunpack.c.l.b16 %v466
        %v1972 = vunpack.c.h.b16 %v466
        %v1973 = vunpack.c.l.b16 %v467
        %v1974 = vunpack.c.h.b16 %v467
        %v1975 = vunpack.c.l.b16 %v468
        %v1976 = vunpack.c.h.b16 %v468
        %v1977 = vunpack.c.l.b16 %v469
        %v1978 = vunpack.c.h.b16 %v469
        %v1979 = vunpack.c.l.b16 %v470
        %v1980 = vunpack.c.h.b16 %v470
        %v1981 = vunpack.c.l.b16 %v471
        %v1982 = vunpack.c.h.b16 %v471
        %v1983 = vunpack.c.l.b16 %v472
        %v1984 = vunpack.c.h.b16 %v472
        %v1985 = vunpack.c.l.b16 %v473
        %v1986 = vunpack.c.h.b16 %v473
        %v1987 = vunpack.c.l.b16 %v474
        %v1988 = vunpack.c.h.b16 %v474
        %v1989 = vunpack.c.l.b16 %v475
        %v1990 = vunpack.c.h.b16 %v475
        %v1991 = vunpack.c.l.b16 %v476
        %v1992 = vunpack.c.h.b16 %v476
        %v1993 = vunpack.c.l.b16 %v477
        %v1994 = vunpack.c.h.b16 %v477
        %v1995 = vunpack.c.l.b16 %v478
        %v1996 = vunpack.c.h.b16 %v478
        %v1997 = vunpack.c.l.b16 %v479
        %v1998 = vunpack.c.h.b16 %v479
        %v1999 = vunpack.c.l.b16 %v480
        %v2000 = vunpack.c.h.b16 %v480
        %v2001 = vunpack.c.l.b16 %v481
        %v2002 = vunpack.c.h.b16 %v481
        %v2003 = vunpack.c.l.b16 %v482
        %v2004 = vunpack.c.h.b16 %v482
        %v2005 = vunpack.c.l.b16 %v483
        %v2006 = vunpack.c.h.b16 %v483
        %v2007 = vunpack.c.l.b16 %v484
        %v2008 = vunpack.c.h.b16 %v484
        %v2009 = vunpack.c.l.b16 %v485
        %v2010 = vunpack.c.h.b16 %v485
        %v2011 = vunpack.c.l.b16 %v486
        %v2012 = vunpack.c.h.b16 %v486
        %v2013 = vunpack.c.l.b16 %v487
        %v2014 = vunpack.c.h.b16 %v487
        %v2015 = vunpack.c.l.b16 %v488
        %v2016 = vunpack.c.h.b16 %v488
        %v2017 = vunpack.c.l.b16 %v489
        %v2018 = vunpack.c.h.b16 %v489
        %v2019 = vunpack.c.l.b16 %v490
        %v2020 = vunpack.c.h.b16 %v490
        %v2021 = vunpack.c.l.b16 %v491
        %v2022 = vunpack.c.h.b16 %v491
        %v2023 = vunpack.c.l.b16 %v492
        %v2024 = vunpack.c.h.b16 %v492
        %v2025 = vunpack.c.l.b16 %v493
        %v2026 = vunpack.c.h.b16 %v493
        %v2027 = vunpack.c.l.b16 %v494
        %v2028 = vunpack.c.h.b16 %v494
        %v2029 = vunpack.c.l.b16 %v495
        %v2030 = vunpack.c.h.b16 %v495
        %v2031 = vunpack.c.l.b16 %v496
        %v2032 = vunpack.c.h.b16 %v496
        %v2033 = vunpack.c.l.b16 %v497
        %v2034 = vunpack.c.h.b16 %v497
        %v2035 = vunpack.c.l.b16 %v498
        %v2036 = vunpack.c.h.b16 %v498
        %v2037 = vunpack.c.l.b16 %v499
        %v2038 = vunpack.c.h.b16 %v499
        %v2039 = vunpack.c.l.b16 %v500
        %v2040 = vunpack.c.h.b16 %v500
        %v2041 = vunpack.c.l.b16 %v501
        %v2042 = vunpack.c.h.b16 %v501
        %v2043 = vunpack.c.l.b16 %v502
        %v2044 = vunpack.c.h.b16 %v502
        %v2045 = vunpack.c.l.b16 %v503
        %v2046 = vunpack.c.h.b16 %v503
        %v2047 = vunpack.c.l.b16 %v504
        %v2048 = vunpack.c.h.b16 %v504
        %v2049 = vunpack.c.l.b16 %v505
        %v2050 = vunpack.c.h.b16 %v505
        %v2051 = vunpack.c.l.b16 %v506
        %v2052 = vunpack.c.h.b16 %v506
        %v2053 = vunpack.c.l.b16 %v507
        %v2054 = vunpack.c.h.b16 %v507
        %v2055 = vunpack.c.l.b16 %v508
        %v2056 = vunpack.c.h.b16 %v508
        %v2057 = vunpack.c.l.b16 %v509
        %v2058 = vunpack.c.h.b16 %v509
        %v2059 = vunpack.c.l.b16 %v510
        %v2060 = vunpack.c.h.b16 %v510
        %v2061 = vunpack.c.l.b16 %v511
        %v2062 = vunpack.c.h.b16 %v511
        %v2063 = vunpack.c.l.b16 %v512
        %v2064 = vunpack.c.h.b16 %v512
        %v2065 = vunpack.c.l.b16 %v513
        %v2066 = vunpack.c.h.b16 %v513
        %v2067 = vunpack.c.l.b16 %v514
        %v2068 = vunpack.c.h.b16 %v514
        %v2069 = vunpack.c.l.b16 %v515
        %v2070 = vunpack.c.h.b16 %v515
        %v2071 = vunpack.c.l.b16 %v516
        %v2072 = vunpack.c.h.b16 %v516
        %v2073 = vunpack.c.l.b16 %v517
        %v2074 = vunpack.c.h.b16 %v517
        %v2075 = vunpack.c.l.b16 %v518
        %v2076 = vunpack.c.h.b16 %v518
        %v2077 = vunpack.c.l.b16 %v519
        %v2078 = vunpack.c.h.b16 %v519
        %v2079 = vunpack.c.l.b16 %v520
        %v2080 = vunpack.c.h.b16 %v520
        %v2081 = vunpack.c.l.b16 %v521
        %v2082 = vunpack.c.h.b16 %v521
        %v2083 = vunpack.c.l.b16 %v522
        %v2084 = vunpack.c.h.b16 %v522
        %v2085 = vunpack.c.l.b16 %v523
        %v2086 = vunpack.c.h.b16 %v523
        %v2087 = vunpack.c.l.b16 %v524
        %v2088 = vunpack.c.h.b16 %v524
        %v2089 = vunpack.c.l.b16 %v525
        %v2090 = vunpack.c.h.b16 %v525
        %v2091 = vunpack.c.l.b16 %v526
        %v2092 = vunpack.c.h.b16 %v526
        %v2093 = vunpack.c.l.b16 %v527
        %v2094 = vunpack.c.h.b16 %v527
        %v2095 = vunpack.c.l.b16 %v528
        %v2096 = vunpack.c.h.b16 %v528
        %v2097 = vunpack.c.l.b16 %v529
        %v2098 = vunpack.c.h.b16 %v529
        %v2099 = vunpack.c.l.b16 %v530
        %v2100 = vunpack.c.h.b16 %v530
        %v2101 = vunpack.c.l.b16 %v531
        %v2102 = vunpack.c.h.b16 %v531
        %v2103 = vunpack.c.l.b16 %v532
        %v2104 = vunpack.c.h.b16 %v532
        %v2105 = vunpack.c.l.b16 %v533
        %v2106 = vunpack.c.h.b16 %v533
        %v2107 = vunpack.c.l.b16 %v534
        %v2108 = vunpack.c.h.b16 %v534
        %v2109 = vunpack.c.l.b16 %v535
        %v2110 = vunpack.c.h.b16 %v535
        %v2111 = vunpack.c.l.b16 %v536
        %v2112 = vunpack.c.h.b16 %v536
        %v2113 = vunpack.c.l.b16 %v537
        %v2114 = vunpack.c.h.b16 %v537
        %v2115 = vunpack.c.l.b16 %v538
        %v2116 = vunpack.c.h.b16 %v538
        %v2117 = vunpack.c.l.b16 %v539
        %v2118 = vunpack.c.h.b16 %v539
        %v2119 = vunpack.c.l.b16 %v540
        %v2120 = vunpack.c.h.b16 %v540
        %v2121 = vunpack.c.l.b16 %v541
        %v2122 = vunpack.c.h.b16 %v541
        %v2123 = vunpack.c.l.b16 %v542
        %v2124 = vunpack.c.h.b16 %v542
        %v2125 = vunpack.c.l.b16 %v543
        %v2126 = vunpack.c.h.b16 %v543
        %v2127 = vunpack.c.l.b16 %v544
        %v2128 = vunpack.c.h.b16 %v544
        %v2129 = vunpack.c.l.b16 %v545
        %v2130 = vunpack.c.h.b16 %v545
        %v2131 = vunpack.c.l.b16 %v546
        %v2132 = vunpack.c.h.b16 %v546
        %v2133 = vunpack.c.l.b16 %v547
        %v2134 = vunpack.c.h.b16 %v547
        %v2135 = vunpack.c.l.b16 %v548
        %v2136 = vunpack.c.h.b16 %v548
        %v2137 = vunpack.c.l.b16 %v549
        %v2138 = vunpack.c.h.b16 %v549
        %v2139 = vunpack.c.l.b16 %v550
        %v2140 = vunpack.c.h.b16 %v550
        %v2141 = vunpack.c.l.b16 %v551
        %v2142 = vunpack.c.h.b16 %v551
        %v2143 = vunpack.c.l.b16 %v552
        %v2144 = vunpack.c.h.b16 %v552
        %v2145 = vunpack.c.l.b16 %v553
        %v2146 = vunpack.c.h.b16 %v553
        %v2147 = vunpack.c.l.b16 %v554
        %v2148 = vunpack.c.h.b16 %v554
        %v2149 = vunpack.c.l.b16 %v555
        %v2150 = vunpack.c.h.b16 %v555
        %v2151 = vunpack.c.l.b16 %v556
        %v2152 = vunpack.c.h.b16 %v556
        %v2153 = vunpack.c.l.b16 %v557
        %v2154 = vunpack.c.h.b16 %v557
        %v2155 = vunpack.c.l.b16 %v558
        %v2156 = vunpack.c.h.b16 %v558
        %v2157 = vunpack.c.l.b16 %v559
        %v2158 = vunpack.c.h.b16 %v559
        %v2159 = vunpack.c.l.b16 %v560
        %v2160 = vunpack.c.h.b16 %v560
        %v2161 = vunpack.c.l.b16 %v561
        %v2162 = vunpack.c.h.b16 %v561
        %v2163 = vunpack.c.l.b16 %v562
        %v2164 = vunpack.c.h.b16 %v562
        %v2165 = vunpack.c.l.b16 %v563
        %v2166 = vunpack.c.h.b16 %v563
        %v2167 = vunpack.c.l.b16 %v564
        %v2168 = vunpack.c.h.b16 %v564
        %v2169 = vunpack.c.l.b16 %v565
        %v2170 = vunpack.c.h.b16 %v565
        %v2171 = vunpack.c.l.b16 %v566
        %v2172 = vunpack.c.h.b16 %v566
        %v2173 = vunpack.c.l.b16 %v567
        %v2174 = vunpack.c.h.b16 %v567
        %v2175 = vunpack.c.l.b16 %v568
        %v2176 = vunpack.c.h.b16 %v568
        %v2177 = vunpack.c.l.b16 %v569
        %v2178 = vunpack.c.h.b16 %v569
        %v2179 = vunpack.c.l.b16 %v570
        %v2180 = vunpack.c.h.b16 %v570
        %v2181 = vunpack.c.l.b16 %v571
        %v2182 = vunpack.c.h.b16 %v571
        %v2183 = vunpack.c.l.b16 %v572
        %v2184 = vunpack.c.h.b16 %v572
        %v2185 = vunpack.c.l.b16 %v573
        %v2186 = vunpack.c.h.b16 %v573
        %v2187 = vunpack.c.l.b16 %v574
        %v2188 = vunpack.c.h.b16 %v574
        %v2189 = vunpack.c.l.b16 %v575
        %v2190 = vunpack.c.h.b16 %v575
        %v2191 = vunpack.c.l.b16 %v576
        %v2192 = vunpack.c.h.b16 %v576
        %v2193 = vunpack.c.l.b16 %v577
        %v2194 = vunpack.c.h.b16 %v577
        %v2195 = vunpack.c.l.b16 %v578
        %v2196 = vunpack.c.h.b16 %v578
        %v2197 = vunpack.c.l.b16 %v579
        %v2198 = vunpack.c.h.b16 %v579
        %v2199 = vunpack.c.l.b16 %v580
        %v2200 = vunpack.c.h.b16 %v580
        %v2201 = vunpack.c.l.b16 %v581
        %v2202 = vunpack.c.h.b16 %v581
        %v2203 = vunpack.c.l.b16 %v582
        %v2204 = vunpack.c.h.b16 %v582
        %v2205 = vunpack.c.l.b16 %v583
        %v2206 = vunpack.c.h.b16 %v583
        %v2207 = vunpack.c.l.b16 %v584
        %v2208 = vunpack.c.h.b16 %v584
        %v2209 = vunpack.c.l.b16 %v585
        %v2210 = vunpack.c.h.b16 %v585
        %v2211 = vunpack.c.l.b16 %v586
        %v2212 = vunpack.c.h.b16 %v586
        %v2213 = vunpack.c.l.b16 %v587
        %v2214 = vunpack.c.h.b16 %v587
        %v2215 = vunpack.c.l.b16 %v588
        %v2216 = vunpack.c.h.b16 %v588
        %v2217 = vunpack.c.l.b16 %v589
        %v2218 = vunpack.c.h.b16 %v589
        %v2219 = vunpack.c.l.b16 %v590
        %v2220 = vunpack.c.h.b16 %v590
        %v2221 = vunpack.c.l.b16 %v591
        %v2222 = vunpack.c.h.b16 %v591
        %v2223 = vunpack.c.l.b16 %v592
        %v2224 = vunpack.c.h.b16 %v592
        %v2225 = vunpack.c.l.b16 %v593
        %v2226 = vunpack.c.h.b16 %v593
        %v2227 = vunpack.c.l.b16 %v594
        %v2228 = vunpack.c.h.b16 %v594
        %v2229 = vunpack.c.l.b16 %v595
        %v2230 = vunpack.c.h.b16 %v595
        %v2231 = vunpack.c.l.b16 %v596
        %v2232 = vunpack.c.h.b16 %v596
        %v2233 = vunpack.c.l.b16 %v597
        %v2234 = vunpack.c.h.b16 %v597
        %v2235 = vunpack.c.l.b16 %v598
        %v2236 = vunpack.c.h.b16 %v598
        %v2237 = vunpack.c.l.b16 %v599
        %v2238 = vunpack.c.h.b16 %v599
        %v2239 = vunpack.c.l.b16 %v600
        %v2240 = vunpack.c.h.b16 %v600
        %v2241 = vunpack.c.l.b16 %v601
        %v2242 = vunpack.c.h.b16 %v601
        %v2243 = vunpack.c.l.b16 %v602
        %v2244 = vunpack.c.h.b16 %v602
        %v2245 = vunpack.c.l.b16 %v603
        %v2246 = vunpack.c.h.b16 %v603
        %v2247 = vunpack.c.l.b16 %v604
        %v2248 = vunpack.c.h.b16 %v604
        %v2249 = vunpack.c.l.b16 %v605
        %v2250 = vunpack.c.h.b16 %v605
        %v2251 = vunpack.c.l.b16 %v606
        %v2252 = vunpack.c.h.b16 %v606
        %v2253 = vunpack.c.l.b16 %v607
        %v2254 = vunpack.c.h.b16 %v607
        %v2255 = vunpack.c.l.b16 %v608
        %v2256 = vunpack.c.h.b16 %v608
        %v2257 = vunpack.c.l.b16 %v609
        %v2258 = vunpack.c.h.b16 %v609
        %v2259 = vunpack.c.l.b16 %v610
        %v2260 = vunpack.c.h.b16 %v610
        %v2261 = vunpack.c.l.b16 %v611
        %v2262 = vunpack.c.h.b16 %v611
        %v2263 = vunpack.c.l.b16 %v612
        %v2264 = vunpack.c.h.b16 %v612
        %v2265 = vunpack.c.l.b16 %v613
        %v2266 = vunpack.c.h.b16 %v613
        %v2267 = vunpack.c.l.b16 %v614
        %v2268 = vunpack.c.h.b16 %v614
        %v2269 = vunpack.c.l.b16 %v615
        %v2270 = vunpack.c.h.b16 %v615
        %v2271 = vunpack.c.l.b16 %v616
        %v2272 = vunpack.c.h.b16 %v616
        %v2273 = vunpack.c.l.b16 %v617
        %v2274 = vunpack.c.h.b16 %v617
        %v2275 = vunpack.c.l.b16 %v618
        %v2276 = vunpack.c.h.b16 %v618
        %v2277 = vunpack.c.l.b16 %v619
        %v2278 = vunpack.c.h.b16 %v619
        %v2279 = vunpack.c.l.b16 %v620
        %v2280 = vunpack.c.h.b16 %v620
        %v2281 = vunpack.c.l.b16 %v621
        %v2282 = vunpack.c.h.b16 %v621
        %v2283 = vunpack.c.l.b16 %v622
        %v2284 = vunpack.c.h.b16 %v622
        %v2285 = vunpack.c.l.b16 %v623
        %v2286 = vunpack.c.h.b16 %v623
        %v2287 = vunpack.c.l.b16 %v624
        %v2288 = vunpack.c.h.b16 %v624
        %v2289 = vunpack.c.l.b16 %v625
        %v2290 = vunpack.c.h.b16 %v625
        %v2291 = vunpack.c.l.b16 %v626
        %v2292 = vunpack.c.h.b16 %v626
        %v2293 = vunpack.c.l.b16 %v627
        %v2294 = vunpack.c.h.b16 %v627
        %v2295 = vunpack.c.l.b16 %v628
        %v2296 = vunpack.c.h.b16 %v628
        %v2297 = vunpack.c.l.b16 %v629
        %v2298 = vunpack.c.h.b16 %v629
        %v2299 = vunpack.c.l.b16 %v630
        %v2300 = vunpack.c.h.b16 %v630
        %v2301 = vunpack.c.l.b16 %v631
        %v2302 = vunpack.c.h.b16 %v631
        %v2303 = vunpack.c.l.b16 %v632
        %v2304 = vunpack.c.h.b16 %v632
        %v2305 = vunpack.c.l.b16 %v633
        %v2306 = vunpack.c.h.b16 %v633
        %v2307 = vunpack.c.l.b16 %v634
        %v2308 = vunpack.c.h.b16 %v634
        %v2309 = vunpack.c.l.b16 %v635
        %v2310 = vunpack.c.h.b16 %v635
        %v2311 = vunpack.c.l.b16 %v636
        %v2312 = vunpack.c.h.b16 %v636
        %v2313 = vunpack.c.l.b16 %v637
        %v2314 = vunpack.c.h.b16 %v637
        %v2315 = vunpack.c.l.b16 %v638
        %v2316 = vunpack.c.h.b16 %v638
        %v2317 = vunpack.c.l.b16 %v639
        %v2318 = vunpack.c.h.b16 %v639
        %v2319 = vunpack.c.l.b16 %v640
        %v2320 = vunpack.c.h.b16 %v640
        %v2321 = vunpack.c.l.b16 %v641
        %v2322 = vunpack.c.h.b16 %v641
        %v2323 = vunpack.c.l.b16 %v642
        %v2324 = vunpack.c.h.b16 %v642
        %v2325 = vunpack.c.l.b16 %v643
        %v2326 = vunpack.c.h.b16 %v643
        %v2327 = vunpack.c.l.b16 %v644
        %v2328 = vunpack.c.h.b16 %v644
        %v2329 = vunpack.c.l.b16 %v645
        %v2330 = vunpack.c.h.b16 %v645
        %v2331 = vunpack.c.l.b16 %v646
        %v2332 = vunpack.c.h.b16 %v646
        %v2333 = vunpack.c.l.b16 %v647
        %v2334 = vunpack.c.h.b16 %v647
        %v2335 = vunpack.c.l.b16 %v648
        %v2336 = vunpack.c.h.b16 %v648
        %v2337 = vunpack.c.l.b16 %v649
        %v2338 = vunpack.c.h.b16 %v649
        %v2339 = vunpack.c.l.b16 %v650
        %v2340 = vunpack.c.h.b16 %v650
        %v2341 = vunpack.c.l.b16 %v651
        %v2342 = vunpack.c.h.b16 %v651
        %v2343 = vunpack.c.l.b16 %v652
        %v2344 = vunpack.c.h.b16 %v652
        %v2345 = vunpack.c.l.b16 %v653
        %v2346 = vunpack.c.h.b16 %v653
        %v2347 = vunpack.c.l.b16 %v654
        %v2348 = vunpack.c.h.b16 %v654
        %v2349 = vunpack.c.l.b16 %v655
        %v2350 = vunpack.c.h.b16 %v655
        %v2351 = vunpack.c.l.b16 %v656
        %v2352 = vunpack.c.h.b16 %v656
        %v2353 = vunpack.c.l.b16 %v657
        %v2354 = vunpack.c.h.b16 %v657
        %v2355 = vunpack.c.l.b16 %v658
        %v2356 = vunpack.c.h.b16 %v658
        %v2357 = vunpack.c.l.b16 %v659
        %v2358 = vunpack.c.h.b16 %v659
        %v2359 = vunpack.c.l.b16 %v660
        %v2360 = vunpack.c.h.b16 %v660
        %v2361 = vunpack.c.l.b16 %v661
        %v2362 = vunpack.c.h.b16 %v661
        %v2363 = vunpack.c.l.b16 %v662
        %v2364 = vunpack.c.h.b16 %v662
        %v2365 = vunpack.c.l.b16 %v663
        %v2366 = vunpack.c.h.b16 %v663
        %v2367 = vunpack.c.l.b16 %v664
        %v2368 = vunpack.c.h.b16 %v664
        %v2369 = vunpack.c.l.b16 %v665
        %v2370 = vunpack.c.h.b16 %v665
        %v2371 = vunpack.c.l.b16 %v666
        %v2372 = vunpack.c.h.b16 %v666
        %v2373 = vunpack.c.l.b16 %v667
        %v2374 = vunpack.c.h.b16 %v667
        %v2375 = vunpack.c.l.b16 %v668
        %v2376 = vunpack.c.h.b16 %v668
        %v2377 = vunpack.c.l.b16 %v669
        %v2378 = vunpack.c.h.b16 %v669
        %v2379 = vunpack.c.l.b16 %v670
        %v2380 = vunpack.c.h.b16 %v670
        %v2381 = vunpack.c.l.b16 %v671
        %v2382 = vunpack.c.h.b16 %v671
        %v2383 = vunpack.c.l.b16 %v672
        %v2384 = vunpack.c.h.b16 %v672
        %v2385 = vunpack.c.l.b16 %v673
        %v2386 = vunpack.c.h.b16 %v673
        %v2387 = vunpack.c.l.b16 %v674
        %v2388 = vunpack.c.h.b16 %v674
        %v2389 = vunpack.c.l.b16 %v675
        %v2390 = vunpack.c.h.b16 %v675
        %v2391 = vunpack.c.l.b16 %v676
        %v2392 = vunpack.c.h.b16 %v676
        %v2393 = vunpack.c.l.b16 %v677
        %v2394 = vunpack.c.h.b16 %v677
        %v2395 = vunpack.c.l.b16 %v678
        %v2396 = vunpack.c.h.b16 %v678
        %v2397 = vunpack.c.l.b16 %v679
        %v2398 = vunpack.c.h.b16 %v679
        %v2399 = vunpack.c.l.b16 %v680
        %v2400 = vunpack.c.h.b16 %v680
        %v2401 = vunpack.c.l.b16 %v681
        %v2402 = vunpack.c.h.b16 %v681
        %v2403 = vunpack.c.l.b16 %v682
        %v2404 = vunpack.c.h.b16 %v682
        %v2405 = vunpack.c.l.b16 %v683
        %v2406 = vunpack.c.h.b16 %v683
        %v2407 = vunpack.c.l.b16 %v684
        %v2408 = vunpack.c.h.b16 %v684
        %v2409 = vunpack.c.l.b16 %v685
        %v2410 = vunpack.c.h.b16 %v685
        %v2411 = vunpack.c.l.b16 %v686
        %v2412 = vunpack.c.h.b16 %v686
        %v2413 = vunpack.c.l.b16 %v687
        %v2414 = vunpack.c.h.b16 %v687
        %v2415 = vunpack.c.l.b16 %v688
        %v2416 = vunpack.c.h.b16 %v688
        %v2417 = vunpack.c.l.b16 %v689
        %v2418 = vunpack.c.h.b16 %v689
        %v2419 = vunpack.c.l.b16 %v690
        %v2420 = vunpack.c.h.b16 %v690
        %v2421 = vunpack.c.l.b16 %v691
        %v2422 = vunpack.c.h.b16 %v691
        %v2423 = vunpack.c.l.b16 %v692
        %v2424 = vunpack.c.h.b16 %v692
        %v2425 = vunpack.c.l.b16 %v693
        %v2426 = vunpack.c.h.b16 %v693
        %v2427 = vunpack.c.l.b16 %v694
        %v2428 = vunpack.c.h.b16 %v694
        %v2429 = vunpack.c.l.b16 %v695
        %v2430 = vunpack.c.h.b16 %v695
        %v2431 = vunpack.c.l.b16 %v696
        %v2432 = vunpack.c.h.b16 %v696
        %v2433 = vunpack.c.l.b16 %v697
        %v2434 = vunpack.c.h.b16 %v697
        %v2435 = vunpack.c.l.b16 %v698
        %v2436 = vunpack.c.h.b16 %v698
        %v2437 = vunpack.c.l.b16 %v699
        %v2438 = vunpack.c.h.b16 %v699
        %v2439 = vunpack.c.l.b16 %v700
        %v2440 = vunpack.c.h.b16 %v700
        %v2441 = vunpack.c.l.b16 %v701
        %v2442 = vunpack.c.h.b16 %v701
        %v2443 = vunpack.c.l.b16 %v702
        %v2444 = vunpack.c.h.b16 %v702
        %v2445 = vunpack.c.l.b16 %v703
        %v2446 = vunpack.c.h.b16 %v703
        %v2447 = vunpack.c.l.b16 %v704
        %v2448 = vunpack.c.h.b16 %v704
        %v2449 = vunpack.c.l.b16 %v705
        %v2450 = vunpack.c.h.b16 %v705
        %v2451 = vunpack.c.l.b16 %v706
        %v2452 = vunpack.c.h.b16 %v706
        %v2453 = vunpack.c.l.b16 %v707
        %v2454 = vunpack.c.h.b16 %v707
        %v2455 = vunpack.c.l.b16 %v708
        %v2456 = vunpack.c.h.b16 %v708
        %v2457 = vunpack.c.l.b16 %v709
        %v2458 = vunpack.c.h.b16 %v709
        %v2459 = vunpack.c.l.b16 %v710
        %v2460 = vunpack.c.h.b16 %v710
        %v2461 = vunpack.c.l.b16 %v711
        %v2462 = vunpack.c.h.b16 %v711
        %v2463 = vunpack.c.l.b16 %v712
        %v2464 = vunpack.c.h.b16 %v712
        %v2465 = vunpack.c.l.b16 %v713
        %v2466 = vunpack.c.h.b16 %v713
        %v2467 = vunpack.c.l.b16 %v714
        %v2468 = vunpack.c.h.b16 %v714
        %v2469 = vunpack.c.l.b16 %v715
        %v2470 = vunpack.c.h.b16 %v715
        %v2471 = vunpack.c.l.b16 %v716
        %v2472 = vunpack.c.h.b16 %v716
        %v2473 = vunpack.c.l.b16 %v717
        %v2474 = vunpack.c.h.b16 %v717
        %v2475 = vunpack.c.l.b16 %v718
        %v2476 = vunpack.c.h.b16 %v718
        %v2477 = vunpack.c.l.b16 %v719
        %v2478 = vunpack.c.h.b16 %v719
        %v2479 = vunpack.c.l.b16 %v720
        %v2480 = vunpack.c.h.b16 %v720
        %v2481 = vunpack.c.l.b16 %v721
        %v2482 = vunpack.c.h.b16 %v721
        %v2483 = vunpack.c.l.b16 %v722
        %v2484 = vunpack.c.h.b16 %v722
        %v2485 = vunpack.c.l.b16 %v723
        %v2486 = vunpack.c.h.b16 %v723
        %v2487 = vunpack.c.l.b16 %v724
        %v2488 = vunpack.c.h.b16 %v724
        %v2489 = vunpack.c.l.b16 %v725
        %v2490 = vunpack.c.h.b16 %v725
        %v2491 = vunpack.c.l.b16 %v726
        %v2492 = vunpack.c.h.b16 %v726
        %v2493 = vunpack.c.l.b16 %v727
        %v2494 = vunpack.c.h.b16 %v727
        %v2495 = vunpack.c.l.b16 %v728
        %v2496 = vunpack.c.h.b16 %v728
        %v2497 = vunpack.c.l.b16 %v729
        %v2498 = vunpack.c.h.b16 %v729
        %v2499 = vunpack.c.l.b16 %v730
        %v2500 = vunpack.c.h.b16 %v730
        %v2501 = vunpack.c.l.b16 %v731
        %v2502 = vunpack.c.h.b16 %v731
        %v2503 = vunpack.c.l.b16 %v732
        %v2504 = vunpack.c.h.b16 %v732
        %v2505 = vunpack.c.l.b16 %v733
        %v2506 = vunpack.c.h.b16 %v733
        %v2507 = vunpack.c.l.b16 %v734
        %v2508 = vunpack.c.h.b16 %v734
        %v2509 = vunpack.c.l.b16 %v735
        %v2510 = vunpack.c.h.b16 %v735
        %v2511 = vunpack.c.l.b16 %v736
        %v2512 = vunpack.c.h.b16 %v736
        %v2513 = vunpack.c.l.b16 %v737
        %v2514 = vunpack.c.h.b16 %v737
        %v2515 = vunpack.c.l.b16 %v738
        %v2516 = vunpack.c.h.b16 %v738
        %v2517 = vunpack.c.l.b16 %v739
        %v2518 = vunpack.c.h.b16 %v739
        %v2519 = vunpack.c.l.b16 %v740
        %v2520 = vunpack.c.h.b16 %v740
        %v2521 = vunpack.c.l.b16 %v741
        %v2522 = vunpack.c.h.b16 %v741
        %v2523 = vunpack.c.l.b16 %v742
        %v2524 = vunpack.c.h.b16 %v742
        %v2525 = vunpack.c.l.b16 %v743
        %v2526 = vunpack.c.h.b16 %v743
        %v2527 = vunpack.c.l.b16 %v744
        %v2528 = vunpack.c.h.b16 %v744
        %v2529 = vunpack.c.l.b16 %v745
        %v2530 = vunpack.c.h.b16 %v745
        %v2531 = vunpack.c.l.b16 %v746
        %v2532 = vunpack.c.h.b16 %v746
        %v2533 = vunpack.c.l.b16 %v747
        %v2534 = vunpack.c.h.b16 %v747
        %v2535 = vunpack.c.l.b16 %v748
        %v2536 = vunpack.c.h.b16 %v748
        %v2537 = vunpack.c.l.b16 %v749
        %v2538 = vunpack.c.h.b16 %v749
        %v2539 = vunpack.c.l.b16 %v750
        %v2540 = vunpack.c.h.b16 %v750
        %v2541 = vunpack.c.l.b16 %v751
        %v2542 = vunpack.c.h.b16 %v751
        %v2543 = vunpack.c.l.b16 %v752
        %v2544 = vunpack.c.h.b16 %v752
        %v2545 = vunpack.c.l.b16 %v753
        %v2546 = vunpack.c.h.b16 %v753
        %v2547 = vunpack.c.l.b16 %v754
        %v2548 = vunpack.c.h.b16 %v754
        %v2549 = vunpack.c.l.b16 %v755
        %v2550 = vunpack.c.h.b16 %v755
        %v2551 = vunpack.c.l.b16 %v756
        %v2552 = vunpack.c.h.b16 %v756
        %v2553 = vunpack.c.l.b16 %v757
        %v2554 = vunpack.c.h.b16 %v757
        %v2555 = vunpack.c.l.b16 %v758
        %v2556 = vunpack.c.h.b16 %v758
        %v2557 = vunpack.c.l.b16 %v759
        %v2558 = vunpack.c.h.b16 %v759
        %v2559 = vunpack.c.l.b16 %v760
        %v2560 = vunpack.c.h.b16 %v760
        %v2561 = vunpack.c.l.b16 %v761
        %v2562 = vunpack.c.h.b16 %v761
        %v2563 = vunpack.c.l.b16 %v762
        %v2564 = vunpack.c.h.b16 %v762
        %v2565 = vunpack.c.l.b16 %v763
        %v2566 = vunpack.c.h.b16 %v763
        %v2567 = vunpack.c.l.b16 %v764
        %v2568 = vunpack.c.h.b16 %v764
        %v2569 = vunpack.c.l.b16 %v765
        %v2570 = vunpack.c.h.b16 %v765
        %v2571 = vunpack.c.l.b16 %v766
        %v2572 = vunpack.c.h.b16 %v766
        %v2573 = vunpack.c.l.b16 %v767
        %v2574 = vunpack.c.h.b16 %v767
        %v2575 = vunpack.c.l.b16 %v768
        %v2576 = vunpack.c.h.b16 %v768
        %v2577 = vunpack.c.l.b16 %v769
        %v2578 = vunpack.c.h.b16 %v769
        %v2579 = vunpack.c.l.b16 %v770
        %v2580 = vunpack.c.h.b16 %v770
        %v2581 = vunpack.c.l.b16 %v771
        %v2582 = vunpack.c.h.b16 %v771
        %v2583 = vunpack.c.l.b16 %v772
        %v2584 = vunpack.c.h.b16 %v772
        %v2585 = vunpack.c.l.b16 %v773
        %v2586 = vunpack.c.h.b16 %v773
        %v2587 = vunpack.c.l.b16 %v774
        %v2588 = vunpack.c.h.b16 %v774
        %v2589 = vunpack.c.l.b16 %v775
        %v2590 = vunpack.c.h.b16 %v775
        %v2591 = vunpack.c.l.b16 %v776
        %v2592 = vunpack.c.h.b16 %v776
        %v2593 = vunpack.c.l.b16 %v777
        %v2594 = vunpack.c.h.b16 %v777
        %v2595 = vunpack.c.l.b16 %v778
        %v2596 = vunpack.c.h.b16 %v778
        %v2597 = vunpack.c.l.b16 %v779
        %v2598 = vunpack.c.h.b16 %v779
        %v2599 = vunpack.c.l.b16 %v780
        %v2600 = vunpack.c.h.b16 %v780
        %v2601 = vunpack.c.l.b16 %v781
        %v2602 = vunpack.c.h.b16 %v781
        %v2603 = vunpack.c.l.b16 %v782
        %v2604 = vunpack.c.h.b16 %v782
        %v2605 = vunpack.c.l.b16 %v783
        %v2606 = vunpack.c.h.b16 %v783
        %v2607 = vunpack.c.l.b16 %v784
        %v2608 = vunpack.c.h.b16 %v784
        %v2609 = vunpack.c.l.b16 %v785
        %v2610 = vunpack.c.h.b16 %v785
        %v2611 = vunpack.c.l.b16 %v786
        %v2612 = vunpack.c.h.b16 %v786
        %v2613 = vunpack.c.l.b16 %v787
        %v2614 = vunpack.c.h.b16 %v787
        %v2615 = vunpack.c.l.b16 %v788
        %v2616 = vunpack.c.h.b16 %v788
        %v2617 = vunpack.c.l.b16 %v789
        %v2618 = vunpack.c.h.b16 %v789
        %v2619 = vunpack.c.l.b16 %v790
        %v2620 = vunpack.c.h.b16 %v790
        %v2621 = vunpack.c.l.b16 %v791
        %v2622 = vunpack.c.h.b16 %v791
        %v2623 = vunpack.c.l.b16 %v792
        %v2624 = vunpack.c.h.b16 %v792
        %v2625 = vunpack.c.l.b16 %v793
        %v2626 = vunpack.c.h.b16 %v793
        %v2627 = vunpack.c.l.b16 %v794
        %v2628 = vunpack.c.h.b16 %v794
        %v2629 = vunpack.c.l.b16 %v795
        %v2630 = vunpack.c.h.b16 %v795
        %v2631 = vunpack.c.l.b16 %v796
        %v2632 = vunpack.c.h.b16 %v796
        %v2633 = vunpack.c.l.b16 %v797
        %v2634 = vunpack.c.h.b16 %v797
        %v2635 = vunpack.c.l.b16 %v798
        %v2636 = vunpack.c.h.b16 %v798
        %v2637 = vunpack.c.l.b16 %v799
        %v2638 = vunpack.c.h.b16 %v799
        %v2639 = vunpack.c.l.b16 %v800
        %v2640 = vunpack.c.h.b16 %v800
        %v2641 = vunpack.c.l.b16 %v801
        %v2642 = vunpack.c.h.b16 %v801
        %v2643 = vunpack.c.l.b16 %v802
        %v2644 = vunpack.c.h.b16 %v802
        %v2645 = vunpack.c.l.b16 %v803
        %v2646 = vunpack.c.h.b16 %v803
        %v2647 = vunpack.c.l.b16 %v804
        %v2648 = vunpack.c.h.b16 %v804
        %v2649 = vunpack.c.l.b16 %v805
        %v2650 = vunpack.c.h.b16 %v805
        %v2651 = vunpack.c.l.b16 %v806
        %v2652 = vunpack.c.h.b16 %v806
        %v2653 = vunpack.c.l.b16 %v807
        %v2654 = vunpack.c.h.b16 %v807
        %v2655 = vunpack.c.l.b16 %v808
        %v2656 = vunpack.c.h.b16 %v808
        %v2657 = vunpack.c.l.b16 %v809
        %v2658 = vunpack.c.h.b16 %v809
        %v2659 = vunpack.c.l.b16 %v810
        %v2660 = vunpack.c.h.b16 %v810
        %v2661 = vunpack.c.l.b16 %v811
        %v2662 = vunpack.c.h.b16 %v811
        %v2663 = vunpack.c.l.b16 %v812
        %v2664 = vunpack.c.h.b16 %v812
        %v2665 = vunpack.c.l.b16 %v813
        %v2666 = vunpack.c.h.b16 %v813
        %v2667 = vunpack.c.l.b16 %v814
        %v2668 = vunpack.c.h.b16 %v814
        %v2669 = vunpack.c.l.b16 %v815
        %v2670 = vunpack.c.h.b16 %v815
        %v2671 = vunpack.c.l.b16 %v816
        %v2672 = vunpack.c.h.b16 %v816
        %v2673 = vunpack.c.l.b16 %v817
        %v2674 = vunpack.c.h.b16 %v817
        %v2675 = vunpack.c.l.b16 %v818
        %v2676 = vunpack.c.h.b16 %v818
        %v2677 = vunpack.c.l.b16 %v819
        %v2678 = vunpack.c.h.b16 %v819
        %v2679 = vunpack.c.l.b16 %v820
        %v2680 = vunpack.c.h.b16 %v820
        %v2681 = vunpack.c.l.b16 %v821
        %v2682 = vunpack.c.h.b16 %v821
        %v2683 = vunpack.c.l.b16 %v822
        %v2684 = vunpack.c.h.b16 %v822
        %v2685 = vunpack.c.l.b16 %v823
        %v2686 = vunpack.c.h.b16 %v823
        %v2687 = vunpack.c.l.b16 %v824
        %v2688 = vunpack.c.h.b16 %v824
        %v2689 = vunpack.c.l.b16 %v825
        %v2690 = vunpack.c.h.b16 %v825
        %v2691 = vunpack.c.l.b16 %v826
        %v2692 = vunpack.c.h.b16 %v826
        %v2693 = vpack.c.b16 %v1673, %v1669
        %v2694 = vpack.c.b16 %v1674, %v1670
        %v2695 = vpack.c.b16 %v1675, %v1671
        %v2696 = vpack.c.b16 %v1676, %v1672
        %v2697 = vpack.c.b16 %v1681, %v1677
        %v2698 = vpack.c.b16 %v1682, %v1678
        %v2699 = vpack.c.b16 %v1683, %v1679
        %v2700 = vpack.c.b16 %v1684, %v1680
        %v2701 = vpack.c.b16 %v1689, %v1685
        %v2702 = vpack.c.b16 %v1690, %v1686
        %v2703 = vpack.c.b16 %v1691, %v1687
        %v2704 = vpack.c.b16 %v1692, %v1688
        %v2705 = vpack.c.b16 %v1697, %v1693
        %v2706 = vpack.c.b16 %v1698, %v1694
        %v2707 = vpack.c.b16 %v1699, %v1695
        %v2708 = vpack.c.b16 %v1700, %v1696
        %v2709 = vpack.c.b16 %v1705, %v1701
        %v2710 = vpack.c.b16 %v1706, %v1702
        %v2711 = vpack.c.b16 %v1707, %v1703
        %v2712 = vpack.c.b16 %v1708, %v1704
        %v2713 = vpack.c.b16 %v1713, %v1709
        %v2714 = vpack.c.b16 %v1714, %v1710
        %v2715 = vpack.c.b16 %v1715, %v1711
        %v2716 = vpack.c.b16 %v1716, %v1712
        %v2717 = vpack.c.b16 %v1721, %v1717
        %v2718 = vpack.c.b16 %v1722, %v1718
        %v2719 = vpack.c.b16 %v1723, %v1719
        %v2720 = vpack.c.b16 %v1724, %v1720
        %v2721 = vpack.c.b16 %v1729, %v1725
        %v2722 = vpack.c.b16 %v1730, %v1726
        %v2723 = vpack.c.b16 %v1731, %v1727
        %v2724 = vpack.c.b16 %v1732, %v1728
        %v2725 = vpack.c.b16 %v1737, %v1733
        %v2726 = vpack.c.b16 %v1738, %v1734
        %v2727 = vpack.c.b16 %v1739, %v1735
        %v2728 = vpack.c.b16 %v1740, %v1736
        %v2729 = vpack.c.b16 %v1745, %v1741
        %v2730 = vpack.c.b16 %v1746, %v1742
        %v2731 = vpack.c.b16 %v1747, %v1743
        %v2732 = vpack.c.b16 %v1748, %v1744
        %v2733 = vpack.c.b16 %v1753, %v1749
        %v2734 = vpack.c.b16 %v1754, %v1750
        %v2735 = vpack.c.b16 %v1755, %v1751
        %v2736 = vpack.c.b16 %v1756, %v1752
        %v2737 = vpack.c.b16 %v1761, %v1757
        %v2738 = vpack.c.b16 %v1762, %v1758
        %v2739 = vpack.c.b16 %v1763, %v1759
        %v2740 = vpack.c.b16 %v1764, %v1760
        %v2741 = vpack.c.b16 %v1769, %v1765
        %v2742 = vpack.c.b16 %v1770, %v1766
        %v2743 = vpack.c.b16 %v1771, %v1767
        %v2744 = vpack.c.b16 %v1772, %v1768
        %v2745 = vpack.c.b16 %v1777, %v1773
        %v2746 = vpack.c.b16 %v1778, %v1774
        %v2747 = vpack.c.b16 %v1779, %v1775
        %v2748 = vpack.c.b16 %v1780, %v1776
        %v2749 = vpack.c.b16 %v1785, %v1781
        %v2750 = vpack.c.b16 %v1786, %v1782
        %v2751 = vpack.c.b16 %v1787, %v1783
        %v2752 = vpack.c.b16 %v1788, %v1784
        %v2753 = vpack.c.b16 %v1793, %v1789
        %v2754 = vpack.c.b16 %v1794, %v1790
        %v2755 = vpack.c.b16 %v1795, %v1791
        %v2756 = vpack.c.b16 %v1796, %v1792
        %v2757 = vpack.c.b16 %v1801, %v1797
        %v2758 = vpack.c.b16 %v1802, %v1798
        %v2759 = vpack.c.b16 %v1803, %v1799
        %v2760 = vpack.c.b16 %v1804, %v1800
        %v2761 = vpack.c.b16 %v1809, %v1805
        %v2762 = vpack.c.b16 %v1810, %v1806
        %v2763 = vpack.c.b16 %v1811, %v1807
        %v2764 = vpack.c.b16 %v1812, %v1808
        %v2765 = vpack.c.b16 %v1817, %v1813
        %v2766 = vpack.c.b16 %v1818, %v1814
        %v2767 = vpack.c.b16 %v1819, %v1815
        %v2768 = vpack.c.b16 %v1820, %v1816
        %v2769 = vpack.c.b16 %v1825, %v1821
        %v2770 = vpack.c.b16 %v1826, %v1822
        %v2771 = vpack.c.b16 %v1827, %v1823
        %v2772 = vpack.c.b16 %v1828, %v1824
        %v2773 = vpack.c.b16 %v1833, %v1829
        %v2774 = vpack.c.b16 %v1834, %v1830
        %v2775 = vpack.c.b16 %v1835, %v1831
        %v2776 = vpack.c.b16 %v1836, %v1832
        %v2777 = vpack.c.b16 %v1841, %v1837
        %v2778 = vpack.c.b16 %v1842, %v1838
        %v2779 = vpack.c.b16 %v1843, %v1839
        %v2780 = vpack.c.b16 %v1844, %v1840
        %v2781 = vpack.c.b16 %v1849, %v1845
        %v2782 = vpack.c.b16 %v1850, %v1846
        %v2783 = vpack.c.b16 %v1851, %v1847
        %v2784 = vpack.c.b16 %v1852, %v1848
        %v2785 = vpack.c.b16 %v1857, %v1853
        %v2786 = vpack.c.b16 %v1858, %v1854
        %v2787 = vpack.c.b16 %v1859, %v1855
        %v2788 = vpack.c.b16 %v1860, %v1856
        %v2789 = vpack.c.b16 %v1865, %v1861
        %v2790 = vpack.c.b16 %v1866, %v1862
        %v2791 = vpack.c.b16 %v1867, %v1863
        %v2792 = vpack.c.b16 %v1868, %v1864
        %v2793 = vpack.c.b16 %v1873, %v1869
        %v2794 = vpack.c.b16 %v1874, %v1870
        %v2795 = vpack.c.b16 %v1875, %v1871
        %v2796 = vpack.c.b16 %v1876, %v1872
        %v2797 = vpack.c.b16 %v1881, %v1877
        %v2798 = vpack.c.b16 %v1882, %v1878
        %v2799 = vpack.c.b16 %v1883, %v1879
        %v2800 = vpack.c.b16 %v1884, %v1880
        %v2801 = vpack.c.b16 %v1889, %v1885
        %v2802 = vpack.c.b16 %v1890, %v1886
        %v2803 = vpack.c.b16 %v1891, %v1887
        %v2804 = vpack.c.b16 %v1892, %v1888
        %v2805 = vpack.c.b16 %v1897, %v1893
        %v2806 = vpack.c.b16 %v1898, %v1894
        %v2807 = vpack.c.b16 %v1899, %v1895
        %v2808 = vpack.c.b16 %v1900, %v1896
        %v2809 = vpack.c.b16 %v1905, %v1901
        %v2810 = vpack.c.b16 %v1906, %v1902
        %v2811 = vpack.c.b16 %v1907, %v1903
        %v2812 = vpack.c.b16 %v1908, %v1904
        %v2813 = vpack.c.b16 %v1913, %v1909
        %v2814 = vpack.c.b16 %v1914, %v1910
        %v2815 = vpack.c.b16 %v1915, %v1911
        %v2816 = vpack.c.b16 %v1916, %v1912
        %v2817 = vpack.c.b16 %v1921, %v1917
        %v2818 = vpack.c.b16 %v1922, %v1918
        %v2819 = vpack.c.b16 %v1923, %v1919
        %v2820 = vpack.c.b16 %v1924, %v1920
        %v2821 = vpack.c.b16 %v1929, %v1925
        %v2822 = vpack.c.b16 %v1930, %v1926
        %v2823 = vpack.c.b16 %v1931, %v1927
        %v2824 = vpack.c.b16 %v1932, %v1928
        %v2825 = vpack.c.b16 %v1937, %v1933
        %v2826 = vpack.c.b16 %v1938, %v1934
        %v2827 = vpack.c.b16 %v1939, %v1935
        %v2828 = vpack.c.b16 %v1940, %v1936
        %v2829 = vpack.c.b16 %v1945, %v1941
        %v2830 = vpack.c.b16 %v1946, %v1942
        %v2831 = vpack.c.b16 %v1947, %v1943
        %v2832 = vpack.c.b16 %v1948, %v1944
        %v2833 = vpack.c.b16 %v1953, %v1949
        %v2834 = vpack.c.b16 %v1954, %v1950
        %v2835 = vpack.c.b16 %v1955, %v1951
        %v2836 = vpack.c.b16 %v1956, %v1952
        %v2837 = vpack.c.b16 %v1961, %v1957
        %v2838 = vpack.c.b16 %v1962, %v1958
        %v2839 = vpack.c.b16 %v1963, %v1959
        %v2840 = vpack.c.b16 %v1964, %v1960
        %v2841 = vpack.c.b16 %v1969, %v1965
        %v2842 = vpack.c.b16 %v1970, %v1966
        %v2843 = vpack.c.b16 %v1971, %v1967
        %v2844 = vpack.c.b16 %v1972, %v1968
        %v2845 = vpack.c.b16 %v1977, %v1973
        %v2846 = vpack.c.b16 %v1978, %v1974
        %v2847 = vpack.c.b16 %v1979, %v1975
        %v2848 = vpack.c.b16 %v1980, %v1976
        %v2849 = vpack.c.b16 %v1985, %v1981
        %v2850 = vpack.c.b16 %v1986, %v1982
        %v2851 = vpack.c.b16 %v1987, %v1983
        %v2852 = vpack.c.b16 %v1988, %v1984
        %v2853 = vpack.c.b16 %v1993, %v1989
        %v2854 = vpack.c.b16 %v1994, %v1990
        %v2855 = vpack.c.b16 %v1995, %v1991
        %v2856 = vpack.c.b16 %v1996, %v1992
        %v2857 = vpack.c.b16 %v2001, %v1997
        %v2858 = vpack.c.b16 %v2002, %v1998
        %v2859 = vpack.c.b16 %v2003, %v1999
        %v2860 = vpack.c.b16 %v2004, %v2000
        %v2861 = vpack.c.b16 %v2009, %v2005
        %v2862 = vpack.c.b16 %v2010, %v2006
        %v2863 = vpack.c.b16 %v2011, %v2007
        %v2864 = vpack.c.b16 %v2012, %v2008
        %v2865 = vpack.c.b16 %v2017, %v2013
        %v2866 = vpack.c.b16 %v2018, %v2014
        %v2867 = vpack.c.b16 %v2019, %v2015
        %v2868 = vpack.c.b16 %v2020, %v2016
        %v2869 = vpack.c.b16 %v2025, %v2021
        %v2870 = vpack.c.b16 %v2026, %v2022
        %v2871 = vpack.c.b16 %v2027, %v2023
        %v2872 = vpack.c.b16 %v2028, %v2024
        %v2873 = vpack.c.b16 %v2033, %v2029
        %v2874 = vpack.c.b16 %v2034, %v2030
        %v2875 = vpack.c.b16 %v2035, %v2031
        %v2876 = vpack.c.b16 %v2036, %v2032
        %v2877 = vpack.c.b16 %v2041, %v2037
        %v2878 = vpack.c.b16 %v2042, %v2038
        %v2879 = vpack.c.b16 %v2043, %v2039
        %v2880 = vpack.c.b16 %v2044, %v2040
        %v2881 = vpack.c.b16 %v2049, %v2045
        %v2882 = vpack.c.b16 %v2050, %v2046
        %v2883 = vpack.c.b16 %v2051, %v2047
        %v2884 = vpack.c.b16 %v2052, %v2048
        %v2885 = vpack.c.b16 %v2057, %v2053
        %v2886 = vpack.c.b16 %v2058, %v2054
        %v2887 = vpack.c.b16 %v2059, %v2055
        %v2888 = vpack.c.b16 %v2060, %v2056
        %v2889 = vpack.c.b16 %v2065, %v2061
        %v2890 = vpack.c.b16 %v2066, %v2062
        %v2891 = vpack.c.b16 %v2067, %v2063
        %v2892 = vpack.c.b16 %v2068, %v2064
        %v2893 = vpack.c.b16 %v2073, %v2069
        %v2894 = vpack.c.b16 %v2074, %v2070
        %v2895 = vpack.c.b16 %v2075, %v2071
        %v2896 = vpack.c.b16 %v2076, %v2072
        %v2897 = vpack.c.b16 %v2081, %v2077
        %v2898 = vpack.c.b16 %v2082, %v2078
        %v2899 = vpack.c.b16 %v2083, %v2079
        %v2900 = vpack.c.b16 %v2084, %v2080
        %v2901 = vpack.c.b16 %v2089, %v2085
        %v2902 = vpack.c.b16 %v2090, %v2086
        %v2903 = vpack.c.b16 %v2091, %v2087
        %v2904 = vpack.c.b16 %v2092, %v2088
        %v2905 = vpack.c.b16 %v2097, %v2093
        %v2906 = vpack.c.b16 %v2098, %v2094
        %v2907 = vpack.c.b16 %v2099, %v2095
        %v2908 = vpack.c.b16 %v2100, %v2096
        %v2909 = vpack.c.b16 %v2105, %v2101
        %v2910 = vpack.c.b16 %v2106, %v2102
        %v2911 = vpack.c.b16 %v2107, %v2103
        %v2912 = vpack.c.b16 %v2108, %v2104
        %v2913 = vpack.c.b16 %v2113, %v2109
        %v2914 = vpack.c.b16 %v2114, %v2110
        %v2915 = vpack.c.b16 %v2115, %v2111
        %v2916 = vpack.c.b16 %v2116, %v2112
        %v2917 = vpack.c.b16 %v2121, %v2117
        %v2918 = vpack.c.b16 %v2122, %v2118
        %v2919 = vpack.c.b16 %v2123, %v2119
        %v2920 = vpack.c.b16 %v2124, %v2120
        %v2921 = vpack.c.b16 %v2129, %v2125
        %v2922 = vpack.c.b16 %v2130, %v2126
        %v2923 = vpack.c.b16 %v2131, %v2127
        %v2924 = vpack.c.b16 %v2132, %v2128
        %v2925 = vpack.c.b16 %v2137, %v2133
        %v2926 = vpack.c.b16 %v2138, %v2134
        %v2927 = vpack.c.b16 %v2139, %v2135
        %v2928 = vpack.c.b16 %v2140, %v2136
        %v2929 = vpack.c.b16 %v2145, %v2141
        %v2930 = vpack.c.b16 %v2146, %v2142
        %v2931 = vpack.c.b16 %v2147, %v2143
        %v2932 = vpack.c.b16 %v2148, %v2144
        %v2933 = vpack.c.b16 %v2153, %v2149
        %v2934 = vpack.c.b16 %v2154, %v2150
        %v2935 = vpack.c.b16 %v2155, %v2151
        %v2936 = vpack.c.b16 %v2156, %v2152
        %v2937 = vpack.c.b16 %v2161, %v2157
        %v2938 = vpack.c.b16 %v2162, %v2158
        %v2939 = vpack.c.b16 %v2163, %v2159
        %v2940 = vpack.c.b16 %v2164, %v2160
        %v2941 = vpack.c.b16 %v2169, %v2165
        %v2942 = vpack.c.b16 %v2170, %v2166
        %v2943 = vpack.c.b16 %v2171, %v2167
        %v2944 = vpack.c.b16 %v2172, %v2168
        %v2945 = vpack.c.b16 %v2177, %v2173
        %v2946 = vpack.c.b16 %v2178, %v2174
        %v2947 = vpack.c.b16 %v2179, %v2175
        %v2948 = vpack.c.b16 %v2180, %v2176
        %v2949 = vpack.c.b16 %v2185, %v2181
        %v2950 = vpack.c.b16 %v2186, %v2182
        %v2951 = vpack.c.b16 %v2187, %v2183
        %v2952 = vpack.c.b16 %v2188, %v2184
        %v2953 = vpack.c.b16 %v2193, %v2189
        %v2954 = vpack.c.b16 %v2194, %v2190
        %v2955 = vpack.c.b16 %v2195, %v2191
        %v2956 = vpack.c.b16 %v2196, %v2192
        %v2957 = vpack.c.b16 %v2201, %v2197
        %v2958 = vpack.c.b16 %v2202, %v2198
        %v2959 = vpack.c.b16 %v2203, %v2199
        %v2960 = vpack.c.b16 %v2204, %v2200
        %v2961 = vpack.c.b16 %v2209, %v2205
        %v2962 = vpack.c.b16 %v2210, %v2206
        %v2963 = vpack.c.b16 %v2211, %v2207
        %v2964 = vpack.c.b16 %v2212, %v2208
        %v2965 = vpack.c.b16 %v2217, %v2213
        %v2966 = vpack.c.b16 %v2218, %v2214
        %v2967 = vpack.c.b16 %v2219, %v2215
        %v2968 = vpack.c.b16 %v2220, %v2216
        %v2969 = vpack.c.b16 %v2225, %v2221
        %v2970 = vpack.c.b16 %v2226, %v2222
        %v2971 = vpack.c.b16 %v2227, %v2223
        %v2972 = vpack.c.b16 %v2228, %v2224
        %v2973 = vpack.c.b16 %v2233, %v2229
        %v2974 = vpack.c.b16 %v2234, %v2230
        %v2975 = vpack.c.b16 %v2235, %v2231
        %v2976 = vpack.c.b16 %v2236, %v2232
        %v2977 = vpack.c.b16 %v2241, %v2237
        %v2978 = vpack.c.b16 %v2242, %v2238
        %v2979 = vpack.c.b16 %v2243, %v2239
        %v2980 = vpack.c.b16 %v2244, %v2240
        %v2981 = vpack.c.b16 %v2249, %v2245
        %v2982 = vpack.c.b16 %v2250, %v2246
        %v2983 = vpack.c.b16 %v2251, %v2247
        %v2984 = vpack.c.b16 %v2252, %v2248
        %v2985 = vpack.c.b16 %v2257, %v2253
        %v2986 = vpack.c.b16 %v2258, %v2254
        %v2987 = vpack.c.b16 %v2259, %v2255
        %v2988 = vpack.c.b16 %v2260, %v2256
        %v2989 = vpack.c.b16 %v2265, %v2261
        %v2990 = vpack.c.b16 %v2266, %v2262
        %v2991 = vpack.c.b16 %v2267, %v2263
        %v2992 = vpack.c.b16 %v2268, %v2264
        %v2993 = vpack.c.b16 %v2273, %v2269
        %v2994 = vpack.c.b16 %v2274, %v2270
        %v2995 = vpack.c.b16 %v2275, %v2271
        %v2996 = vpack.c.b16 %v2276, %v2272
        %v2997 = vpack.c.b16 %v2281, %v2277
        %v2998 = vpack.c.b16 %v2282, %v2278
        %v2999 = vpack.c.b16 %v2283, %v2279
        %v3000 = vpack.c.b16 %v2284, %v2280
        %v3001 = vpack.c.b16 %v2289, %v2285
        %v3002 = vpack.c.b16 %v2290, %v2286
        %v3003 = vpack.c.b16 %v2291, %v2287
        %v3004 = vpack.c.b16 %v2292, %v2288
        %v3005 = vpack.c.b16 %v2297, %v2293
        %v3006 = vpack.c.b16 %v2298, %v2294
        %v3007 = vpack.c.b16 %v2299, %v2295
        %v3008 = vpack.c.b16 %v2300, %v2296
        %v3009 = vpack.c.b16 %v2305, %v2301
        %v3010 = vpack.c.b16 %v2306, %v2302
        %v3011 = vpack.c.b16 %v2307, %v2303
        %v3012 = vpack.c.b16 %v2308, %v2304
        %v3013 = vpack.c.b16 %v2313, %v2309
        %v3014 = vpack.c.b16 %v2314, %v2310
        %v3015 = vpack.c.b16 %v2315, %v2311
        %v3016 = vpack.c.b16 %v2316, %v2312
        %v3017 = vpack.c.b16 %v2321, %v2317
        %v3018 = vpack.c.b16 %v2322, %v2318
        %v3019 = vpack.c.b16 %v2323, %v2319
        %v3020 = vpack.c.b16 %v2324, %v2320
        %v3021 = vpack.c.b16 %v2329, %v2325
        %v3022 = vpack.c.b16 %v2330, %v2326
        %v3023 = vpack.c.b16 %v2331, %v2327
        %v3024 = vpack.c.b16 %v2332, %v2328
        %v3025 = vpack.c.b16 %v2337, %v2333
        %v3026 = vpack.c.b16 %v2338, %v2334
        %v3027 = vpack.c.b16 %v2339, %v2335
        %v3028 = vpack.c.b16 %v2340, %v2336
        %v3029 = vpack.c.b16 %v2345, %v2341
        %v3030 = vpack.c.b16 %v2346, %v2342
        %v3031 = vpack.c.b16 %v2347, %v2343
        %v3032 = vpack.c.b16 %v2348, %v2344
        %v3033 = vpack.c.b16 %v2353, %v2349
        %v3034 = vpack.c.b16 %v2354, %v2350
        %v3035 = vpack.c.b16 %v2355, %v2351
        %v3036 = vpack.c.b16 %v2356, %v2352
        %v3037 = vpack.c.b16 %v2361, %v2357
        %v3038 = vpack.c.b16 %v2362, %v2358
        %v3039 = vpack.c.b16 %v2363, %v2359
        %v3040 = vpack.c.b16 %v2364, %v2360
        %v3041 = vpack.c.b16 %v2369, %v2365
        %v3042 = vpack.c.b16 %v2370, %v2366
        %v3043 = vpack.c.b16 %v2371, %v2367
        %v3044 = vpack.c.b16 %v2372, %v2368
        %v3045 = vpack.c.b16 %v2377, %v2373
        %v3046 = vpack.c.b16 %v2378, %v2374
        %v3047 = vpack.c.b16 %v2379, %v2375
        %v3048 = vpack.c.b16 %v2380, %v2376
        %v3049 = vpack.c.b16 %v2385, %v2381
        %v3050 = vpack.c.b16 %v2386, %v2382
        %v3051 = vpack.c.b16 %v2387, %v2383
        %v3052 = vpack.c.b16 %v2388, %v2384
        %v3053 = vpack.c.b16 %v2393, %v2389
        %v3054 = vpack.c.b16 %v2394, %v2390
        %v3055 = vpack.c.b16 %v2395, %v2391
        %v3056 = vpack.c.b16 %v2396, %v2392
        %v3057 = vpack.c.b16 %v2401, %v2397
        %v3058 = vpack.c.b16 %v2402, %v2398
        %v3059 = vpack.c.b16 %v2403, %v2399
        %v3060 = vpack.c.b16 %v2404, %v2400
        %v3061 = vpack.c.b16 %v2409, %v2405
        %v3062 = vpack.c.b16 %v2410, %v2406
        %v3063 = vpack.c.b16 %v2411, %v2407
        %v3064 = vpack.c.b16 %v2412, %v2408
        %v3065 = vpack.c.b16 %v2417, %v2413
        %v3066 = vpack.c.b16 %v2418, %v2414
        %v3067 = vpack.c.b16 %v2419, %v2415
        %v3068 = vpack.c.b16 %v2420, %v2416
        %v3069 = vpack.c.b16 %v2425, %v2421
        %v3070 = vpack.c.b16 %v2426, %v2422
        %v3071 = vpack.c.b16 %v2427, %v2423
        %v3072 = vpack.c.b16 %v2428, %v2424
        %v3073 = vpack.c.b16 %v2433, %v2429
        %v3074 = vpack.c.b16 %v2434, %v2430
        %v3075 = vpack.c.b16 %v2435, %v2431
        %v3076 = vpack.c.b16 %v2436, %v2432
        %v3077 = vpack.c.b16 %v2441, %v2437
        %v3078 = vpack.c.b16 %v2442, %v2438
        %v3079 = vpack.c.b16 %v2443, %v2439
        %v3080 = vpack.c.b16 %v2444, %v2440
        %v3081 = vpack.c.b16 %v2449, %v2445
        %v3082 = vpack.c.b16 %v2450, %v2446
        %v3083 = vpack.c.b16 %v2451, %v2447
        %v3084 = vpack.c.b16 %v2452, %v2448
        %v3085 = vpack.c.b16 %v2457, %v2453
        %v3086 = vpack.c.b16 %v2458, %v2454
        %v3087 = vpack.c.b16 %v2459, %v2455
        %v3088 = vpack.c.b16 %v2460, %v2456
        %v3089 = vpack.c.b16 %v2465, %v2461
        %v3090 = vpack.c.b16 %v2466, %v2462
        %v3091 = vpack.c.b16 %v2467, %v2463
        %v3092 = vpack.c.b16 %v2468, %v2464
        %v3093 = vpack.c.b16 %v2473, %v2469
        %v3094 = vpack.c.b16 %v2474, %v2470
        %v3095 = vpack.c.b16 %v2475, %v2471
        %v3096 = vpack.c.b16 %v2476, %v2472
        %v3097 = vpack.c.b16 %v2481, %v2477
        %v3098 = vpack.c.b16 %v2482, %v2478
        %v3099 = vpack.c.b16 %v2483, %v2479
        %v3100 = vpack.c.b16 %v2484, %v2480
        %v3101 = vpack.c.b16 %v2489, %v2485
        %v3102 = vpack.c.b16 %v2490, %v2486
        %v3103 = vpack.c.b16 %v2491, %v2487
        %v3104 = vpack.c.b16 %v2492, %v2488
        %v3105 = vpack.c.b16 %v2497, %v2493
        %v3106 = vpack.c.b16 %v2498, %v2494
        %v3107 = vpack.c.b16 %v2499, %v2495
        %v3108 = vpack.c.b16 %v2500, %v2496
        %v3109 = vpack.c.b16 %v2505, %v2501
        %v3110 = vpack.c.b16 %v2506, %v2502
        %v3111 = vpack.c.b16 %v2507, %v2503
        %v3112 = vpack.c.b16 %v2508, %v2504
        %v3113 = vpack.c.b16 %v2513, %v2509
        %v3114 = vpack.c.b16 %v2514, %v2510
        %v3115 = vpack.c.b16 %v2515, %v2511
        %v3116 = vpack.c.b16 %v2516, %v2512
        %v3117 = vpack.c.b16 %v2521, %v2517
        %v3118 = vpack.c.b16 %v2522, %v2518
        %v3119 = vpack.c.b16 %v2523, %v2519
        %v3120 = vpack.c.b16 %v2524, %v2520
        %v3121 = vpack.c.b16 %v2529, %v2525
        %v3122 = vpack.c.b16 %v2530, %v2526
        %v3123 = vpack.c.b16 %v2531, %v2527
        %v3124 = vpack.c.b16 %v2532, %v2528
        %v3125 = vpack.c.b16 %v2537, %v2533
        %v3126 = vpack.c.b16 %v2538, %v2534
        %v3127 = vpack.c.b16 %v2539, %v2535
        %v3128 = vpack.c.b16 %v2540, %v2536
        %v3129 = vpack.c.b16 %v2545, %v2541
        %v3130 = vpack.c.b16 %v2546, %v2542
        %v3131 = vpack.c.b16 %v2547, %v2543
        %v3132 = vpack.c.b16 %v2548, %v2544
        %v3133 = vpack.c.b16 %v2553, %v2549
        %v3134 = vpack.c.b16 %v2554, %v2550
        %v3135 = vpack.c.b16 %v2555, %v2551
        %v3136 = vpack.c.b16 %v2556, %v2552
        %v3137 = vpack.c.b16 %v2561, %v2557
        %v3138 = vpack.c.b16 %v2562, %v2558
        %v3139 = vpack.c.b16 %v2563, %v2559
        %v3140 = vpack.c.b16 %v2564, %v2560
        %v3141 = vpack.c.b16 %v2569, %v2565
        %v3142 = vpack.c.b16 %v2570, %v2566
        %v3143 = vpack.c.b16 %v2571, %v2567
        %v3144 = vpack.c.b16 %v2572, %v2568
        %v3145 = vpack.c.b16 %v2577, %v2573
        %v3146 = vpack.c.b16 %v2578, %v2574
        %v3147 = vpack.c.b16 %v2579, %v2575
        %v3148 = vpack.c.b16 %v2580, %v2576
        %v3149 = vpack.c.b16 %v2585, %v2581
        %v3150 = vpack.c.b16 %v2586, %v2582
        %v3151 = vpack.c.b16 %v2587, %v2583
        %v3152 = vpack.c.b16 %v2588, %v2584
        %v3153 = vpack.c.b16 %v2593, %v2589
        %v3154 = vpack.c.b16 %v2594, %v2590
        %v3155 = vpack.c.b16 %v2595, %v2591
        %v3156 = vpack.c.b16 %v2596, %v2592
        %v3157 = vpack.c.b16 %v2601, %v2597
        %v3158 = vpack.c.b16 %v2602, %v2598
        %v3159 = vpack.c.b16 %v2603, %v2599
        %v3160 = vpack.c.b16 %v2604, %v2600
        %v3161 = vpack.c.b16 %v2609, %v2605
        %v3162 = vpack.c.b16 %v2610, %v2606
        %v3163 = vpack.c.b16 %v2611, %v2607
        %v3164 = vpack.c.b16 %v2612, %v2608
        %v3165 = vpack.c.b16 %v2617, %v2613
        %v3166 = vpack.c.b16 %v2618, %v2614
        %v3167 = vpack.c.b16 %v2619, %v2615
        %v3168 = vpack.c.b16 %v2620, %v2616
        %v3169 = vpack.c.b16 %v2625, %v2621
        %v3170 = vpack.c.b16 %v2626, %v2622
        %v3171 = vpack.c.b16 %v2627, %v2623
        %v3172 = vpack.c.b16 %v2628, %v2624
        %v3173 = vpack.c.b16 %v2633, %v2629
        %v3174 = vpack.c.b16 %v2634, %v2630
        %v3175 = vpack.c.b16 %v2635, %v2631
        %v3176 = vpack.c.b16 %v2636, %v2632
        %v3177 = vpack.c.b16 %v2641, %v2637
        %v3178 = vpack.c.b16 %v2642, %v2638
        %v3179 = vpack.c.b16 %v2643, %v2639
        %v3180 = vpack.c.b16 %v2644, %v2640
        %v3181 = vpack.c.b16 %v2649, %v2645
        %v3182 = vpack.c.b16 %v2650, %v2646
        %v3183 = vpack.c.b16 %v2651, %v2647
        %v3184 = vpack.c.b16 %v2652, %v2648
        %v3185 = vpack.c.b16 %v2657, %v2653
        %v3186 = vpack.c.b16 %v2658, %v2654
        %v3187 = vpack.c.b16 %v2659, %v2655
        %v3188 = vpack.c.b16 %v2660, %v2656
        %v3189 = vpack.c.b16 %v2665, %v2661
        %v3190 = vpack.c.b16 %v2666, %v2662
        %v3191 = vpack.c.b16 %v2667, %v2663
        %v3192 = vpack.c.b16 %v2668, %v2664
        %v3193 = vpack.c.b16 %v2673, %v2669
        %v3194 = vpack.c.b16 %v2674, %v2670
        %v3195 = vpack.c.b16 %v2675, %v2671
        %v3196 = vpack.c.b16 %v2676, %v2672
        %v3197 = vpack.c.b16 %v2681, %v2677
        %v3198 = vpack.c.b16 %v2682, %v2678
        %v3199 = vpack.c.b16 %v2683, %v2679
        %v3200 = vpack.c.b16 %v2684, %v2680
        %v3201 = vpack.c.b16 %v2689, %v2685
        %v3202 = vpack.c.b16 %v2690, %v2686
        %v3203 = vpack.c.b16 %v2691, %v2687
        %v3204 = vpack.c.b16 %v2692, %v2688
        %3717 = vmatpush.bf16.msra.mxu0 %v2721
        %3718 = vmatpush.bf16.msra.mxu0 %v2717
        %3719 = vmatpush.bf16.msra.mxu0 %v2713
        %3720 = vmatpush.bf16.msra.mxu0 %v2709
        %3721 = vmatpush.bf16.msra.mxu0 %v2705
        %3722 = vmatpush.bf16.msra.mxu0 %v2701
        %3723 = vmatpush.bf16.msra.mxu0 %v2697
        %3724 = vmatpush.bf16.msra.mxu0 %v2693
        %3725 = vmatmul.bf16.gmra.mxu0 %v1029
        %v3726 = vpop.f32.mrf.mxu0
        %v3727 = vadd.f32 %v829, %v3726
        %v3728 = vpop.f32.mrf.mxu0
        %v3729 = vadd.f32 %v829, %v3728
        %3730 = vmatmul.bf16.gmra.mxu0 %v1045
        %v3731 = vpop.f32.mrf.mxu0
        %v3732 = vadd.f32 %v829, %v3731
        %v3733 = vpop.f32.mrf.mxu0
        %v3734 = vadd.f32 %v829, %v3733
        %3735 = vmatmul.bf16.gmra.mxu0 %v1061
        %v3736 = vpop.f32.mrf.mxu0
        %v3737 = vadd.f32 %v829, %v3736
        %v3738 = vpop.f32.mrf.mxu0
        %v3739 = vadd.f32 %v829, %v3738
        %3740 = vmatmul.bf16.gmra.mxu0 %v1077
        %v3741 = vpop.f32.mrf.mxu0
        %v3742 = vadd.f32 %v829, %v3741
        %v3743 = vpop.f32.mrf.mxu0
        %v3744 = vadd.f32 %v829, %v3743
        %3745 = vdwg.mxu0
        %3746 = vmatpush.bf16.msra.mxu0 %v2753
        %3747 = vmatpush.bf16.msra.mxu0 %v2749
        %3748 = vmatpush.bf16.msra.mxu0 %v2745
        %3749 = vmatpush.bf16.msra.mxu0 %v2741
        %3750 = vmatpush.bf16.msra.mxu0 %v2737
        %3751 = vmatpush.bf16.msra.mxu0 %v2733
        %3752 = vmatpush.bf16.msra.mxu0 %v2729
        %3753 = vmatpush.bf16.msra.mxu0 %v2725
        %3754 = vmatmul.bf16.gmra.mxu0 %v1030
        %v3755 = vpop.f32.mrf.mxu0
        %v3756 = vadd.f32 %v3727, %v3755
        %v3757 = vpop.f32.mrf.mxu0
        %v3758 = vadd.f32 %v3729, %v3757
        %3759 = vmatmul.bf16.gmra.mxu0 %v1046
        %v3760 = vpop.f32.mrf.mxu0
        %v3761 = vadd.f32 %v3732, %v3760
        %v3762 = vpop.f32.mrf.mxu0
        %v3763 = vadd.f32 %v3734, %v3762
        %3764 = vmatmul.bf16.gmra.mxu0 %v1062
        %v3765 = vpop.f32.mrf.mxu0
        %v3766 = vadd.f32 %v3737, %v3765
        %v3767 = vpop.f32.mrf.mxu0
        %v3768 = vadd.f32 %v3739, %v3767
        %3769 = vmatmul.bf16.gmra.mxu0 %v1078
        %v3770 = vpop.f32.mrf.mxu0
        %v3771 = vadd.f32 %v3742, %v3770
        %v3772 = vpop.f32.mrf.mxu0
        %v3773 = vadd.f32 %v3744, %v3772
        %3774 = vdwg.mxu0
        %3775 = vmatpush.bf16.msra.mxu0 %v2785
        %3776 = vmatpush.bf16.msra.mxu0 %v2781
        %3777 = vmatpush.bf16.msra.mxu0 %v2777
        %3778 = vmatpush.bf16.msra.mxu0 %v2773
        %3779 = vmatpush.bf16.msra.mxu0 %v2769
        %3780 = vmatpush.bf16.msra.mxu0 %v2765
        %3781 = vmatpush.bf16.msra.mxu0 %v2761
        %3782 = vmatpush.bf16.msra.mxu0 %v2757
        %3783 = vmatmul.bf16.gmra.mxu0 %v1031
        %v3784 = vpop.f32.mrf.mxu0
        %v3785 = vadd.f32 %v3756, %v3784
        %v3786 = vpop.f32.mrf.mxu0
        %v3787 = vadd.f32 %v3758, %v3786
        %3788 = vmatmul.bf16.gmra.mxu0 %v1047
        %v3789 = vpop.f32.mrf.mxu0
        %v3790 = vadd.f32 %v3761, %v3789
        %v3791 = vpop.f32.mrf.mxu0
        %v3792 = vadd.f32 %v3763, %v3791
        %3793 = vmatmul.bf16.gmra.mxu0 %v1063
        %v3794 = vpop.f32.mrf.mxu0
        %v3795 = vadd.f32 %v3766, %v3794
        %v3796 = vpop.f32.mrf.mxu0
        %v3797 = vadd.f32 %v3768, %v3796
        %3798 = vmatmul.bf16.gmra.mxu0 %v1079
        %v3799 = vpop.f32.mrf.mxu0
        %v3800 = vadd.f32 %v3771, %v3799
        %v3801 = vpop.f32.mrf.mxu0
        %v3802 = vadd.f32 %v3773, %v3801
        %3803 = vdwg.mxu0
        %3804 = vmatpush.bf16.msra.mxu0 %v2817
        %3805 = vmatpush.bf16.msra.mxu0 %v2813
        %3806 = vmatpush.bf16.msra.mxu0 %v2809
        %3807 = vmatpush.bf16.msra.mxu0 %v2805
        %3808 = vmatpush.bf16.msra.mxu0 %v2801
        %3809 = vmatpush.bf16.msra.mxu0 %v2797
        %3810 = vmatpush.bf16.msra.mxu0 %v2793
        %3811 = vmatpush.bf16.msra.mxu0 %v2789
        %3812 = vmatmul.bf16.gmra.mxu0 %v1032
        %v3813 = vpop.f32.mrf.mxu0
        %v3814 = vadd.f32 %v3785, %v3813
        %v3815 = vpop.f32.mrf.mxu0
        %v3816 = vadd.f32 %v3787, %v3815
        %3817 = vmatmul.bf16.gmra.mxu0 %v1048
        %v3818 = vpop.f32.mrf.mxu0
        %v3819 = vadd.f32 %v3790, %v3818
        %v3820 = vpop.f32.mrf.mxu0
        %v3821 = vadd.f32 %v3792, %v3820
        %3822 = vmatmul.bf16.gmra.mxu0 %v1064
        %v3823 = vpop.f32.mrf.mxu0
        %v3824 = vadd.f32 %v3795, %v3823
        %v3825 = vpop.f32.mrf.mxu0
        %v3826 = vadd.f32 %v3797, %v3825
        %3827 = vmatmul.bf16.gmra.mxu0 %v1080
        %v3828 = vpop.f32.mrf.mxu0
        %v3829 = vadd.f32 %v3800, %v3828
        %v3830 = vpop.f32.mrf.mxu0
        %v3831 = vadd.f32 %v3802, %v3830
        %3832 = vdwg.mxu0
        %3833 = vmatpush.bf16.msra.mxu0 %v2849
        %3834 = vmatpush.bf16.msra.mxu0 %v2845
        %3835 = vmatpush.bf16.msra.mxu0 %v2841
        %3836 = vmatpush.bf16.msra.mxu0 %v2837
        %3837 = vmatpush.bf16.msra.mxu0 %v2833
        %3838 = vmatpush.bf16.msra.mxu0 %v2829
        %3839 = vmatpush.bf16.msra.mxu0 %v2825
        %3840 = vmatpush.bf16.msra.mxu0 %v2821
        %3841 = vmatmul.bf16.gmra.mxu0 %v1033
        %v3842 = vpop.f32.mrf.mxu0
        %v3843 = vadd.f32 %v3814, %v3842
        %v3844 = vpop.f32.mrf.mxu0
        %v3845 = vadd.f32 %v3816, %v3844
        %3846 = vmatmul.bf16.gmra.mxu0 %v1049
        %v3847 = vpop.f32.mrf.mxu0
        %v3848 = vadd.f32 %v3819, %v3847
        %v3849 = vpop.f32.mrf.mxu0
        %v3850 = vadd.f32 %v3821, %v3849
        %3851 = vmatmul.bf16.gmra.mxu0 %v1065
        %v3852 = vpop.f32.mrf.mxu0
        %v3853 = vadd.f32 %v3824, %v3852
        %v3854 = vpop.f32.mrf.mxu0
        %v3855 = vadd.f32 %v3826, %v3854
        %3856 = vmatmul.bf16.gmra.mxu0 %v1081
        %v3857 = vpop.f32.mrf.mxu0
        %v3858 = vadd.f32 %v3829, %v3857
        %v3859 = vpop.f32.mrf.mxu0
        %v3860 = vadd.f32 %v3831, %v3859
        %3861 = vdwg.mxu0
        %3862 = vmatpush.bf16.msra.mxu0 %v2881
        %3863 = vmatpush.bf16.msra.mxu0 %v2877
        %3864 = vmatpush.bf16.msra.mxu0 %v2873
        %3865 = vmatpush.bf16.msra.mxu0 %v2869
        %3866 = vmatpush.bf16.msra.mxu0 %v2865
        %3867 = vmatpush.bf16.msra.mxu0 %v2861
        %3868 = vmatpush.bf16.msra.mxu0 %v2857
        %3869 = vmatpush.bf16.msra.mxu0 %v2853
        %3870 = vmatmul.bf16.gmra.mxu0 %v1034
        %v3871 = vpop.f32.mrf.mxu0
        %v3872 = vadd.f32 %v3843, %v3871
        %v3873 = vpop.f32.mrf.mxu0
        %v3874 = vadd.f32 %v3845, %v3873
        %3875 = vmatmul.bf16.gmra.mxu0 %v1050
        %v3876 = vpop.f32.mrf.mxu0
        %v3877 = vadd.f32 %v3848, %v3876
        %v3878 = vpop.f32.mrf.mxu0
        %v3879 = vadd.f32 %v3850, %v3878
        %3880 = vmatmul.bf16.gmra.mxu0 %v1066
        %v3881 = vpop.f32.mrf.mxu0
        %v3882 = vadd.f32 %v3853, %v3881
        %v3883 = vpop.f32.mrf.mxu0
        %v3884 = vadd.f32 %v3855, %v3883
        %3885 = vmatmul.bf16.gmra.mxu0 %v1082
        %v3886 = vpop.f32.mrf.mxu0
        %v3887 = vadd.f32 %v3858, %v3886
        %v3888 = vpop.f32.mrf.mxu0
        %v3889 = vadd.f32 %v3860, %v3888
        %3890 = vdwg.mxu0
        %3891 = vmatpush.bf16.msra.mxu0 %v2913
        %3892 = vmatpush.bf16.msra.mxu0 %v2909
        %3893 = vmatpush.bf16.msra.mxu0 %v2905
        %3894 = vmatpush.bf16.msra.mxu0 %v2901
        %3895 = vmatpush.bf16.msra.mxu0 %v2897
        %3896 = vmatpush.bf16.msra.mxu0 %v2893
        %3897 = vmatpush.bf16.msra.mxu0 %v2889
        %3898 = vmatpush.bf16.msra.mxu0 %v2885
        %3899 = vmatmul.bf16.gmra.mxu0 %v1035
        %v3900 = vpop.f32.mrf.mxu0
        %v3901 = vadd.f32 %v3872, %v3900
        %v3902 = vpop.f32.mrf.mxu0
        %v3903 = vadd.f32 %v3874, %v3902
        %3904 = vmatmul.bf16.gmra.mxu0 %v1051
        %v3905 = vpop.f32.mrf.mxu0
        %v3906 = vadd.f32 %v3877, %v3905
        %v3907 = vpop.f32.mrf.mxu0
        %v3908 = vadd.f32 %v3879, %v3907
        %3909 = vmatmul.bf16.gmra.mxu0 %v1067
        %v3910 = vpop.f32.mrf.mxu0
        %v3911 = vadd.f32 %v3882, %v3910
        %v3912 = vpop.f32.mrf.mxu0
        %v3913 = vadd.f32 %v3884, %v3912
        %3914 = vmatmul.bf16.gmra.mxu0 %v1083
        %v3915 = vpop.f32.mrf.mxu0
        %v3916 = vadd.f32 %v3887, %v3915
        %v3917 = vpop.f32.mrf.mxu0
        %v3918 = vadd.f32 %v3889, %v3917
        %3919 = vdwg.mxu0
        %3920 = vmatpush.bf16.msra.mxu0 %v2945
        %3921 = vmatpush.bf16.msra.mxu0 %v2941
        %3922 = vmatpush.bf16.msra.mxu0 %v2937
        %3923 = vmatpush.bf16.msra.mxu0 %v2933
        %3924 = vmatpush.bf16.msra.mxu0 %v2929
        %3925 = vmatpush.bf16.msra.mxu0 %v2925
        %3926 = vmatpush.bf16.msra.mxu0 %v2921
        %3927 = vmatpush.bf16.msra.mxu0 %v2917
        %3928 = vmatmul.bf16.gmra.mxu0 %v1036
        %v3929 = vpop.f32.mrf.mxu0
        %v3930 = vadd.f32 %v3901, %v3929
        %v3931 = vpop.f32.mrf.mxu0
        %v3932 = vadd.f32 %v3903, %v3931
        %3933 = vmatmul.bf16.gmra.mxu0 %v1052
        %v3934 = vpop.f32.mrf.mxu0
        %v3935 = vadd.f32 %v3906, %v3934
        %v3936 = vpop.f32.mrf.mxu0
        %v3937 = vadd.f32 %v3908, %v3936
        %3938 = vmatmul.bf16.gmra.mxu0 %v1068
        %v3939 = vpop.f32.mrf.mxu0
        %v3940 = vadd.f32 %v3911, %v3939
        %v3941 = vpop.f32.mrf.mxu0
        %v3942 = vadd.f32 %v3913, %v3941
        %3943 = vmatmul.bf16.gmra.mxu0 %v1084
        %v3944 = vpop.f32.mrf.mxu0
        %v3945 = vadd.f32 %v3916, %v3944
        %v3946 = vpop.f32.mrf.mxu0
        %v3947 = vadd.f32 %v3918, %v3946
        %3948 = vdwg.mxu0
        %3949 = vmatpush.bf16.msra.mxu0 %v2977
        %3950 = vmatpush.bf16.msra.mxu0 %v2973
        %3951 = vmatpush.bf16.msra.mxu0 %v2969
        %3952 = vmatpush.bf16.msra.mxu0 %v2965
        %3953 = vmatpush.bf16.msra.mxu0 %v2961
        %3954 = vmatpush.bf16.msra.mxu0 %v2957
        %3955 = vmatpush.bf16.msra.mxu0 %v2953
        %3956 = vmatpush.bf16.msra.mxu0 %v2949
        %3957 = vmatmul.bf16.gmra.mxu0 %v1037
        %v3958 = vpop.f32.mrf.mxu0
        %v3959 = vadd.f32 %v3930, %v3958
        %v3960 = vpop.f32.mrf.mxu0
        %v3961 = vadd.f32 %v3932, %v3960
        %3962 = vmatmul.bf16.gmra.mxu0 %v1053
        %v3963 = vpop.f32.mrf.mxu0
        %v3964 = vadd.f32 %v3935, %v3963
        %v3965 = vpop.f32.mrf.mxu0
        %v3966 = vadd.f32 %v3937, %v3965
        %3967 = vmatmul.bf16.gmra.mxu0 %v1069
        %v3968 = vpop.f32.mrf.mxu0
        %v3969 = vadd.f32 %v3940, %v3968
        %v3970 = vpop.f32.mrf.mxu0
        %v3971 = vadd.f32 %v3942, %v3970
        %3972 = vmatmul.bf16.gmra.mxu0 %v1085
        %v3973 = vpop.f32.mrf.mxu0
        %v3974 = vadd.f32 %v3945, %v3973
        %v3975 = vpop.f32.mrf.mxu0
        %v3976 = vadd.f32 %v3947, %v3975
        %3977 = vdwg.mxu0
        %3978 = vmatpush.bf16.msra.mxu0 %v3009
        %3979 = vmatpush.bf16.msra.mxu0 %v3005
        %3980 = vmatpush.bf16.msra.mxu0 %v3001
        %3981 = vmatpush.bf16.msra.mxu0 %v2997
        %3982 = vmatpush.bf16.msra.mxu0 %v2993
        %3983 = vmatpush.bf16.msra.mxu0 %v2989
        %3984 = vmatpush.bf16.msra.mxu0 %v2985
        %3985 = vmatpush.bf16.msra.mxu0 %v2981
        %3986 = vmatmul.bf16.gmra.mxu0 %v1038
        %v3987 = vpop.f32.mrf.mxu0
        %v3988 = vadd.f32 %v3959, %v3987
        %v3989 = vpop.f32.mrf.mxu0
        %v3990 = vadd.f32 %v3961, %v3989
        %3991 = vmatmul.bf16.gmra.mxu0 %v1054
        %v3992 = vpop.f32.mrf.mxu0
        %v3993 = vadd.f32 %v3964, %v3992
        %v3994 = vpop.f32.mrf.mxu0
        %v3995 = vadd.f32 %v3966, %v3994
        %3996 = vmatmul.bf16.gmra.mxu0 %v1070
        %v3997 = vpop.f32.mrf.mxu0
        %v3998 = vadd.f32 %v3969, %v3997
        %v3999 = vpop.f32.mrf.mxu0
        %v4000 = vadd.f32 %v3971, %v3999
        %4001 = vmatmul.bf16.gmra.mxu0 %v1086
        %v4002 = vpop.f32.mrf.mxu0
        %v4003 = vadd.f32 %v3974, %v4002
        %v4004 = vpop.f32.mrf.mxu0
        %v4005 = vadd.f32 %v3976, %v4004
        %4006 = vdwg.mxu0
        %4007 = vmatpush.bf16.msra.mxu0 %v3041
        %4008 = vmatpush.bf16.msra.mxu0 %v3037
        %4009 = vmatpush.bf16.msra.mxu0 %v3033
        %4010 = vmatpush.bf16.msra.mxu0 %v3029
        %4011 = vmatpush.bf16.msra.mxu0 %v3025
        %4012 = vmatpush.bf16.msra.mxu0 %v3021
        %4013 = vmatpush.bf16.msra.mxu0 %v3017
        %4014 = vmatpush.bf16.msra.mxu0 %v3013
        %4015 = vmatmul.bf16.gmra.mxu0 %v1039
        %v4016 = vpop.f32.mrf.mxu0
        %v4017 = vadd.f32 %v3988, %v4016
        %v4018 = vpop.f32.mrf.mxu0
        %v4019 = vadd.f32 %v3990, %v4018
        %4020 = vmatmul.bf16.gmra.mxu0 %v1055
        %v4021 = vpop.f32.mrf.mxu0
        %v4022 = vadd.f32 %v3993, %v4021
        %v4023 = vpop.f32.mrf.mxu0
        %v4024 = vadd.f32 %v3995, %v4023
        %4025 = vmatmul.bf16.gmra.mxu0 %v1071
        %v4026 = vpop.f32.mrf.mxu0
        %v4027 = vadd.f32 %v3998, %v4026
        %v4028 = vpop.f32.mrf.mxu0
        %v4029 = vadd.f32 %v4000, %v4028
        %4030 = vmatmul.bf16.gmra.mxu0 %v1087
        %v4031 = vpop.f32.mrf.mxu0
        %v4032 = vadd.f32 %v4003, %v4031
        %v4033 = vpop.f32.mrf.mxu0
        %v4034 = vadd.f32 %v4005, %v4033
        %4035 = vdwg.mxu0
        %4036 = vmatpush.bf16.msra.mxu0 %v3073
        %4037 = vmatpush.bf16.msra.mxu0 %v3069
        %4038 = vmatpush.bf16.msra.mxu0 %v3065
        %4039 = vmatpush.bf16.msra.mxu0 %v3061
        %4040 = vmatpush.bf16.msra.mxu0 %v3057
        %4041 = vmatpush.bf16.msra.mxu0 %v3053
        %4042 = vmatpush.bf16.msra.mxu0 %v3049
        %4043 = vmatpush.bf16.msra.mxu0 %v3045
        %4044 = vmatmul.bf16.gmra.mxu0 %v1040
        %v4045 = vpop.f32.mrf.mxu0
        %v4046 = vadd.f32 %v4017, %v4045
        %v4047 = vpop.f32.mrf.mxu0
        %v4048 = vadd.f32 %v4019, %v4047
        %4049 = vmatmul.bf16.gmra.mxu0 %v1056
        %v4050 = vpop.f32.mrf.mxu0
        %v4051 = vadd.f32 %v4022, %v4050
        %v4052 = vpop.f32.mrf.mxu0
        %v4053 = vadd.f32 %v4024, %v4052
        %4054 = vmatmul.bf16.gmra.mxu0 %v1072
        %v4055 = vpop.f32.mrf.mxu0
        %v4056 = vadd.f32 %v4027, %v4055
        %v4057 = vpop.f32.mrf.mxu0
        %v4058 = vadd.f32 %v4029, %v4057
        %4059 = vmatmul.bf16.gmra.mxu0 %v1088
        %v4060 = vpop.f32.mrf.mxu0
        %v4061 = vadd.f32 %v4032, %v4060
        %v4062 = vpop.f32.mrf.mxu0
        %v4063 = vadd.f32 %v4034, %v4062
        %4064 = vdwg.mxu0
        %4065 = vmatpush.bf16.msra.mxu0 %v3105
        %4066 = vmatpush.bf16.msra.mxu0 %v3101
        %4067 = vmatpush.bf16.msra.mxu0 %v3097
        %4068 = vmatpush.bf16.msra.mxu0 %v3093
        %4069 = vmatpush.bf16.msra.mxu0 %v3089
        %4070 = vmatpush.bf16.msra.mxu0 %v3085
        %4071 = vmatpush.bf16.msra.mxu0 %v3081
        %4072 = vmatpush.bf16.msra.mxu0 %v3077
        %4073 = vmatmul.bf16.gmra.mxu0 %v1041
        %v4074 = vpop.f32.mrf.mxu0
        %v4075 = vadd.f32 %v4046, %v4074
        %v4076 = vpop.f32.mrf.mxu0
        %v4077 = vadd.f32 %v4048, %v4076
        %4078 = vmatmul.bf16.gmra.mxu0 %v1057
        %v4079 = vpop.f32.mrf.mxu0
        %v4080 = vadd.f32 %v4051, %v4079
        %v4081 = vpop.f32.mrf.mxu0
        %v4082 = vadd.f32 %v4053, %v4081
        %4083 = vmatmul.bf16.gmra.mxu0 %v1073
        %v4084 = vpop.f32.mrf.mxu0
        %v4085 = vadd.f32 %v4056, %v4084
        %v4086 = vpop.f32.mrf.mxu0
        %v4087 = vadd.f32 %v4058, %v4086
        %4088 = vmatmul.bf16.gmra.mxu0 %v1089
        %v4089 = vpop.f32.mrf.mxu0
        %v4090 = vadd.f32 %v4061, %v4089
        %v4091 = vpop.f32.mrf.mxu0
        %v4092 = vadd.f32 %v4063, %v4091
        %4093 = vdwg.mxu0
        %4094 = vmatpush.bf16.msra.mxu0 %v3137
        %4095 = vmatpush.bf16.msra.mxu0 %v3133
        %4096 = vmatpush.bf16.msra.mxu0 %v3129
        %4097 = vmatpush.bf16.msra.mxu0 %v3125
        %4098 = vmatpush.bf16.msra.mxu0 %v3121
        %4099 = vmatpush.bf16.msra.mxu0 %v3117
        %4100 = vmatpush.bf16.msra.mxu0 %v3113
        %4101 = vmatpush.bf16.msra.mxu0 %v3109
        %4102 = vmatmul.bf16.gmra.mxu0 %v1042
        %v4103 = vpop.f32.mrf.mxu0
        %v4104 = vadd.f32 %v4075, %v4103
        %v4105 = vpop.f32.mrf.mxu0
        %v4106 = vadd.f32 %v4077, %v4105
        %4107 = vmatmul.bf16.gmra.mxu0 %v1058
        %v4108 = vpop.f32.mrf.mxu0
        %v4109 = vadd.f32 %v4080, %v4108
        %v4110 = vpop.f32.mrf.mxu0
        %v4111 = vadd.f32 %v4082, %v4110
        %4112 = vmatmul.bf16.gmra.mxu0 %v1074
        %v4113 = vpop.f32.mrf.mxu0
        %v4114 = vadd.f32 %v4085, %v4113
        %v4115 = vpop.f32.mrf.mxu0
        %v4116 = vadd.f32 %v4087, %v4115
        %4117 = vmatmul.bf16.gmra.mxu0 %v1090
        %v4118 = vpop.f32.mrf.mxu0
        %v4119 = vadd.f32 %v4090, %v4118
        %v4120 = vpop.f32.mrf.mxu0
        %v4121 = vadd.f32 %v4092, %v4120
        %4122 = vdwg.mxu0
        %4123 = vmatpush.bf16.msra.mxu0 %v3169
        %4124 = vmatpush.bf16.msra.mxu0 %v3165
        %4125 = vmatpush.bf16.msra.mxu0 %v3161
        %4126 = vmatpush.bf16.msra.mxu0 %v3157
        %4127 = vmatpush.bf16.msra.mxu0 %v3153
        %4128 = vmatpush.bf16.msra.mxu0 %v3149
        %4129 = vmatpush.bf16.msra.mxu0 %v3145
        %4130 = vmatpush.bf16.msra.mxu0 %v3141
        %4131 = vmatmul.bf16.gmra.mxu0 %v1043
        %v4132 = vpop.f32.mrf.mxu0
        %v4133 = vadd.f32 %v4104, %v4132
        %v4134 = vpop.f32.mrf.mxu0
        %v4135 = vadd.f32 %v4106, %v4134
        %4136 = vmatmul.bf16.gmra.mxu0 %v1059
        %v4137 = vpop.f32.mrf.mxu0
        %v4138 = vadd.f32 %v4109, %v4137
        %v4139 = vpop.f32.mrf.mxu0
        %v4140 = vadd.f32 %v4111, %v4139
        %4141 = vmatmul.bf16.gmra.mxu0 %v1075
        %v4142 = vpop.f32.mrf.mxu0
        %v4143 = vadd.f32 %v4114, %v4142
        %v4144 = vpop.f32.mrf.mxu0
        %v4145 = vadd.f32 %v4116, %v4144
        %4146 = vmatmul.bf16.gmra.mxu0 %v1091
        %v4147 = vpop.f32.mrf.mxu0
        %v4148 = vadd.f32 %v4119, %v4147
        %v4149 = vpop.f32.mrf.mxu0
        %v4150 = vadd.f32 %v4121, %v4149
        %4151 = vdwg.mxu0
        %4152 = vmatpush.bf16.msra.mxu0 %v3201
        %4153 = vmatpush.bf16.msra.mxu0 %v3197
        %4154 = vmatpush.bf16.msra.mxu0 %v3193
        %4155 = vmatpush.bf16.msra.mxu0 %v3189
        %4156 = vmatpush.bf16.msra.mxu0 %v3185
        %4157 = vmatpush.bf16.msra.mxu0 %v3181
        %4158 = vmatpush.bf16.msra.mxu0 %v3177
        %4159 = vmatpush.bf16.msra.mxu0 %v3173
        %4160 = vmatmul.bf16.gmra.mxu0 %v1044
        %v4161 = vpop.f32.mrf.mxu0
        %v4162 = vadd.f32 %v4133, %v4161
        %v4163 = vpop.f32.mrf.mxu0
        %v4164 = vadd.f32 %v4135, %v4163
        %4165 = vmatmul.bf16.gmra.mxu0 %v1060
        %v4166 = vpop.f32.mrf.mxu0
        %v4167 = vadd.f32 %v4138, %v4166
        %v4168 = vpop.f32.mrf.mxu0
        %v4169 = vadd.f32 %v4140, %v4168
        %4170 = vmatmul.bf16.gmra.mxu0 %v1076
        %v4171 = vpop.f32.mrf.mxu0
        %v4172 = vadd.f32 %v4143, %v4171
        %v4173 = vpop.f32.mrf.mxu0
        %v4174 = vadd.f32 %v4145, %v4173
        %4175 = vmatmul.bf16.gmra.mxu0 %v1092
        %v4176 = vpop.f32.mrf.mxu0
        %v4177 = vadd.f32 %v4148, %v4176
        %v4178 = vpop.f32.mrf.mxu0
        %v4179 = vadd.f32 %v4150, %v4178
        %4180 = vdwg.mxu0
        %4181 = vmatpush.bf16.msra.mxu0 %v2722
        %4182 = vmatpush.bf16.msra.mxu0 %v2718
        %4183 = vmatpush.bf16.msra.mxu0 %v2714
        %4184 = vmatpush.bf16.msra.mxu0 %v2710
        %4185 = vmatpush.bf16.msra.mxu0 %v2706
        %4186 = vmatpush.bf16.msra.mxu0 %v2702
        %4187 = vmatpush.bf16.msra.mxu0 %v2698
        %4188 = vmatpush.bf16.msra.mxu0 %v2694
        %4189 = vmatmul.bf16.gmra.mxu0 %v1029
        %v4190 = vpop.f32.mrf.mxu0
        %v4191 = vadd.f32 %v830, %v4190
        %v4192 = vpop.f32.mrf.mxu0
        %v4193 = vadd.f32 %v830, %v4192
        %4194 = vmatmul.bf16.gmra.mxu0 %v1045
        %v4195 = vpop.f32.mrf.mxu0
        %v4196 = vadd.f32 %v830, %v4195
        %v4197 = vpop.f32.mrf.mxu0
        %v4198 = vadd.f32 %v830, %v4197
        %4199 = vmatmul.bf16.gmra.mxu0 %v1061
        %v4200 = vpop.f32.mrf.mxu0
        %v4201 = vadd.f32 %v830, %v4200
        %v4202 = vpop.f32.mrf.mxu0
        %v4203 = vadd.f32 %v830, %v4202
        %4204 = vmatmul.bf16.gmra.mxu0 %v1077
        %v4205 = vpop.f32.mrf.mxu0
        %v4206 = vadd.f32 %v830, %v4205
        %v4207 = vpop.f32.mrf.mxu0
        %v4208 = vadd.f32 %v830, %v4207
        %4209 = vdwg.mxu0
        %4210 = vmatpush.bf16.msra.mxu0 %v2754
        %4211 = vmatpush.bf16.msra.mxu0 %v2750
        %4212 = vmatpush.bf16.msra.mxu0 %v2746
        %4213 = vmatpush.bf16.msra.mxu0 %v2742
        %4214 = vmatpush.bf16.msra.mxu0 %v2738
        %4215 = vmatpush.bf16.msra.mxu0 %v2734
        %4216 = vmatpush.bf16.msra.mxu0 %v2730
        %4217 = vmatpush.bf16.msra.mxu0 %v2726
        %4218 = vmatmul.bf16.gmra.mxu0 %v1030
        %v4219 = vpop.f32.mrf.mxu0
        %v4220 = vadd.f32 %v4191, %v4219
        %v4221 = vpop.f32.mrf.mxu0
        %v4222 = vadd.f32 %v4193, %v4221
        %4223 = vmatmul.bf16.gmra.mxu0 %v1046
        %v4224 = vpop.f32.mrf.mxu0
        %v4225 = vadd.f32 %v4196, %v4224
        %v4226 = vpop.f32.mrf.mxu0
        %v4227 = vadd.f32 %v4198, %v4226
        %4228 = vmatmul.bf16.gmra.mxu0 %v1062
        %v4229 = vpop.f32.mrf.mxu0
        %v4230 = vadd.f32 %v4201, %v4229
        %v4231 = vpop.f32.mrf.mxu0
        %v4232 = vadd.f32 %v4203, %v4231
        %4233 = vmatmul.bf16.gmra.mxu0 %v1078
        %v4234 = vpop.f32.mrf.mxu0
        %v4235 = vadd.f32 %v4206, %v4234
        %v4236 = vpop.f32.mrf.mxu0
        %v4237 = vadd.f32 %v4208, %v4236
        %4238 = vdwg.mxu0
        %4239 = vmatpush.bf16.msra.mxu0 %v2786
        %4240 = vmatpush.bf16.msra.mxu0 %v2782
        %4241 = vmatpush.bf16.msra.mxu0 %v2778
        %4242 = vmatpush.bf16.msra.mxu0 %v2774
        %4243 = vmatpush.bf16.msra.mxu0 %v2770
        %4244 = vmatpush.bf16.msra.mxu0 %v2766
        %4245 = vmatpush.bf16.msra.mxu0 %v2762
        %4246 = vmatpush.bf16.msra.mxu0 %v2758
        %4247 = vmatmul.bf16.gmra.mxu0 %v1031
        %v4248 = vpop.f32.mrf.mxu0
        %v4249 = vadd.f32 %v4220, %v4248
        %v4250 = vpop.f32.mrf.mxu0
        %v4251 = vadd.f32 %v4222, %v4250
        %4252 = vmatmul.bf16.gmra.mxu0 %v1047
        %v4253 = vpop.f32.mrf.mxu0
        %v4254 = vadd.f32 %v4225, %v4253
        %v4255 = vpop.f32.mrf.mxu0
        %v4256 = vadd.f32 %v4227, %v4255
        %4257 = vmatmul.bf16.gmra.mxu0 %v1063
        %v4258 = vpop.f32.mrf.mxu0
        %v4259 = vadd.f32 %v4230, %v4258
        %v4260 = vpop.f32.mrf.mxu0
        %v4261 = vadd.f32 %v4232, %v4260
        %4262 = vmatmul.bf16.gmra.mxu0 %v1079
        %v4263 = vpop.f32.mrf.mxu0
        %v4264 = vadd.f32 %v4235, %v4263
        %v4265 = vpop.f32.mrf.mxu0
        %v4266 = vadd.f32 %v4237, %v4265
        %4267 = vdwg.mxu0
        %4268 = vmatpush.bf16.msra.mxu0 %v2818
        %4269 = vmatpush.bf16.msra.mxu0 %v2814
        %4270 = vmatpush.bf16.msra.mxu0 %v2810
        %4271 = vmatpush.bf16.msra.mxu0 %v2806
        %4272 = vmatpush.bf16.msra.mxu0 %v2802
        %4273 = vmatpush.bf16.msra.mxu0 %v2798
        %4274 = vmatpush.bf16.msra.mxu0 %v2794
        %4275 = vmatpush.bf16.msra.mxu0 %v2790
        %4276 = vmatmul.bf16.gmra.mxu0 %v1032
        %v4277 = vpop.f32.mrf.mxu0
        %v4278 = vadd.f32 %v4249, %v4277
        %v4279 = vpop.f32.mrf.mxu0
        %v4280 = vadd.f32 %v4251, %v4279
        %4281 = vmatmul.bf16.gmra.mxu0 %v1048
        %v4282 = vpop.f32.mrf.mxu0
        %v4283 = vadd.f32 %v4254, %v4282
        %v4284 = vpop.f32.mrf.mxu0
        %v4285 = vadd.f32 %v4256, %v4284
        %4286 = vmatmul.bf16.gmra.mxu0 %v1064
        %v4287 = vpop.f32.mrf.mxu0
        %v4288 = vadd.f32 %v4259, %v4287
        %v4289 = vpop.f32.mrf.mxu0
        %v4290 = vadd.f32 %v4261, %v4289
        %4291 = vmatmul.bf16.gmra.mxu0 %v1080
        %v4292 = vpop.f32.mrf.mxu0
        %v4293 = vadd.f32 %v4264, %v4292
        %v4294 = vpop.f32.mrf.mxu0
        %v4295 = vadd.f32 %v4266, %v4294
        %4296 = vdwg.mxu0
        %4297 = vmatpush.bf16.msra.mxu0 %v2850
        %4298 = vmatpush.bf16.msra.mxu0 %v2846
        %4299 = vmatpush.bf16.msra.mxu0 %v2842
        %4300 = vmatpush.bf16.msra.mxu0 %v2838
        %4301 = vmatpush.bf16.msra.mxu0 %v2834
        %4302 = vmatpush.bf16.msra.mxu0 %v2830
        %4303 = vmatpush.bf16.msra.mxu0 %v2826
        %4304 = vmatpush.bf16.msra.mxu0 %v2822
        %4305 = vmatmul.bf16.gmra.mxu0 %v1033
        %v4306 = vpop.f32.mrf.mxu0
        %v4307 = vadd.f32 %v4278, %v4306
        %v4308 = vpop.f32.mrf.mxu0
        %v4309 = vadd.f32 %v4280, %v4308
        %4310 = vmatmul.bf16.gmra.mxu0 %v1049
        %v4311 = vpop.f32.mrf.mxu0
        %v4312 = vadd.f32 %v4283, %v4311
        %v4313 = vpop.f32.mrf.mxu0
        %v4314 = vadd.f32 %v4285, %v4313
        %4315 = vmatmul.bf16.gmra.mxu0 %v1065
        %v4316 = vpop.f32.mrf.mxu0
        %v4317 = vadd.f32 %v4288, %v4316
        %v4318 = vpop.f32.mrf.mxu0
        %v4319 = vadd.f32 %v4290, %v4318
        %4320 = vmatmul.bf16.gmra.mxu0 %v1081
        %v4321 = vpop.f32.mrf.mxu0
        %v4322 = vadd.f32 %v4293, %v4321
        %v4323 = vpop.f32.mrf.mxu0
        %v4324 = vadd.f32 %v4295, %v4323
        %4325 = vdwg.mxu0
        %4326 = vmatpush.bf16.msra.mxu0 %v2882
        %4327 = vmatpush.bf16.msra.mxu0 %v2878
        %4328 = vmatpush.bf16.msra.mxu0 %v2874
        %4329 = vmatpush.bf16.msra.mxu0 %v2870
        %4330 = vmatpush.bf16.msra.mxu0 %v2866
        %4331 = vmatpush.bf16.msra.mxu0 %v2862
        %4332 = vmatpush.bf16.msra.mxu0 %v2858
        %4333 = vmatpush.bf16.msra.mxu0 %v2854
        %4334 = vmatmul.bf16.gmra.mxu0 %v1034
        %v4335 = vpop.f32.mrf.mxu0
        %v4336 = vadd.f32 %v4307, %v4335
        %v4337 = vpop.f32.mrf.mxu0
        %v4338 = vadd.f32 %v4309, %v4337
        %4339 = vmatmul.bf16.gmra.mxu0 %v1050
        %v4340 = vpop.f32.mrf.mxu0
        %v4341 = vadd.f32 %v4312, %v4340
        %v4342 = vpop.f32.mrf.mxu0
        %v4343 = vadd.f32 %v4314, %v4342
        %4344 = vmatmul.bf16.gmra.mxu0 %v1066
        %v4345 = vpop.f32.mrf.mxu0
        %v4346 = vadd.f32 %v4317, %v4345
        %v4347 = vpop.f32.mrf.mxu0
        %v4348 = vadd.f32 %v4319, %v4347
        %4349 = vmatmul.bf16.gmra.mxu0 %v1082
        %v4350 = vpop.f32.mrf.mxu0
        %v4351 = vadd.f32 %v4322, %v4350
        %v4352 = vpop.f32.mrf.mxu0
        %v4353 = vadd.f32 %v4324, %v4352
        %4354 = vdwg.mxu0
        %4355 = vmatpush.bf16.msra.mxu0 %v2914
        %4356 = vmatpush.bf16.msra.mxu0 %v2910
        %4357 = vmatpush.bf16.msra.mxu0 %v2906
        %4358 = vmatpush.bf16.msra.mxu0 %v2902
        %4359 = vmatpush.bf16.msra.mxu0 %v2898
        %4360 = vmatpush.bf16.msra.mxu0 %v2894
        %4361 = vmatpush.bf16.msra.mxu0 %v2890
        %4362 = vmatpush.bf16.msra.mxu0 %v2886
        %4363 = vmatmul.bf16.gmra.mxu0 %v1035
        %v4364 = vpop.f32.mrf.mxu0
        %v4365 = vadd.f32 %v4336, %v4364
        %v4366 = vpop.f32.mrf.mxu0
        %v4367 = vadd.f32 %v4338, %v4366
        %4368 = vmatmul.bf16.gmra.mxu0 %v1051
        %v4369 = vpop.f32.mrf.mxu0
        %v4370 = vadd.f32 %v4341, %v4369
        %v4371 = vpop.f32.mrf.mxu0
        %v4372 = vadd.f32 %v4343, %v4371
        %4373 = vmatmul.bf16.gmra.mxu0 %v1067
        %v4374 = vpop.f32.mrf.mxu0
        %v4375 = vadd.f32 %v4346, %v4374
        %v4376 = vpop.f32.mrf.mxu0
        %v4377 = vadd.f32 %v4348, %v4376
        %4378 = vmatmul.bf16.gmra.mxu0 %v1083
        %v4379 = vpop.f32.mrf.mxu0
        %v4380 = vadd.f32 %v4351, %v4379
        %v4381 = vpop.f32.mrf.mxu0
        %v4382 = vadd.f32 %v4353, %v4381
        %4383 = vdwg.mxu0
        %4384 = vmatpush.bf16.msra.mxu0 %v2946
        %4385 = vmatpush.bf16.msra.mxu0 %v2942
        %4386 = vmatpush.bf16.msra.mxu0 %v2938
        %4387 = vmatpush.bf16.msra.mxu0 %v2934
        %4388 = vmatpush.bf16.msra.mxu0 %v2930
        %4389 = vmatpush.bf16.msra.mxu0 %v2926
        %4390 = vmatpush.bf16.msra.mxu0 %v2922
        %4391 = vmatpush.bf16.msra.mxu0 %v2918
        %4392 = vmatmul.bf16.gmra.mxu0 %v1036
        %v4393 = vpop.f32.mrf.mxu0
        %v4394 = vadd.f32 %v4365, %v4393
        %v4395 = vpop.f32.mrf.mxu0
        %v4396 = vadd.f32 %v4367, %v4395
        %4397 = vmatmul.bf16.gmra.mxu0 %v1052
        %v4398 = vpop.f32.mrf.mxu0
        %v4399 = vadd.f32 %v4370, %v4398
        %v4400 = vpop.f32.mrf.mxu0
        %v4401 = vadd.f32 %v4372, %v4400
        %4402 = vmatmul.bf16.gmra.mxu0 %v1068
        %v4403 = vpop.f32.mrf.mxu0
        %v4404 = vadd.f32 %v4375, %v4403
        %v4405 = vpop.f32.mrf.mxu0
        %v4406 = vadd.f32 %v4377, %v4405
        %4407 = vmatmul.bf16.gmra.mxu0 %v1084
        %v4408 = vpop.f32.mrf.mxu0
        %v4409 = vadd.f32 %v4380, %v4408
        %v4410 = vpop.f32.mrf.mxu0
        %v4411 = vadd.f32 %v4382, %v4410
        %4412 = vdwg.mxu0
        %4413 = vmatpush.bf16.msra.mxu0 %v2978
        %4414 = vmatpush.bf16.msra.mxu0 %v2974
        %4415 = vmatpush.bf16.msra.mxu0 %v2970
        %4416 = vmatpush.bf16.msra.mxu0 %v2966
        %4417 = vmatpush.bf16.msra.mxu0 %v2962
        %4418 = vmatpush.bf16.msra.mxu0 %v2958
        %4419 = vmatpush.bf16.msra.mxu0 %v2954
        %4420 = vmatpush.bf16.msra.mxu0 %v2950
        %4421 = vmatmul.bf16.gmra.mxu0 %v1037
        %v4422 = vpop.f32.mrf.mxu0
        %v4423 = vadd.f32 %v4394, %v4422
        %v4424 = vpop.f32.mrf.mxu0
        %v4425 = vadd.f32 %v4396, %v4424
        %4426 = vmatmul.bf16.gmra.mxu0 %v1053
        %v4427 = vpop.f32.mrf.mxu0
        %v4428 = vadd.f32 %v4399, %v4427
        %v4429 = vpop.f32.mrf.mxu0
        %v4430 = vadd.f32 %v4401, %v4429
        %4431 = vmatmul.bf16.gmra.mxu0 %v1069
        %v4432 = vpop.f32.mrf.mxu0
        %v4433 = vadd.f32 %v4404, %v4432
        %v4434 = vpop.f32.mrf.mxu0
        %v4435 = vadd.f32 %v4406, %v4434
        %4436 = vmatmul.bf16.gmra.mxu0 %v1085
        %v4437 = vpop.f32.mrf.mxu0
        %v4438 = vadd.f32 %v4409, %v4437
        %v4439 = vpop.f32.mrf.mxu0
        %v4440 = vadd.f32 %v4411, %v4439
        %4441 = vdwg.mxu0
        %4442 = vmatpush.bf16.msra.mxu0 %v3010
        %4443 = vmatpush.bf16.msra.mxu0 %v3006
        %4444 = vmatpush.bf16.msra.mxu0 %v3002
        %4445 = vmatpush.bf16.msra.mxu0 %v2998
        %4446 = vmatpush.bf16.msra.mxu0 %v2994
        %4447 = vmatpush.bf16.msra.mxu0 %v2990
        %4448 = vmatpush.bf16.msra.mxu0 %v2986
        %4449 = vmatpush.bf16.msra.mxu0 %v2982
        %4450 = vmatmul.bf16.gmra.mxu0 %v1038
        %v4451 = vpop.f32.mrf.mxu0
        %v4452 = vadd.f32 %v4423, %v4451
        %v4453 = vpop.f32.mrf.mxu0
        %v4454 = vadd.f32 %v4425, %v4453
        %4455 = vmatmul.bf16.gmra.mxu0 %v1054
        %v4456 = vpop.f32.mrf.mxu0
        %v4457 = vadd.f32 %v4428, %v4456
        %v4458 = vpop.f32.mrf.mxu0
        %v4459 = vadd.f32 %v4430, %v4458
        %4460 = vmatmul.bf16.gmra.mxu0 %v1070
        %v4461 = vpop.f32.mrf.mxu0
        %v4462 = vadd.f32 %v4433, %v4461
        %v4463 = vpop.f32.mrf.mxu0
        %v4464 = vadd.f32 %v4435, %v4463
        %4465 = vmatmul.bf16.gmra.mxu0 %v1086
        %v4466 = vpop.f32.mrf.mxu0
        %v4467 = vadd.f32 %v4438, %v4466
        %v4468 = vpop.f32.mrf.mxu0
        %v4469 = vadd.f32 %v4440, %v4468
        %4470 = vdwg.mxu0
        %4471 = vmatpush.bf16.msra.mxu0 %v3042
        %4472 = vmatpush.bf16.msra.mxu0 %v3038
        %4473 = vmatpush.bf16.msra.mxu0 %v3034
        %4474 = vmatpush.bf16.msra.mxu0 %v3030
        %4475 = vmatpush.bf16.msra.mxu0 %v3026
        %4476 = vmatpush.bf16.msra.mxu0 %v3022
        %4477 = vmatpush.bf16.msra.mxu0 %v3018
        %4478 = vmatpush.bf16.msra.mxu0 %v3014
        %4479 = vmatmul.bf16.gmra.mxu0 %v1039
        %v4480 = vpop.f32.mrf.mxu0
        %v4481 = vadd.f32 %v4452, %v4480
        %v4482 = vpop.f32.mrf.mxu0
        %v4483 = vadd.f32 %v4454, %v4482
        %4484 = vmatmul.bf16.gmra.mxu0 %v1055
        %v4485 = vpop.f32.mrf.mxu0
        %v4486 = vadd.f32 %v4457, %v4485
        %v4487 = vpop.f32.mrf.mxu0
        %v4488 = vadd.f32 %v4459, %v4487
        %4489 = vmatmul.bf16.gmra.mxu0 %v1071
        %v4490 = vpop.f32.mrf.mxu0
        %v4491 = vadd.f32 %v4462, %v4490
        %v4492 = vpop.f32.mrf.mxu0
        %v4493 = vadd.f32 %v4464, %v4492
        %4494 = vmatmul.bf16.gmra.mxu0 %v1087
        %v4495 = vpop.f32.mrf.mxu0
        %v4496 = vadd.f32 %v4467, %v4495
        %v4497 = vpop.f32.mrf.mxu0
        %v4498 = vadd.f32 %v4469, %v4497
        %4499 = vdwg.mxu0
        %4500 = vmatpush.bf16.msra.mxu0 %v3074
        %4501 = vmatpush.bf16.msra.mxu0 %v3070
        %4502 = vmatpush.bf16.msra.mxu0 %v3066
        %4503 = vmatpush.bf16.msra.mxu0 %v3062
        %4504 = vmatpush.bf16.msra.mxu0 %v3058
        %4505 = vmatpush.bf16.msra.mxu0 %v3054
        %4506 = vmatpush.bf16.msra.mxu0 %v3050
        %4507 = vmatpush.bf16.msra.mxu0 %v3046
        %4508 = vmatmul.bf16.gmra.mxu0 %v1040
        %v4509 = vpop.f32.mrf.mxu0
        %v4510 = vadd.f32 %v4481, %v4509
        %v4511 = vpop.f32.mrf.mxu0
        %v4512 = vadd.f32 %v4483, %v4511
        %4513 = vmatmul.bf16.gmra.mxu0 %v1056
        %v4514 = vpop.f32.mrf.mxu0
        %v4515 = vadd.f32 %v4486, %v4514
        %v4516 = vpop.f32.mrf.mxu0
        %v4517 = vadd.f32 %v4488, %v4516
        %4518 = vmatmul.bf16.gmra.mxu0 %v1072
        %v4519 = vpop.f32.mrf.mxu0
        %v4520 = vadd.f32 %v4491, %v4519
        %v4521 = vpop.f32.mrf.mxu0
        %v4522 = vadd.f32 %v4493, %v4521
        %4523 = vmatmul.bf16.gmra.mxu0 %v1088
        %v4524 = vpop.f32.mrf.mxu0
        %v4525 = vadd.f32 %v4496, %v4524
        %v4526 = vpop.f32.mrf.mxu0
        %v4527 = vadd.f32 %v4498, %v4526
        %4528 = vdwg.mxu0
        %4529 = vmatpush.bf16.msra.mxu0 %v3106
        %4530 = vmatpush.bf16.msra.mxu0 %v3102
        %4531 = vmatpush.bf16.msra.mxu0 %v3098
        %4532 = vmatpush.bf16.msra.mxu0 %v3094
        %4533 = vmatpush.bf16.msra.mxu0 %v3090
        %4534 = vmatpush.bf16.msra.mxu0 %v3086
        %4535 = vmatpush.bf16.msra.mxu0 %v3082
        %4536 = vmatpush.bf16.msra.mxu0 %v3078
        %4537 = vmatmul.bf16.gmra.mxu0 %v1041
        %v4538 = vpop.f32.mrf.mxu0
        %v4539 = vadd.f32 %v4510, %v4538
        %v4540 = vpop.f32.mrf.mxu0
        %v4541 = vadd.f32 %v4512, %v4540
        %4542 = vmatmul.bf16.gmra.mxu0 %v1057
        %v4543 = vpop.f32.mrf.mxu0
        %v4544 = vadd.f32 %v4515, %v4543
        %v4545 = vpop.f32.mrf.mxu0
        %v4546 = vadd.f32 %v4517, %v4545
        %4547 = vmatmul.bf16.gmra.mxu0 %v1073
        %v4548 = vpop.f32.mrf.mxu0
        %v4549 = vadd.f32 %v4520, %v4548
        %v4550 = vpop.f32.mrf.mxu0
        %v4551 = vadd.f32 %v4522, %v4550
        %4552 = vmatmul.bf16.gmra.mxu0 %v1089
        %v4553 = vpop.f32.mrf.mxu0
        %v4554 = vadd.f32 %v4525, %v4553
        %v4555 = vpop.f32.mrf.mxu0
        %v4556 = vadd.f32 %v4527, %v4555
        %4557 = vdwg.mxu0
        %4558 = vmatpush.bf16.msra.mxu0 %v3138
        %4559 = vmatpush.bf16.msra.mxu0 %v3134
        %4560 = vmatpush.bf16.msra.mxu0 %v3130
        %4561 = vmatpush.bf16.msra.mxu0 %v3126
        %4562 = vmatpush.bf16.msra.mxu0 %v3122
        %4563 = vmatpush.bf16.msra.mxu0 %v3118
        %4564 = vmatpush.bf16.msra.mxu0 %v3114
        %4565 = vmatpush.bf16.msra.mxu0 %v3110
        %4566 = vmatmul.bf16.gmra.mxu0 %v1042
        %v4567 = vpop.f32.mrf.mxu0
        %v4568 = vadd.f32 %v4539, %v4567
        %v4569 = vpop.f32.mrf.mxu0
        %v4570 = vadd.f32 %v4541, %v4569
        %4571 = vmatmul.bf16.gmra.mxu0 %v1058
        %v4572 = vpop.f32.mrf.mxu0
        %v4573 = vadd.f32 %v4544, %v4572
        %v4574 = vpop.f32.mrf.mxu0
        %v4575 = vadd.f32 %v4546, %v4574
        %4576 = vmatmul.bf16.gmra.mxu0 %v1074
        %v4577 = vpop.f32.mrf.mxu0
        %v4578 = vadd.f32 %v4549, %v4577
        %v4579 = vpop.f32.mrf.mxu0
        %v4580 = vadd.f32 %v4551, %v4579
        %4581 = vmatmul.bf16.gmra.mxu0 %v1090
        %v4582 = vpop.f32.mrf.mxu0
        %v4583 = vadd.f32 %v4554, %v4582
        %v4584 = vpop.f32.mrf.mxu0
        %v4585 = vadd.f32 %v4556, %v4584
        %4586 = vdwg.mxu0
        %4587 = vmatpush.bf16.msra.mxu0 %v3170
        %4588 = vmatpush.bf16.msra.mxu0 %v3166
        %4589 = vmatpush.bf16.msra.mxu0 %v3162
        %4590 = vmatpush.bf16.msra.mxu0 %v3158
        %4591 = vmatpush.bf16.msra.mxu0 %v3154
        %4592 = vmatpush.bf16.msra.mxu0 %v3150
        %4593 = vmatpush.bf16.msra.mxu0 %v3146
        %4594 = vmatpush.bf16.msra.mxu0 %v3142
        %4595 = vmatmul.bf16.gmra.mxu0 %v1043
        %v4596 = vpop.f32.mrf.mxu0
        %v4597 = vadd.f32 %v4568, %v4596
        %v4598 = vpop.f32.mrf.mxu0
        %v4599 = vadd.f32 %v4570, %v4598
        %4600 = vmatmul.bf16.gmra.mxu0 %v1059
        %v4601 = vpop.f32.mrf.mxu0
        %v4602 = vadd.f32 %v4573, %v4601
        %v4603 = vpop.f32.mrf.mxu0
        %v4604 = vadd.f32 %v4575, %v4603
        %4605 = vmatmul.bf16.gmra.mxu0 %v1075
        %v4606 = vpop.f32.mrf.mxu0
        %v4607 = vadd.f32 %v4578, %v4606
        %v4608 = vpop.f32.mrf.mxu0
        %v4609 = vadd.f32 %v4580, %v4608
        %4610 = vmatmul.bf16.gmra.mxu0 %v1091
        %v4611 = vpop.f32.mrf.mxu0
        %v4612 = vadd.f32 %v4583, %v4611
        %v4613 = vpop.f32.mrf.mxu0
        %v4614 = vadd.f32 %v4585, %v4613
        %4615 = vdwg.mxu0
        %4616 = vmatpush.bf16.msra.mxu0 %v3202
        %4617 = vmatpush.bf16.msra.mxu0 %v3198
        %4618 = vmatpush.bf16.msra.mxu0 %v3194
        %4619 = vmatpush.bf16.msra.mxu0 %v3190
        %4620 = vmatpush.bf16.msra.mxu0 %v3186
        %4621 = vmatpush.bf16.msra.mxu0 %v3182
        %4622 = vmatpush.bf16.msra.mxu0 %v3178
        %4623 = vmatpush.bf16.msra.mxu0 %v3174
        %4624 = vmatmul.bf16.gmra.mxu0 %v1044
        %v4625 = vpop.f32.mrf.mxu0
        %v4626 = vadd.f32 %v4597, %v4625
        %v4627 = vpop.f32.mrf.mxu0
        %v4628 = vadd.f32 %v4599, %v4627
        %4629 = vmatmul.bf16.gmra.mxu0 %v1060
        %v4630 = vpop.f32.mrf.mxu0
        %v4631 = vadd.f32 %v4602, %v4630
        %v4632 = vpop.f32.mrf.mxu0
        %v4633 = vadd.f32 %v4604, %v4632
        %4634 = vmatmul.bf16.gmra.mxu0 %v1076
        %v4635 = vpop.f32.mrf.mxu0
        %v4636 = vadd.f32 %v4607, %v4635
        %v4637 = vpop.f32.mrf.mxu0
        %v4638 = vadd.f32 %v4609, %v4637
        %4639 = vmatmul.bf16.gmra.mxu0 %v1092
        %v4640 = vpop.f32.mrf.mxu0
        %v4641 = vadd.f32 %v4612, %v4640
        %v4642 = vpop.f32.mrf.mxu0
        %v4643 = vadd.f32 %v4614, %v4642
        %4644 = vdwg.mxu0
        %4645 = vmatpush.bf16.msra.mxu0 %v2723
        %4646 = vmatpush.bf16.msra.mxu0 %v2719
        %4647 = vmatpush.bf16.msra.mxu0 %v2715
        %4648 = vmatpush.bf16.msra.mxu0 %v2711
        %4649 = vmatpush.bf16.msra.mxu0 %v2707
        %4650 = vmatpush.bf16.msra.mxu0 %v2703
        %4651 = vmatpush.bf16.msra.mxu0 %v2699
        %4652 = vmatpush.bf16.msra.mxu0 %v2695
        %4653 = vmatmul.bf16.gmra.mxu0 %v1029
        %v4654 = vpop.f32.mrf.mxu0
        %v4655 = vadd.f32 %v831, %v4654
        %v4656 = vpop.f32.mrf.mxu0
        %v4657 = vadd.f32 %v831, %v4656
        %4658 = vmatmul.bf16.gmra.mxu0 %v1045
        %v4659 = vpop.f32.mrf.mxu0
        %v4660 = vadd.f32 %v831, %v4659
        %v4661 = vpop.f32.mrf.mxu0
        %v4662 = vadd.f32 %v831, %v4661
        %4663 = vmatmul.bf16.gmra.mxu0 %v1061
        %v4664 = vpop.f32.mrf.mxu0
        %v4665 = vadd.f32 %v831, %v4664
        %v4666 = vpop.f32.mrf.mxu0
        %v4667 = vadd.f32 %v831, %v4666
        %4668 = vmatmul.bf16.gmra.mxu0 %v1077
        %v4669 = vpop.f32.mrf.mxu0
        %v4670 = vadd.f32 %v831, %v4669
        %v4671 = vpop.f32.mrf.mxu0
        %v4672 = vadd.f32 %v831, %v4671
        %4673 = vdwg.mxu0
        %4674 = vmatpush.bf16.msra.mxu0 %v2755
        %4675 = vmatpush.bf16.msra.mxu0 %v2751
        %4676 = vmatpush.bf16.msra.mxu0 %v2747
        %4677 = vmatpush.bf16.msra.mxu0 %v2743
        %4678 = vmatpush.bf16.msra.mxu0 %v2739
        %4679 = vmatpush.bf16.msra.mxu0 %v2735
        %4680 = vmatpush.bf16.msra.mxu0 %v2731
        %4681 = vmatpush.bf16.msra.mxu0 %v2727
        %4682 = vmatmul.bf16.gmra.mxu0 %v1030
        %v4683 = vpop.f32.mrf.mxu0
        %v4684 = vadd.f32 %v4655, %v4683
        %v4685 = vpop.f32.mrf.mxu0
        %v4686 = vadd.f32 %v4657, %v4685
        %4687 = vmatmul.bf16.gmra.mxu0 %v1046
        %v4688 = vpop.f32.mrf.mxu0
        %v4689 = vadd.f32 %v4660, %v4688
        %v4690 = vpop.f32.mrf.mxu0
        %v4691 = vadd.f32 %v4662, %v4690
        %4692 = vmatmul.bf16.gmra.mxu0 %v1062
        %v4693 = vpop.f32.mrf.mxu0
        %v4694 = vadd.f32 %v4665, %v4693
        %v4695 = vpop.f32.mrf.mxu0
        %v4696 = vadd.f32 %v4667, %v4695
        %4697 = vmatmul.bf16.gmra.mxu0 %v1078
        %v4698 = vpop.f32.mrf.mxu0
        %v4699 = vadd.f32 %v4670, %v4698
        %v4700 = vpop.f32.mrf.mxu0
        %v4701 = vadd.f32 %v4672, %v4700
        %4702 = vdwg.mxu0
        %4703 = vmatpush.bf16.msra.mxu0 %v2787
        %4704 = vmatpush.bf16.msra.mxu0 %v2783
        %4705 = vmatpush.bf16.msra.mxu0 %v2779
        %4706 = vmatpush.bf16.msra.mxu0 %v2775
        %4707 = vmatpush.bf16.msra.mxu0 %v2771
        %4708 = vmatpush.bf16.msra.mxu0 %v2767
        %4709 = vmatpush.bf16.msra.mxu0 %v2763
        %4710 = vmatpush.bf16.msra.mxu0 %v2759
        %4711 = vmatmul.bf16.gmra.mxu0 %v1031
        %v4712 = vpop.f32.mrf.mxu0
        %v4713 = vadd.f32 %v4684, %v4712
        %v4714 = vpop.f32.mrf.mxu0
        %v4715 = vadd.f32 %v4686, %v4714
        %4716 = vmatmul.bf16.gmra.mxu0 %v1047
        %v4717 = vpop.f32.mrf.mxu0
        %v4718 = vadd.f32 %v4689, %v4717
        %v4719 = vpop.f32.mrf.mxu0
        %v4720 = vadd.f32 %v4691, %v4719
        %4721 = vmatmul.bf16.gmra.mxu0 %v1063
        %v4722 = vpop.f32.mrf.mxu0
        %v4723 = vadd.f32 %v4694, %v4722
        %v4724 = vpop.f32.mrf.mxu0
        %v4725 = vadd.f32 %v4696, %v4724
        %4726 = vmatmul.bf16.gmra.mxu0 %v1079
        %v4727 = vpop.f32.mrf.mxu0
        %v4728 = vadd.f32 %v4699, %v4727
        %v4729 = vpop.f32.mrf.mxu0
        %v4730 = vadd.f32 %v4701, %v4729
        %4731 = vdwg.mxu0
        %4732 = vmatpush.bf16.msra.mxu0 %v2819
        %4733 = vmatpush.bf16.msra.mxu0 %v2815
        %4734 = vmatpush.bf16.msra.mxu0 %v2811
        %4735 = vmatpush.bf16.msra.mxu0 %v2807
        %4736 = vmatpush.bf16.msra.mxu0 %v2803
        %4737 = vmatpush.bf16.msra.mxu0 %v2799
        %4738 = vmatpush.bf16.msra.mxu0 %v2795
        %4739 = vmatpush.bf16.msra.mxu0 %v2791
        %4740 = vmatmul.bf16.gmra.mxu0 %v1032
        %v4741 = vpop.f32.mrf.mxu0
        %v4742 = vadd.f32 %v4713, %v4741
        %v4743 = vpop.f32.mrf.mxu0
        %v4744 = vadd.f32 %v4715, %v4743
        %4745 = vmatmul.bf16.gmra.mxu0 %v1048
        %v4746 = vpop.f32.mrf.mxu0
        %v4747 = vadd.f32 %v4718, %v4746
        %v4748 = vpop.f32.mrf.mxu0
        %v4749 = vadd.f32 %v4720, %v4748
        %4750 = vmatmul.bf16.gmra.mxu0 %v1064
        %v4751 = vpop.f32.mrf.mxu0
        %v4752 = vadd.f32 %v4723, %v4751
        %v4753 = vpop.f32.mrf.mxu0
        %v4754 = vadd.f32 %v4725, %v4753
        %4755 = vmatmul.bf16.gmra.mxu0 %v1080
        %v4756 = vpop.f32.mrf.mxu0
        %v4757 = vadd.f32 %v4728, %v4756
        %v4758 = vpop.f32.mrf.mxu0
        %v4759 = vadd.f32 %v4730, %v4758
        %4760 = vdwg.mxu0
        %4761 = vmatpush.bf16.msra.mxu0 %v2851
        %4762 = vmatpush.bf16.msra.mxu0 %v2847
        %4763 = vmatpush.bf16.msra.mxu0 %v2843
        %4764 = vmatpush.bf16.msra.mxu0 %v2839
        %4765 = vmatpush.bf16.msra.mxu0 %v2835
        %4766 = vmatpush.bf16.msra.mxu0 %v2831
        %4767 = vmatpush.bf16.msra.mxu0 %v2827
        %4768 = vmatpush.bf16.msra.mxu0 %v2823
        %4769 = vmatmul.bf16.gmra.mxu0 %v1033
        %v4770 = vpop.f32.mrf.mxu0
        %v4771 = vadd.f32 %v4742, %v4770
        %v4772 = vpop.f32.mrf.mxu0
        %v4773 = vadd.f32 %v4744, %v4772
        %4774 = vmatmul.bf16.gmra.mxu0 %v1049
        %v4775 = vpop.f32.mrf.mxu0
        %v4776 = vadd.f32 %v4747, %v4775
        %v4777 = vpop.f32.mrf.mxu0
        %v4778 = vadd.f32 %v4749, %v4777
        %4779 = vmatmul.bf16.gmra.mxu0 %v1065
        %v4780 = vpop.f32.mrf.mxu0
        %v4781 = vadd.f32 %v4752, %v4780
        %v4782 = vpop.f32.mrf.mxu0
        %v4783 = vadd.f32 %v4754, %v4782
        %4784 = vmatmul.bf16.gmra.mxu0 %v1081
        %v4785 = vpop.f32.mrf.mxu0
        %v4786 = vadd.f32 %v4757, %v4785
        %v4787 = vpop.f32.mrf.mxu0
        %v4788 = vadd.f32 %v4759, %v4787
        %4789 = vdwg.mxu0
        %4790 = vmatpush.bf16.msra.mxu0 %v2883
        %4791 = vmatpush.bf16.msra.mxu0 %v2879
        %4792 = vmatpush.bf16.msra.mxu0 %v2875
        %4793 = vmatpush.bf16.msra.mxu0 %v2871
        %4794 = vmatpush.bf16.msra.mxu0 %v2867
        %4795 = vmatpush.bf16.msra.mxu0 %v2863
        %4796 = vmatpush.bf16.msra.mxu0 %v2859
        %4797 = vmatpush.bf16.msra.mxu0 %v2855
        %4798 = vmatmul.bf16.gmra.mxu0 %v1034
        %v4799 = vpop.f32.mrf.mxu0
        %v4800 = vadd.f32 %v4771, %v4799
        %v4801 = vpop.f32.mrf.mxu0
        %v4802 = vadd.f32 %v4773, %v4801
        %4803 = vmatmul.bf16.gmra.mxu0 %v1050
        %v4804 = vpop.f32.mrf.mxu0
        %v4805 = vadd.f32 %v4776, %v4804
        %v4806 = vpop.f32.mrf.mxu0
        %v4807 = vadd.f32 %v4778, %v4806
        %4808 = vmatmul.bf16.gmra.mxu0 %v1066
        %v4809 = vpop.f32.mrf.mxu0
        %v4810 = vadd.f32 %v4781, %v4809
        %v4811 = vpop.f32.mrf.mxu0
        %v4812 = vadd.f32 %v4783, %v4811
        %4813 = vmatmul.bf16.gmra.mxu0 %v1082
        %v4814 = vpop.f32.mrf.mxu0
        %v4815 = vadd.f32 %v4786, %v4814
        %v4816 = vpop.f32.mrf.mxu0
        %v4817 = vadd.f32 %v4788, %v4816
        %4818 = vdwg.mxu0
        %4819 = vmatpush.bf16.msra.mxu0 %v2915
        %4820 = vmatpush.bf16.msra.mxu0 %v2911
        %4821 = vmatpush.bf16.msra.mxu0 %v2907
        %4822 = vmatpush.bf16.msra.mxu0 %v2903
        %4823 = vmatpush.bf16.msra.mxu0 %v2899
        %4824 = vmatpush.bf16.msra.mxu0 %v2895
        %4825 = vmatpush.bf16.msra.mxu0 %v2891
        %4826 = vmatpush.bf16.msra.mxu0 %v2887
        %4827 = vmatmul.bf16.gmra.mxu0 %v1035
        %v4828 = vpop.f32.mrf.mxu0
        %v4829 = vadd.f32 %v4800, %v4828
        %v4830 = vpop.f32.mrf.mxu0
        %v4831 = vadd.f32 %v4802, %v4830
        %4832 = vmatmul.bf16.gmra.mxu0 %v1051
        %v4833 = vpop.f32.mrf.mxu0
        %v4834 = vadd.f32 %v4805, %v4833
        %v4835 = vpop.f32.mrf.mxu0
        %v4836 = vadd.f32 %v4807, %v4835
        %4837 = vmatmul.bf16.gmra.mxu0 %v1067
        %v4838 = vpop.f32.mrf.mxu0
        %v4839 = vadd.f32 %v4810, %v4838
        %v4840 = vpop.f32.mrf.mxu0
        %v4841 = vadd.f32 %v4812, %v4840
        %4842 = vmatmul.bf16.gmra.mxu0 %v1083
        %v4843 = vpop.f32.mrf.mxu0
        %v4844 = vadd.f32 %v4815, %v4843
        %v4845 = vpop.f32.mrf.mxu0
        %v4846 = vadd.f32 %v4817, %v4845
        %4847 = vdwg.mxu0
        %4848 = vmatpush.bf16.msra.mxu0 %v2947
        %4849 = vmatpush.bf16.msra.mxu0 %v2943
        %4850 = vmatpush.bf16.msra.mxu0 %v2939
        %4851 = vmatpush.bf16.msra.mxu0 %v2935
        %4852 = vmatpush.bf16.msra.mxu0 %v2931
        %4853 = vmatpush.bf16.msra.mxu0 %v2927
        %4854 = vmatpush.bf16.msra.mxu0 %v2923
        %4855 = vmatpush.bf16.msra.mxu0 %v2919
        %4856 = vmatmul.bf16.gmra.mxu0 %v1036
        %v4857 = vpop.f32.mrf.mxu0
        %v4858 = vadd.f32 %v4829, %v4857
        %v4859 = vpop.f32.mrf.mxu0
        %v4860 = vadd.f32 %v4831, %v4859
        %4861 = vmatmul.bf16.gmra.mxu0 %v1052
        %v4862 = vpop.f32.mrf.mxu0
        %v4863 = vadd.f32 %v4834, %v4862
        %v4864 = vpop.f32.mrf.mxu0
        %v4865 = vadd.f32 %v4836, %v4864
        %4866 = vmatmul.bf16.gmra.mxu0 %v1068
        %v4867 = vpop.f32.mrf.mxu0
        %v4868 = vadd.f32 %v4839, %v4867
        %v4869 = vpop.f32.mrf.mxu0
        %v4870 = vadd.f32 %v4841, %v4869
        %4871 = vmatmul.bf16.gmra.mxu0 %v1084
        %v4872 = vpop.f32.mrf.mxu0
        %v4873 = vadd.f32 %v4844, %v4872
        %v4874 = vpop.f32.mrf.mxu0
        %v4875 = vadd.f32 %v4846, %v4874
        %4876 = vdwg.mxu0
        %4877 = vmatpush.bf16.msra.mxu0 %v2979
        %4878 = vmatpush.bf16.msra.mxu0 %v2975
        %4879 = vmatpush.bf16.msra.mxu0 %v2971
        %4880 = vmatpush.bf16.msra.mxu0 %v2967
        %4881 = vmatpush.bf16.msra.mxu0 %v2963
        %4882 = vmatpush.bf16.msra.mxu0 %v2959
        %4883 = vmatpush.bf16.msra.mxu0 %v2955
        %4884 = vmatpush.bf16.msra.mxu0 %v2951
        %4885 = vmatmul.bf16.gmra.mxu0 %v1037
        %v4886 = vpop.f32.mrf.mxu0
        %v4887 = vadd.f32 %v4858, %v4886
        %v4888 = vpop.f32.mrf.mxu0
        %v4889 = vadd.f32 %v4860, %v4888
        %4890 = vmatmul.bf16.gmra.mxu0 %v1053
        %v4891 = vpop.f32.mrf.mxu0
        %v4892 = vadd.f32 %v4863, %v4891
        %v4893 = vpop.f32.mrf.mxu0
        %v4894 = vadd.f32 %v4865, %v4893
        %4895 = vmatmul.bf16.gmra.mxu0 %v1069
        %v4896 = vpop.f32.mrf.mxu0
        %v4897 = vadd.f32 %v4868, %v4896
        %v4898 = vpop.f32.mrf.mxu0
        %v4899 = vadd.f32 %v4870, %v4898
        %4900 = vmatmul.bf16.gmra.mxu0 %v1085
        %v4901 = vpop.f32.mrf.mxu0
        %v4902 = vadd.f32 %v4873, %v4901
        %v4903 = vpop.f32.mrf.mxu0
        %v4904 = vadd.f32 %v4875, %v4903
        %4905 = vdwg.mxu0
        %4906 = vmatpush.bf16.msra.mxu0 %v3011
        %4907 = vmatpush.bf16.msra.mxu0 %v3007
        %4908 = vmatpush.bf16.msra.mxu0 %v3003
        %4909 = vmatpush.bf16.msra.mxu0 %v2999
        %4910 = vmatpush.bf16.msra.mxu0 %v2995
        %4911 = vmatpush.bf16.msra.mxu0 %v2991
        %4912 = vmatpush.bf16.msra.mxu0 %v2987
        %4913 = vmatpush.bf16.msra.mxu0 %v2983
        %4914 = vmatmul.bf16.gmra.mxu0 %v1038
        %v4915 = vpop.f32.mrf.mxu0
        %v4916 = vadd.f32 %v4887, %v4915
        %v4917 = vpop.f32.mrf.mxu0
        %v4918 = vadd.f32 %v4889, %v4917
        %4919 = vmatmul.bf16.gmra.mxu0 %v1054
        %v4920 = vpop.f32.mrf.mxu0
        %v4921 = vadd.f32 %v4892, %v4920
        %v4922 = vpop.f32.mrf.mxu0
        %v4923 = vadd.f32 %v4894, %v4922
        %4924 = vmatmul.bf16.gmra.mxu0 %v1070
        %v4925 = vpop.f32.mrf.mxu0
        %v4926 = vadd.f32 %v4897, %v4925
        %v4927 = vpop.f32.mrf.mxu0
        %v4928 = vadd.f32 %v4899, %v4927
        %4929 = vmatmul.bf16.gmra.mxu0 %v1086
        %v4930 = vpop.f32.mrf.mxu0
        %v4931 = vadd.f32 %v4902, %v4930
        %v4932 = vpop.f32.mrf.mxu0
        %v4933 = vadd.f32 %v4904, %v4932
        %4934 = vdwg.mxu0
        %4935 = vmatpush.bf16.msra.mxu0 %v3043
        %4936 = vmatpush.bf16.msra.mxu0 %v3039
        %4937 = vmatpush.bf16.msra.mxu0 %v3035
        %4938 = vmatpush.bf16.msra.mxu0 %v3031
        %4939 = vmatpush.bf16.msra.mxu0 %v3027
        %4940 = vmatpush.bf16.msra.mxu0 %v3023
        %4941 = vmatpush.bf16.msra.mxu0 %v3019
        %4942 = vmatpush.bf16.msra.mxu0 %v3015
        %4943 = vmatmul.bf16.gmra.mxu0 %v1039
        %v4944 = vpop.f32.mrf.mxu0
        %v4945 = vadd.f32 %v4916, %v4944
        %v4946 = vpop.f32.mrf.mxu0
        %v4947 = vadd.f32 %v4918, %v4946
        %4948 = vmatmul.bf16.gmra.mxu0 %v1055
        %v4949 = vpop.f32.mrf.mxu0
        %v4950 = vadd.f32 %v4921, %v4949
        %v4951 = vpop.f32.mrf.mxu0
        %v4952 = vadd.f32 %v4923, %v4951
        %4953 = vmatmul.bf16.gmra.mxu0 %v1071
        %v4954 = vpop.f32.mrf.mxu0
        %v4955 = vadd.f32 %v4926, %v4954
        %v4956 = vpop.f32.mrf.mxu0
        %v4957 = vadd.f32 %v4928, %v4956
        %4958 = vmatmul.bf16.gmra.mxu0 %v1087
        %v4959 = vpop.f32.mrf.mxu0
        %v4960 = vadd.f32 %v4931, %v4959
        %v4961 = vpop.f32.mrf.mxu0
        %v4962 = vadd.f32 %v4933, %v4961
        %4963 = vdwg.mxu0
        %4964 = vmatpush.bf16.msra.mxu0 %v3075
        %4965 = vmatpush.bf16.msra.mxu0 %v3071
        %4966 = vmatpush.bf16.msra.mxu0 %v3067
        %4967 = vmatpush.bf16.msra.mxu0 %v3063
        %4968 = vmatpush.bf16.msra.mxu0 %v3059
        %4969 = vmatpush.bf16.msra.mxu0 %v3055
        %4970 = vmatpush.bf16.msra.mxu0 %v3051
        %4971 = vmatpush.bf16.msra.mxu0 %v3047
        %4972 = vmatmul.bf16.gmra.mxu0 %v1040
        %v4973 = vpop.f32.mrf.mxu0
        %v4974 = vadd.f32 %v4945, %v4973
        %v4975 = vpop.f32.mrf.mxu0
        %v4976 = vadd.f32 %v4947, %v4975
        %4977 = vmatmul.bf16.gmra.mxu0 %v1056
        %v4978 = vpop.f32.mrf.mxu0
        %v4979 = vadd.f32 %v4950, %v4978
        %v4980 = vpop.f32.mrf.mxu0
        %v4981 = vadd.f32 %v4952, %v4980
        %4982 = vmatmul.bf16.gmra.mxu0 %v1072
        %v4983 = vpop.f32.mrf.mxu0
        %v4984 = vadd.f32 %v4955, %v4983
        %v4985 = vpop.f32.mrf.mxu0
        %v4986 = vadd.f32 %v4957, %v4985
        %4987 = vmatmul.bf16.gmra.mxu0 %v1088
        %v4988 = vpop.f32.mrf.mxu0
        %v4989 = vadd.f32 %v4960, %v4988
        %v4990 = vpop.f32.mrf.mxu0
        %v4991 = vadd.f32 %v4962, %v4990
        %4992 = vdwg.mxu0
        %4993 = vmatpush.bf16.msra.mxu0 %v3107
        %4994 = vmatpush.bf16.msra.mxu0 %v3103
        %4995 = vmatpush.bf16.msra.mxu0 %v3099
        %4996 = vmatpush.bf16.msra.mxu0 %v3095
        %4997 = vmatpush.bf16.msra.mxu0 %v3091
        %4998 = vmatpush.bf16.msra.mxu0 %v3087
        %4999 = vmatpush.bf16.msra.mxu0 %v3083
        %5000 = vmatpush.bf16.msra.mxu0 %v3079
        %5001 = vmatmul.bf16.gmra.mxu0 %v1041
        %v5002 = vpop.f32.mrf.mxu0
        %v5003 = vadd.f32 %v4974, %v5002
        %v5004 = vpop.f32.mrf.mxu0
        %v5005 = vadd.f32 %v4976, %v5004
        %5006 = vmatmul.bf16.gmra.mxu0 %v1057
        %v5007 = vpop.f32.mrf.mxu0
        %v5008 = vadd.f32 %v4979, %v5007
        %v5009 = vpop.f32.mrf.mxu0
        %v5010 = vadd.f32 %v4981, %v5009
        %5011 = vmatmul.bf16.gmra.mxu0 %v1073
        %v5012 = vpop.f32.mrf.mxu0
        %v5013 = vadd.f32 %v4984, %v5012
        %v5014 = vpop.f32.mrf.mxu0
        %v5015 = vadd.f32 %v4986, %v5014
        %5016 = vmatmul.bf16.gmra.mxu0 %v1089
        %v5017 = vpop.f32.mrf.mxu0
        %v5018 = vadd.f32 %v4989, %v5017
        %v5019 = vpop.f32.mrf.mxu0
        %v5020 = vadd.f32 %v4991, %v5019
        %5021 = vdwg.mxu0
        %5022 = vmatpush.bf16.msra.mxu0 %v3139
        %5023 = vmatpush.bf16.msra.mxu0 %v3135
        %5024 = vmatpush.bf16.msra.mxu0 %v3131
        %5025 = vmatpush.bf16.msra.mxu0 %v3127
        %5026 = vmatpush.bf16.msra.mxu0 %v3123
        %5027 = vmatpush.bf16.msra.mxu0 %v3119
        %5028 = vmatpush.bf16.msra.mxu0 %v3115
        %5029 = vmatpush.bf16.msra.mxu0 %v3111
        %5030 = vmatmul.bf16.gmra.mxu0 %v1042
        %v5031 = vpop.f32.mrf.mxu0
        %v5032 = vadd.f32 %v5003, %v5031
        %v5033 = vpop.f32.mrf.mxu0
        %v5034 = vadd.f32 %v5005, %v5033
        %5035 = vmatmul.bf16.gmra.mxu0 %v1058
        %v5036 = vpop.f32.mrf.mxu0
        %v5037 = vadd.f32 %v5008, %v5036
        %v5038 = vpop.f32.mrf.mxu0
        %v5039 = vadd.f32 %v5010, %v5038
        %5040 = vmatmul.bf16.gmra.mxu0 %v1074
        %v5041 = vpop.f32.mrf.mxu0
        %v5042 = vadd.f32 %v5013, %v5041
        %v5043 = vpop.f32.mrf.mxu0
        %v5044 = vadd.f32 %v5015, %v5043
        %5045 = vmatmul.bf16.gmra.mxu0 %v1090
        %v5046 = vpop.f32.mrf.mxu0
        %v5047 = vadd.f32 %v5018, %v5046
        %v5048 = vpop.f32.mrf.mxu0
        %v5049 = vadd.f32 %v5020, %v5048
        %5050 = vdwg.mxu0
        %5051 = vmatpush.bf16.msra.mxu0 %v3171
        %5052 = vmatpush.bf16.msra.mxu0 %v3167
        %5053 = vmatpush.bf16.msra.mxu0 %v3163
        %5054 = vmatpush.bf16.msra.mxu0 %v3159
        %5055 = vmatpush.bf16.msra.mxu0 %v3155
        %5056 = vmatpush.bf16.msra.mxu0 %v3151
        %5057 = vmatpush.bf16.msra.mxu0 %v3147
        %5058 = vmatpush.bf16.msra.mxu0 %v3143
        %5059 = vmatmul.bf16.gmra.mxu0 %v1043
        %v5060 = vpop.f32.mrf.mxu0
        %v5061 = vadd.f32 %v5032, %v5060
        %v5062 = vpop.f32.mrf.mxu0
        %v5063 = vadd.f32 %v5034, %v5062
        %5064 = vmatmul.bf16.gmra.mxu0 %v1059
        %v5065 = vpop.f32.mrf.mxu0
        %v5066 = vadd.f32 %v5037, %v5065
        %v5067 = vpop.f32.mrf.mxu0
        %v5068 = vadd.f32 %v5039, %v5067
        %5069 = vmatmul.bf16.gmra.mxu0 %v1075
        %v5070 = vpop.f32.mrf.mxu0
        %v5071 = vadd.f32 %v5042, %v5070
        %v5072 = vpop.f32.mrf.mxu0
        %v5073 = vadd.f32 %v5044, %v5072
        %5074 = vmatmul.bf16.gmra.mxu0 %v1091
        %v5075 = vpop.f32.mrf.mxu0
        %v5076 = vadd.f32 %v5047, %v5075
        %v5077 = vpop.f32.mrf.mxu0
        %v5078 = vadd.f32 %v5049, %v5077
        %5079 = vdwg.mxu0
        %5080 = vmatpush.bf16.msra.mxu0 %v3203
        %5081 = vmatpush.bf16.msra.mxu0 %v3199
        %5082 = vmatpush.bf16.msra.mxu0 %v3195
        %5083 = vmatpush.bf16.msra.mxu0 %v3191
        %5084 = vmatpush.bf16.msra.mxu0 %v3187
        %5085 = vmatpush.bf16.msra.mxu0 %v3183
        %5086 = vmatpush.bf16.msra.mxu0 %v3179
        %5087 = vmatpush.bf16.msra.mxu0 %v3175
        %5088 = vmatmul.bf16.gmra.mxu0 %v1044
        %v5089 = vpop.f32.mrf.mxu0
        %v5090 = vadd.f32 %v5061, %v5089
        %v5091 = vpop.f32.mrf.mxu0
        %v5092 = vadd.f32 %v5063, %v5091
        %5093 = vmatmul.bf16.gmra.mxu0 %v1060
        %v5094 = vpop.f32.mrf.mxu0
        %v5095 = vadd.f32 %v5066, %v5094
        %v5096 = vpop.f32.mrf.mxu0
        %v5097 = vadd.f32 %v5068, %v5096
        %5098 = vmatmul.bf16.gmra.mxu0 %v1076
        %v5099 = vpop.f32.mrf.mxu0
        %v5100 = vadd.f32 %v5071, %v5099
        %v5101 = vpop.f32.mrf.mxu0
        %v5102 = vadd.f32 %v5073, %v5101
        %5103 = vmatmul.bf16.gmra.mxu0 %v1092
        %v5104 = vpop.f32.mrf.mxu0
        %v5105 = vadd.f32 %v5076, %v5104
        %v5106 = vpop.f32.mrf.mxu0
        %v5107 = vadd.f32 %v5078, %v5106
        %5108 = vdwg.mxu0
        %5109 = vmatpush.bf16.msra.mxu0 %v2724
        %5110 = vmatpush.bf16.msra.mxu0 %v2720
        %5111 = vmatpush.bf16.msra.mxu0 %v2716
        %5112 = vmatpush.bf16.msra.mxu0 %v2712
        %5113 = vmatpush.bf16.msra.mxu0 %v2708
        %5114 = vmatpush.bf16.msra.mxu0 %v2704
        %5115 = vmatpush.bf16.msra.mxu0 %v2700
        %5116 = vmatpush.bf16.msra.mxu0 %v2696
        %5117 = vmatmul.bf16.gmra.mxu0 %v1029
        %v5118 = vpop.f32.mrf.mxu0
        %v5119 = vadd.f32 %v832, %v5118
        %v5120 = vpop.f32.mrf.mxu0
        %v5121 = vadd.f32 %v832, %v5120
        %5122 = vmatmul.bf16.gmra.mxu0 %v1045
        %v5123 = vpop.f32.mrf.mxu0
        %v5124 = vadd.f32 %v832, %v5123
        %v5125 = vpop.f32.mrf.mxu0
        %v5126 = vadd.f32 %v832, %v5125
        %5127 = vmatmul.bf16.gmra.mxu0 %v1061
        %v5128 = vpop.f32.mrf.mxu0
        %v5129 = vadd.f32 %v832, %v5128
        %v5130 = vpop.f32.mrf.mxu0
        %v5131 = vadd.f32 %v832, %v5130
        %5132 = vmatmul.bf16.gmra.mxu0 %v1077
        %v5133 = vpop.f32.mrf.mxu0
        %v5134 = vadd.f32 %v832, %v5133
        %v5135 = vpop.f32.mrf.mxu0
        %v5136 = vadd.f32 %v832, %v5135
        %5137 = vdwg.mxu0
        %5138 = vmatpush.bf16.msra.mxu0 %v2756
        %5139 = vmatpush.bf16.msra.mxu0 %v2752
        %5140 = vmatpush.bf16.msra.mxu0 %v2748
        %5141 = vmatpush.bf16.msra.mxu0 %v2744
        %5142 = vmatpush.bf16.msra.mxu0 %v2740
        %5143 = vmatpush.bf16.msra.mxu0 %v2736
        %5144 = vmatpush.bf16.msra.mxu0 %v2732
        %5145 = vmatpush.bf16.msra.mxu0 %v2728
        %5146 = vmatmul.bf16.gmra.mxu0 %v1030
        %v5147 = vpop.f32.mrf.mxu0
        %v5148 = vadd.f32 %v5119, %v5147
        %v5149 = vpop.f32.mrf.mxu0
        %v5150 = vadd.f32 %v5121, %v5149
        %5151 = vmatmul.bf16.gmra.mxu0 %v1046
        %v5152 = vpop.f32.mrf.mxu0
        %v5153 = vadd.f32 %v5124, %v5152
        %v5154 = vpop.f32.mrf.mxu0
        %v5155 = vadd.f32 %v5126, %v5154
        %5156 = vmatmul.bf16.gmra.mxu0 %v1062
        %v5157 = vpop.f32.mrf.mxu0
        %v5158 = vadd.f32 %v5129, %v5157
        %v5159 = vpop.f32.mrf.mxu0
        %v5160 = vadd.f32 %v5131, %v5159
        %5161 = vmatmul.bf16.gmra.mxu0 %v1078
        %v5162 = vpop.f32.mrf.mxu0
        %v5163 = vadd.f32 %v5134, %v5162
        %v5164 = vpop.f32.mrf.mxu0
        %v5165 = vadd.f32 %v5136, %v5164
        %5166 = vdwg.mxu0
        %5167 = vmatpush.bf16.msra.mxu0 %v2788
        %5168 = vmatpush.bf16.msra.mxu0 %v2784
        %5169 = vmatpush.bf16.msra.mxu0 %v2780
        %5170 = vmatpush.bf16.msra.mxu0 %v2776
        %5171 = vmatpush.bf16.msra.mxu0 %v2772
        %5172 = vmatpush.bf16.msra.mxu0 %v2768
        %5173 = vmatpush.bf16.msra.mxu0 %v2764
        %5174 = vmatpush.bf16.msra.mxu0 %v2760
        %5175 = vmatmul.bf16.gmra.mxu0 %v1031
        %v5176 = vpop.f32.mrf.mxu0
        %v5177 = vadd.f32 %v5148, %v5176
        %v5178 = vpop.f32.mrf.mxu0
        %v5179 = vadd.f32 %v5150, %v5178
        %5180 = vmatmul.bf16.gmra.mxu0 %v1047
        %v5181 = vpop.f32.mrf.mxu0
        %v5182 = vadd.f32 %v5153, %v5181
        %v5183 = vpop.f32.mrf.mxu0
        %v5184 = vadd.f32 %v5155, %v5183
        %5185 = vmatmul.bf16.gmra.mxu0 %v1063
        %v5186 = vpop.f32.mrf.mxu0
        %v5187 = vadd.f32 %v5158, %v5186
        %v5188 = vpop.f32.mrf.mxu0
        %v5189 = vadd.f32 %v5160, %v5188
        %5190 = vmatmul.bf16.gmra.mxu0 %v1079
        %v5191 = vpop.f32.mrf.mxu0
        %v5192 = vadd.f32 %v5163, %v5191
        %v5193 = vpop.f32.mrf.mxu0
        %v5194 = vadd.f32 %v5165, %v5193
        %5195 = vdwg.mxu0
        %5196 = vmatpush.bf16.msra.mxu0 %v2820
        %5197 = vmatpush.bf16.msra.mxu0 %v2816
        %5198 = vmatpush.bf16.msra.mxu0 %v2812
        %5199 = vmatpush.bf16.msra.mxu0 %v2808
        %5200 = vmatpush.bf16.msra.mxu0 %v2804
        %5201 = vmatpush.bf16.msra.mxu0 %v2800
        %5202 = vmatpush.bf16.msra.mxu0 %v2796
        %5203 = vmatpush.bf16.msra.mxu0 %v2792
        %5204 = vmatmul.bf16.gmra.mxu0 %v1032
        %v5205 = vpop.f32.mrf.mxu0
        %v5206 = vadd.f32 %v5177, %v5205
        %v5207 = vpop.f32.mrf.mxu0
        %v5208 = vadd.f32 %v5179, %v5207
        %5209 = vmatmul.bf16.gmra.mxu0 %v1048
        %v5210 = vpop.f32.mrf.mxu0
        %v5211 = vadd.f32 %v5182, %v5210
        %v5212 = vpop.f32.mrf.mxu0
        %v5213 = vadd.f32 %v5184, %v5212
        %5214 = vmatmul.bf16.gmra.mxu0 %v1064
        %v5215 = vpop.f32.mrf.mxu0
        %v5216 = vadd.f32 %v5187, %v5215
        %v5217 = vpop.f32.mrf.mxu0
        %v5218 = vadd.f32 %v5189, %v5217
        %5219 = vmatmul.bf16.gmra.mxu0 %v1080
        %v5220 = vpop.f32.mrf.mxu0
        %v5221 = vadd.f32 %v5192, %v5220
        %v5222 = vpop.f32.mrf.mxu0
        %v5223 = vadd.f32 %v5194, %v5222
        %5224 = vdwg.mxu0
        %5225 = vmatpush.bf16.msra.mxu0 %v2852
        %5226 = vmatpush.bf16.msra.mxu0 %v2848
        %5227 = vmatpush.bf16.msra.mxu0 %v2844
        %5228 = vmatpush.bf16.msra.mxu0 %v2840
        %5229 = vmatpush.bf16.msra.mxu0 %v2836
        %5230 = vmatpush.bf16.msra.mxu0 %v2832
        %5231 = vmatpush.bf16.msra.mxu0 %v2828
        %5232 = vmatpush.bf16.msra.mxu0 %v2824
        %5233 = vmatmul.bf16.gmra.mxu0 %v1033
        %v5234 = vpop.f32.mrf.mxu0
        %v5235 = vadd.f32 %v5206, %v5234
        %v5236 = vpop.f32.mrf.mxu0
        %v5237 = vadd.f32 %v5208, %v5236
        %5238 = vmatmul.bf16.gmra.mxu0 %v1049
        %v5239 = vpop.f32.mrf.mxu0
        %v5240 = vadd.f32 %v5211, %v5239
        %v5241 = vpop.f32.mrf.mxu0
        %v5242 = vadd.f32 %v5213, %v5241
        %5243 = vmatmul.bf16.gmra.mxu0 %v1065
        %v5244 = vpop.f32.mrf.mxu0
        %v5245 = vadd.f32 %v5216, %v5244
        %v5246 = vpop.f32.mrf.mxu0
        %v5247 = vadd.f32 %v5218, %v5246
        %5248 = vmatmul.bf16.gmra.mxu0 %v1081
        %v5249 = vpop.f32.mrf.mxu0
        %v5250 = vadd.f32 %v5221, %v5249
        %v5251 = vpop.f32.mrf.mxu0
        %v5252 = vadd.f32 %v5223, %v5251
        %5253 = vdwg.mxu0
        %5254 = vmatpush.bf16.msra.mxu0 %v2884
        %5255 = vmatpush.bf16.msra.mxu0 %v2880
        %5256 = vmatpush.bf16.msra.mxu0 %v2876
        %5257 = vmatpush.bf16.msra.mxu0 %v2872
        %5258 = vmatpush.bf16.msra.mxu0 %v2868
        %5259 = vmatpush.bf16.msra.mxu0 %v2864
        %5260 = vmatpush.bf16.msra.mxu0 %v2860
        %5261 = vmatpush.bf16.msra.mxu0 %v2856
        %5262 = vmatmul.bf16.gmra.mxu0 %v1034
        %v5263 = vpop.f32.mrf.mxu0
        %v5264 = vadd.f32 %v5235, %v5263
        %v5265 = vpop.f32.mrf.mxu0
        %v5266 = vadd.f32 %v5237, %v5265
        %5267 = vmatmul.bf16.gmra.mxu0 %v1050
        %v5268 = vpop.f32.mrf.mxu0
        %v5269 = vadd.f32 %v5240, %v5268
        %v5270 = vpop.f32.mrf.mxu0
        %v5271 = vadd.f32 %v5242, %v5270
        %5272 = vmatmul.bf16.gmra.mxu0 %v1066
        %v5273 = vpop.f32.mrf.mxu0
        %v5274 = vadd.f32 %v5245, %v5273
        %v5275 = vpop.f32.mrf.mxu0
        %v5276 = vadd.f32 %v5247, %v5275
        %5277 = vmatmul.bf16.gmra.mxu0 %v1082
        %v5278 = vpop.f32.mrf.mxu0
        %v5279 = vadd.f32 %v5250, %v5278
        %v5280 = vpop.f32.mrf.mxu0
        %v5281 = vadd.f32 %v5252, %v5280
        %5282 = vdwg.mxu0
        %5283 = vmatpush.bf16.msra.mxu0 %v2916
        %5284 = vmatpush.bf16.msra.mxu0 %v2912
        %5285 = vmatpush.bf16.msra.mxu0 %v2908
        %5286 = vmatpush.bf16.msra.mxu0 %v2904
        %5287 = vmatpush.bf16.msra.mxu0 %v2900
        %5288 = vmatpush.bf16.msra.mxu0 %v2896
        %5289 = vmatpush.bf16.msra.mxu0 %v2892
        %5290 = vmatpush.bf16.msra.mxu0 %v2888
        %5291 = vmatmul.bf16.gmra.mxu0 %v1035
        %v5292 = vpop.f32.mrf.mxu0
        %v5293 = vadd.f32 %v5264, %v5292
        %v5294 = vpop.f32.mrf.mxu0
        %v5295 = vadd.f32 %v5266, %v5294
        %5296 = vmatmul.bf16.gmra.mxu0 %v1051
        %v5297 = vpop.f32.mrf.mxu0
        %v5298 = vadd.f32 %v5269, %v5297
        %v5299 = vpop.f32.mrf.mxu0
        %v5300 = vadd.f32 %v5271, %v5299
        %5301 = vmatmul.bf16.gmra.mxu0 %v1067
        %v5302 = vpop.f32.mrf.mxu0
        %v5303 = vadd.f32 %v5274, %v5302
        %v5304 = vpop.f32.mrf.mxu0
        %v5305 = vadd.f32 %v5276, %v5304
        %5306 = vmatmul.bf16.gmra.mxu0 %v1083
        %v5307 = vpop.f32.mrf.mxu0
        %v5308 = vadd.f32 %v5279, %v5307
        %v5309 = vpop.f32.mrf.mxu0
        %v5310 = vadd.f32 %v5281, %v5309
        %5311 = vdwg.mxu0
        %5312 = vmatpush.bf16.msra.mxu0 %v2948
        %5313 = vmatpush.bf16.msra.mxu0 %v2944
        %5314 = vmatpush.bf16.msra.mxu0 %v2940
        %5315 = vmatpush.bf16.msra.mxu0 %v2936
        %5316 = vmatpush.bf16.msra.mxu0 %v2932
        %5317 = vmatpush.bf16.msra.mxu0 %v2928
        %5318 = vmatpush.bf16.msra.mxu0 %v2924
        %5319 = vmatpush.bf16.msra.mxu0 %v2920
        %5320 = vmatmul.bf16.gmra.mxu0 %v1036
        %v5321 = vpop.f32.mrf.mxu0
        %v5322 = vadd.f32 %v5293, %v5321
        %v5323 = vpop.f32.mrf.mxu0
        %v5324 = vadd.f32 %v5295, %v5323
        %5325 = vmatmul.bf16.gmra.mxu0 %v1052
        %v5326 = vpop.f32.mrf.mxu0
        %v5327 = vadd.f32 %v5298, %v5326
        %v5328 = vpop.f32.mrf.mxu0
        %v5329 = vadd.f32 %v5300, %v5328
        %5330 = vmatmul.bf16.gmra.mxu0 %v1068
        %v5331 = vpop.f32.mrf.mxu0
        %v5332 = vadd.f32 %v5303, %v5331
        %v5333 = vpop.f32.mrf.mxu0
        %v5334 = vadd.f32 %v5305, %v5333
        %5335 = vmatmul.bf16.gmra.mxu0 %v1084
        %v5336 = vpop.f32.mrf.mxu0
        %v5337 = vadd.f32 %v5308, %v5336
        %v5338 = vpop.f32.mrf.mxu0
        %v5339 = vadd.f32 %v5310, %v5338
        %5340 = vdwg.mxu0
        %5341 = vmatpush.bf16.msra.mxu0 %v2980
        %5342 = vmatpush.bf16.msra.mxu0 %v2976
        %5343 = vmatpush.bf16.msra.mxu0 %v2972
        %5344 = vmatpush.bf16.msra.mxu0 %v2968
        %5345 = vmatpush.bf16.msra.mxu0 %v2964
        %5346 = vmatpush.bf16.msra.mxu0 %v2960
        %5347 = vmatpush.bf16.msra.mxu0 %v2956
        %5348 = vmatpush.bf16.msra.mxu0 %v2952
        %5349 = vmatmul.bf16.gmra.mxu0 %v1037
        %v5350 = vpop.f32.mrf.mxu0
        %v5351 = vadd.f32 %v5322, %v5350
        %v5352 = vpop.f32.mrf.mxu0
        %v5353 = vadd.f32 %v5324, %v5352
        %5354 = vmatmul.bf16.gmra.mxu0 %v1053
        %v5355 = vpop.f32.mrf.mxu0
        %v5356 = vadd.f32 %v5327, %v5355
        %v5357 = vpop.f32.mrf.mxu0
        %v5358 = vadd.f32 %v5329, %v5357
        %5359 = vmatmul.bf16.gmra.mxu0 %v1069
        %v5360 = vpop.f32.mrf.mxu0
        %v5361 = vadd.f32 %v5332, %v5360
        %v5362 = vpop.f32.mrf.mxu0
        %v5363 = vadd.f32 %v5334, %v5362
        %5364 = vmatmul.bf16.gmra.mxu0 %v1085
        %v5365 = vpop.f32.mrf.mxu0
        %v5366 = vadd.f32 %v5337, %v5365
        %v5367 = vpop.f32.mrf.mxu0
        %v5368 = vadd.f32 %v5339, %v5367
        %5369 = vdwg.mxu0
        %5370 = vmatpush.bf16.msra.mxu0 %v3012
        %5371 = vmatpush.bf16.msra.mxu0 %v3008
        %5372 = vmatpush.bf16.msra.mxu0 %v3004
        %5373 = vmatpush.bf16.msra.mxu0 %v3000
        %5374 = vmatpush.bf16.msra.mxu0 %v2996
        %5375 = vmatpush.bf16.msra.mxu0 %v2992
        %5376 = vmatpush.bf16.msra.mxu0 %v2988
        %5377 = vmatpush.bf16.msra.mxu0 %v2984
        %5378 = vmatmul.bf16.gmra.mxu0 %v1038
        %v5379 = vpop.f32.mrf.mxu0
        %v5380 = vadd.f32 %v5351, %v5379
        %v5381 = vpop.f32.mrf.mxu0
        %v5382 = vadd.f32 %v5353, %v5381
        %5383 = vmatmul.bf16.gmra.mxu0 %v1054
        %v5384 = vpop.f32.mrf.mxu0
        %v5385 = vadd.f32 %v5356, %v5384
        %v5386 = vpop.f32.mrf.mxu0
        %v5387 = vadd.f32 %v5358, %v5386
        %5388 = vmatmul.bf16.gmra.mxu0 %v1070
        %v5389 = vpop.f32.mrf.mxu0
        %v5390 = vadd.f32 %v5361, %v5389
        %v5391 = vpop.f32.mrf.mxu0
        %v5392 = vadd.f32 %v5363, %v5391
        %5393 = vmatmul.bf16.gmra.mxu0 %v1086
        %v5394 = vpop.f32.mrf.mxu0
        %v5395 = vadd.f32 %v5366, %v5394
        %v5396 = vpop.f32.mrf.mxu0
        %v5397 = vadd.f32 %v5368, %v5396
        %5398 = vdwg.mxu0
        %5399 = vmatpush.bf16.msra.mxu0 %v3044
        %5400 = vmatpush.bf16.msra.mxu0 %v3040
        %5401 = vmatpush.bf16.msra.mxu0 %v3036
        %5402 = vmatpush.bf16.msra.mxu0 %v3032
        %5403 = vmatpush.bf16.msra.mxu0 %v3028
        %5404 = vmatpush.bf16.msra.mxu0 %v3024
        %5405 = vmatpush.bf16.msra.mxu0 %v3020
        %5406 = vmatpush.bf16.msra.mxu0 %v3016
        %5407 = vmatmul.bf16.gmra.mxu0 %v1039
        %v5408 = vpop.f32.mrf.mxu0
        %v5409 = vadd.f32 %v5380, %v5408
        %v5410 = vpop.f32.mrf.mxu0
        %v5411 = vadd.f32 %v5382, %v5410
        %5412 = vmatmul.bf16.gmra.mxu0 %v1055
        %v5413 = vpop.f32.mrf.mxu0
        %v5414 = vadd.f32 %v5385, %v5413
        %v5415 = vpop.f32.mrf.mxu0
        %v5416 = vadd.f32 %v5387, %v5415
        %5417 = vmatmul.bf16.gmra.mxu0 %v1071
        %v5418 = vpop.f32.mrf.mxu0
        %v5419 = vadd.f32 %v5390, %v5418
        %v5420 = vpop.f32.mrf.mxu0
        %v5421 = vadd.f32 %v5392, %v5420
        %5422 = vmatmul.bf16.gmra.mxu0 %v1087
        %v5423 = vpop.f32.mrf.mxu0
        %v5424 = vadd.f32 %v5395, %v5423
        %v5425 = vpop.f32.mrf.mxu0
        %v5426 = vadd.f32 %v5397, %v5425
        %5427 = vdwg.mxu0
        %5428 = vmatpush.bf16.msra.mxu0 %v3076
        %5429 = vmatpush.bf16.msra.mxu0 %v3072
        %5430 = vmatpush.bf16.msra.mxu0 %v3068
        %5431 = vmatpush.bf16.msra.mxu0 %v3064
        %5432 = vmatpush.bf16.msra.mxu0 %v3060
        %5433 = vmatpush.bf16.msra.mxu0 %v3056
        %5434 = vmatpush.bf16.msra.mxu0 %v3052
        %5435 = vmatpush.bf16.msra.mxu0 %v3048
        %5436 = vmatmul.bf16.gmra.mxu0 %v1040
        %v5437 = vpop.f32.mrf.mxu0
        %v5438 = vadd.f32 %v5409, %v5437
        %v5439 = vpop.f32.mrf.mxu0
        %v5440 = vadd.f32 %v5411, %v5439
        %5441 = vmatmul.bf16.gmra.mxu0 %v1056
        %v5442 = vpop.f32.mrf.mxu0
        %v5443 = vadd.f32 %v5414, %v5442
        %v5444 = vpop.f32.mrf.mxu0
        %v5445 = vadd.f32 %v5416, %v5444
        %5446 = vmatmul.bf16.gmra.mxu0 %v1072
        %v5447 = vpop.f32.mrf.mxu0
        %v5448 = vadd.f32 %v5419, %v5447
        %v5449 = vpop.f32.mrf.mxu0
        %v5450 = vadd.f32 %v5421, %v5449
        %5451 = vmatmul.bf16.gmra.mxu0 %v1088
        %v5452 = vpop.f32.mrf.mxu0
        %v5453 = vadd.f32 %v5424, %v5452
        %v5454 = vpop.f32.mrf.mxu0
        %v5455 = vadd.f32 %v5426, %v5454
        %5456 = vdwg.mxu0
        %5457 = vmatpush.bf16.msra.mxu0 %v3108
        %5458 = vmatpush.bf16.msra.mxu0 %v3104
        %5459 = vmatpush.bf16.msra.mxu0 %v3100
        %5460 = vmatpush.bf16.msra.mxu0 %v3096
        %5461 = vmatpush.bf16.msra.mxu0 %v3092
        %5462 = vmatpush.bf16.msra.mxu0 %v3088
        %5463 = vmatpush.bf16.msra.mxu0 %v3084
        %5464 = vmatpush.bf16.msra.mxu0 %v3080
        %5465 = vmatmul.bf16.gmra.mxu0 %v1041
        %v5466 = vpop.f32.mrf.mxu0
        %v5467 = vadd.f32 %v5438, %v5466
        %v5468 = vpop.f32.mrf.mxu0
        %v5469 = vadd.f32 %v5440, %v5468
        %5470 = vmatmul.bf16.gmra.mxu0 %v1057
        %v5471 = vpop.f32.mrf.mxu0
        %v5472 = vadd.f32 %v5443, %v5471
        %v5473 = vpop.f32.mrf.mxu0
        %v5474 = vadd.f32 %v5445, %v5473
        %5475 = vmatmul.bf16.gmra.mxu0 %v1073
        %v5476 = vpop.f32.mrf.mxu0
        %v5477 = vadd.f32 %v5448, %v5476
        %v5478 = vpop.f32.mrf.mxu0
        %v5479 = vadd.f32 %v5450, %v5478
        %5480 = vmatmul.bf16.gmra.mxu0 %v1089
        %v5481 = vpop.f32.mrf.mxu0
        %v5482 = vadd.f32 %v5453, %v5481
        %v5483 = vpop.f32.mrf.mxu0
        %v5484 = vadd.f32 %v5455, %v5483
        %5485 = vdwg.mxu0
        %5486 = vmatpush.bf16.msra.mxu0 %v3140
        %5487 = vmatpush.bf16.msra.mxu0 %v3136
        %5488 = vmatpush.bf16.msra.mxu0 %v3132
        %5489 = vmatpush.bf16.msra.mxu0 %v3128
        %5490 = vmatpush.bf16.msra.mxu0 %v3124
        %5491 = vmatpush.bf16.msra.mxu0 %v3120
        %5492 = vmatpush.bf16.msra.mxu0 %v3116
        %5493 = vmatpush.bf16.msra.mxu0 %v3112
        %5494 = vmatmul.bf16.gmra.mxu0 %v1042
        %v5495 = vpop.f32.mrf.mxu0
        %v5496 = vadd.f32 %v5467, %v5495
        %v5497 = vpop.f32.mrf.mxu0
        %v5498 = vadd.f32 %v5469, %v5497
        %5499 = vmatmul.bf16.gmra.mxu0 %v1058
        %v5500 = vpop.f32.mrf.mxu0
        %v5501 = vadd.f32 %v5472, %v5500
        %v5502 = vpop.f32.mrf.mxu0
        %v5503 = vadd.f32 %v5474, %v5502
        %5504 = vmatmul.bf16.gmra.mxu0 %v1074
        %v5505 = vpop.f32.mrf.mxu0
        %v5506 = vadd.f32 %v5477, %v5505
        %v5507 = vpop.f32.mrf.mxu0
        %v5508 = vadd.f32 %v5479, %v5507
        %5509 = vmatmul.bf16.gmra.mxu0 %v1090
        %v5510 = vpop.f32.mrf.mxu0
        %v5511 = vadd.f32 %v5482, %v5510
        %v5512 = vpop.f32.mrf.mxu0
        %v5513 = vadd.f32 %v5484, %v5512
        %5514 = vdwg.mxu0
        %5515 = vmatpush.bf16.msra.mxu0 %v3172
        %5516 = vmatpush.bf16.msra.mxu0 %v3168
        %5517 = vmatpush.bf16.msra.mxu0 %v3164
        %5518 = vmatpush.bf16.msra.mxu0 %v3160
        %5519 = vmatpush.bf16.msra.mxu0 %v3156
        %5520 = vmatpush.bf16.msra.mxu0 %v3152
        %5521 = vmatpush.bf16.msra.mxu0 %v3148
        %5522 = vmatpush.bf16.msra.mxu0 %v3144
        %5523 = vmatmul.bf16.gmra.mxu0 %v1043
        %v5524 = vpop.f32.mrf.mxu0
        %v5525 = vadd.f32 %v5496, %v5524
        %v5526 = vpop.f32.mrf.mxu0
        %v5527 = vadd.f32 %v5498, %v5526
        %5528 = vmatmul.bf16.gmra.mxu0 %v1059
        %v5529 = vpop.f32.mrf.mxu0
        %v5530 = vadd.f32 %v5501, %v5529
        %v5531 = vpop.f32.mrf.mxu0
        %v5532 = vadd.f32 %v5503, %v5531
        %5533 = vmatmul.bf16.gmra.mxu0 %v1075
        %v5534 = vpop.f32.mrf.mxu0
        %v5535 = vadd.f32 %v5506, %v5534
        %v5536 = vpop.f32.mrf.mxu0
        %v5537 = vadd.f32 %v5508, %v5536
        %5538 = vmatmul.bf16.gmra.mxu0 %v1091
        %v5539 = vpop.f32.mrf.mxu0
        %v5540 = vadd.f32 %v5511, %v5539
        %v5541 = vpop.f32.mrf.mxu0
        %v5542 = vadd.f32 %v5513, %v5541
        %5543 = vdwg.mxu0
        %5544 = vmatpush.bf16.msra.mxu0 %v3204
        %5545 = vmatpush.bf16.msra.mxu0 %v3200
        %5546 = vmatpush.bf16.msra.mxu0 %v3196
        %5547 = vmatpush.bf16.msra.mxu0 %v3192
        %5548 = vmatpush.bf16.msra.mxu0 %v3188
        %5549 = vmatpush.bf16.msra.mxu0 %v3184
        %5550 = vmatpush.bf16.msra.mxu0 %v3180
        %5551 = vmatpush.bf16.msra.mxu0 %v3176
        %5552 = vmatmul.bf16.gmra.mxu0 %v1044
        %v5553 = vpop.f32.mrf.mxu0
        %v5554 = vadd.f32 %v5525, %v5553
        %v5555 = vpop.f32.mrf.mxu0
        %v5556 = vadd.f32 %v5527, %v5555
        %5557 = vmatmul.bf16.gmra.mxu0 %v1060
        %v5558 = vpop.f32.mrf.mxu0
        %v5559 = vadd.f32 %v5530, %v5558
        %v5560 = vpop.f32.mrf.mxu0
        %v5561 = vadd.f32 %v5532, %v5560
        %5562 = vmatmul.bf16.gmra.mxu0 %v1076
        %v5563 = vpop.f32.mrf.mxu0
        %v5564 = vadd.f32 %v5535, %v5563
        %v5565 = vpop.f32.mrf.mxu0
        %v5566 = vadd.f32 %v5537, %v5565
        %5567 = vmatmul.bf16.gmra.mxu0 %v1092
        %v5568 = vpop.f32.mrf.mxu0
        %v5569 = vadd.f32 %v5540, %v5568
        %v5570 = vpop.f32.mrf.mxu0
        %v5571 = vadd.f32 %v5542, %v5570
        %5572 = vdwg.mxu0
        %v5573 = vmax.f32 %v4162, 0.0
        %v5574 = vmax.f32 %v4626, 0.0
        %v5575 = vmax.f32 %v5090, 0.0
        %v5576 = vmax.f32 %v5554, 0.0
        %v5577 = vmax.f32 %v4164, 0.0
        %v5578 = vmax.f32 %v4628, 0.0
        %v5579 = vmax.f32 %v5092, 0.0
        %v5580 = vmax.f32 %v5556, 0.0
        %v5581 = vmax.f32 %v4167, 0.0
        %v5582 = vmax.f32 %v4631, 0.0
        %v5583 = vmax.f32 %v5095, 0.0
        %v5584 = vmax.f32 %v5559, 0.0
        %v5585 = vmax.f32 %v4169, 0.0
        %v5586 = vmax.f32 %v4633, 0.0
        %v5587 = vmax.f32 %v5097, 0.0
        %v5588 = vmax.f32 %v5561, 0.0
        %v5589 = vmax.f32 %v4172, 0.0
        %v5590 = vmax.f32 %v4636, 0.0
        %v5591 = vmax.f32 %v5100, 0.0
        %v5592 = vmax.f32 %v5564, 0.0
        %v5593 = vmax.f32 %v4174, 0.0
        %v5594 = vmax.f32 %v4638, 0.0
        %v5595 = vmax.f32 %v5102, 0.0
        %v5596 = vmax.f32 %v5566, 0.0
        %v5597 = vmax.f32 %v4177, 0.0
        %v5598 = vmax.f32 %v4641, 0.0
        %v5599 = vmax.f32 %v5105, 0.0
        %v5600 = vmax.f32 %v5569, 0.0
        %v5601 = vmax.f32 %v4179, 0.0
        %v5602 = vmax.f32 %v4643, 0.0
        %v5603 = vmax.f32 %v5107, 0.0
        %v5604 = vmax.f32 %v5571, 0.0
        %5605 = vst [vmem:[%s246] sm:$0xff] %v5573
        %5606 = vst [vmem:[%s246 + $0x8] sm:$0xff] %v5574
        %5607 = vst [vmem:[%s246 + $0x10] sm:$0xff] %v5575
        %5608 = vst [vmem:[%s246 + $0x18] sm:$0xff] %v5576
        %5609 = vst [vmem:[%s246 + $0x20] sm:$0xff] %v5577
        %5610 = vst [vmem:[%s246 + $0x28] sm:$0xff] %v5578
        %5611 = vst [vmem:[%s246 + $0x30] sm:$0xff] %v5579
        %5612 = vst [vmem:[%s246 + $0x38] sm:$0xff] %v5580
        %5613 = vst [vmem:[%s246 + $0x40] sm:$0xff] %v5581
        %5614 = vst [vmem:[%s246 + $0x48] sm:$0xff] %v5582
        %5615 = vst [vmem:[%s246 + $0x50] sm:$0xff] %v5583
        %5616 = vst [vmem:[%s246 + $0x58] sm:$0xff] %v5584
        %5617 = vst [vmem:[%s246 + $0x60] sm:$0xff] %v5585
        %5618 = vst [vmem:[%s246 + $0x68] sm:$0xff] %v5586
        %5619 = vst [vmem:[%s246 + $0x70] sm:$0xff] %v5587
        %5620 = vst [vmem:[%s246 + $0x78] sm:$0xff] %v5588
        %5621 = vst [vmem:[%s246 + $0x80] sm:$0xff] %v5589
        %5622 = vst [vmem:[%s246 + $0x88] sm:$0xff] %v5590
        %5623 = vst [vmem:[%s246 + $0x90] sm:$0xff] %v5591
        %5624 = vst [vmem:[%s246 + $0x98] sm:$0xff] %v5592
        %5625 = vst [vmem:[%s246 + $0xa0] sm:$0xff] %v5593
        %5626 = vst [vmem:[%s246 + $0xa8] sm:$0xff] %v5594
        %5627 = vst [vmem:[%s246 + $0xb0] sm:$0xff] %v5595
        %5628 = vst [vmem:[%s246 + $0xb8] sm:$0xff] %v5596
        %5629 = vst [vmem:[%s246 + $0xc0] sm:$0xff] %v5597
        %5630 = vst [vmem:[%s246 + $0xc8] sm:$0xff] %v5598
        %5631 = vst [vmem:[%s246 + $0xd0] sm:$0xff] %v5599
        %5632 = vst [vmem:[%s246 + $0xd8] sm:$0xff] %v5600
        %5633 = vst [vmem:[%s246 + $0xe0] sm:$0xff] %v5601
        %5634 = vst [vmem:[%s246 + $0xe8] sm:$0xff] %v5602
        %5635 = vst [vmem:[%s246 + $0xf0] sm:$0xff] %v5603
        %5636 = vst [vmem:[%s246 + $0xf8] sm:$0xff] %v5604
        %v5637 = vadd.f32 %v5573, %v5577
        %v5638 = vadd.f32 %v5637, %v5581
        %v5639 = vadd.f32 %v5638, %v5585
        %v5640 = vadd.f32 %v5639, %v5589
        %v5641 = vadd.f32 %v5640, %v5593
        %v5642 = vadd.f32 %v5641, %v5597
        %v5643 = vadd.f32 %v5642, %v5601
        %v5644 = vrot.slane %v5643, 4
        %v5645 = vadd.f32 %v5643, %v5644
        %v5646 = vrot.slane %v5645, 2
        %v5647 = vadd.f32 %v5645, %v5646
        %v5648 = vrot.slane %v5647, 1
        %v5649 = vadd.f32 %v5647, %v5648
        %v5650 = vadd.f32 %v5574, %v5578
        %v5651 = vadd.f32 %v5650, %v5582
        %v5652 = vadd.f32 %v5651, %v5586
        %v5653 = vadd.f32 %v5652, %v5590
        %v5654 = vadd.f32 %v5653, %v5594
        %v5655 = vadd.f32 %v5654, %v5598
        %v5656 = vadd.f32 %v5655, %v5602
        %v5657 = vrot.slane %v5656, 4
        %v5658 = vadd.f32 %v5656, %v5657
        %v5659 = vrot.slane %v5658, 2
        %v5660 = vadd.f32 %v5658, %v5659
        %v5661 = vrot.slane %v5660, 1
        %v5662 = vadd.f32 %v5660, %v5661
        %v5663 = vadd.f32 %v5575, %v5579
        %v5664 = vadd.f32 %v5663, %v5583
        %v5665 = vadd.f32 %v5664, %v5587
        %v5666 = vadd.f32 %v5665, %v5591
        %v5667 = vadd.f32 %v5666, %v5595
        %v5668 = vadd.f32 %v5667, %v5599
        %v5669 = vadd.f32 %v5668, %v5603
        %v5670 = vrot.slane %v5669, 4
        %v5671 = vadd.f32 %v5669, %v5670
        %v5672 = vrot.slane %v5671, 2
        %v5673 = vadd.f32 %v5671, %v5672
        %v5674 = vrot.slane %v5673, 1
        %v5675 = vadd.f32 %v5673, %v5674
        %v5676 = vadd.f32 %v5576, %v5580
        %v5677 = vadd.f32 %v5676, %v5584
        %v5678 = vadd.f32 %v5677, %v5588
        %v5679 = vadd.f32 %v5678, %v5592
        %v5680 = vadd.f32 %v5679, %v5596
        %v5681 = vadd.f32 %v5680, %v5600
        %v5682 = vadd.f32 %v5681, %v5604
        %v5683 = vrot.slane %v5682, 4
        %v5684 = vadd.f32 %v5682, %v5683
        %v5685 = vrot.slane %v5684, 2
        %v5686 = vadd.f32 %v5684, %v5685
        %v5687 = vrot.slane %v5686, 1
        %v5688 = vadd.f32 %v5686, %v5687
        %v5689 = vmul.f32 %v5573, %v5573
        %v5690 = vmul.f32 %v5574, %v5574
        %v5691 = vmul.f32 %v5575, %v5575
        %v5692 = vmul.f32 %v5576, %v5576
        %v5693 = vmul.f32 %v5577, %v5577
        %v5694 = vmul.f32 %v5578, %v5578
        %v5695 = vmul.f32 %v5579, %v5579
        %v5696 = vmul.f32 %v5580, %v5580
        %v5697 = vmul.f32 %v5581, %v5581
        %v5698 = vmul.f32 %v5582, %v5582
        %v5699 = vmul.f32 %v5583, %v5583
        %v5700 = vmul.f32 %v5584, %v5584
        %v5701 = vmul.f32 %v5585, %v5585
        %v5702 = vmul.f32 %v5586, %v5586
        %v5703 = vmul.f32 %v5587, %v5587
        %v5704 = vmul.f32 %v5588, %v5588
        %v5705 = vmul.f32 %v5589, %v5589
        %v5706 = vmul.f32 %v5590, %v5590
        %v5707 = vmul.f32 %v5591, %v5591
        %v5708 = vmul.f32 %v5592, %v5592
        %v5709 = vmul.f32 %v5593, %v5593
        %v5710 = vmul.f32 %v5594, %v5594
        %v5711 = vmul.f32 %v5595, %v5595
        %v5712 = vmul.f32 %v5596, %v5596
        %v5713 = vmul.f32 %v5597, %v5597
        %v5714 = vmul.f32 %v5598, %v5598
        %v5715 = vmul.f32 %v5599, %v5599
        %v5716 = vmul.f32 %v5600, %v5600
        %v5717 = vmul.f32 %v5601, %v5601
        %v5718 = vmul.f32 %v5602, %v5602
        %v5719 = vmul.f32 %v5603, %v5603
        %v5720 = vmul.f32 %v5604, %v5604
        %v5721 = vadd.f32 %v5689, %v5693
        %v5722 = vadd.f32 %v5721, %v5697
        %v5723 = vadd.f32 %v5722, %v5701
        %v5724 = vadd.f32 %v5723, %v5705
        %v5725 = vadd.f32 %v5724, %v5709
        %v5726 = vadd.f32 %v5725, %v5713
        %v5727 = vadd.f32 %v5726, %v5717
        %v5728 = vrot.slane %v5727, 4
        %v5729 = vadd.f32 %v5727, %v5728
        %v5730 = vrot.slane %v5729, 2
        %v5731 = vadd.f32 %v5729, %v5730
        %v5732 = vrot.slane %v5731, 1
        %v5733 = vadd.f32 %v5731, %v5732
        %v5734 = vadd.f32 %v5690, %v5694
        %v5735 = vadd.f32 %v5734, %v5698
        %v5736 = vadd.f32 %v5735, %v5702
        %v5737 = vadd.f32 %v5736, %v5706
        %v5738 = vadd.f32 %v5737, %v5710
        %v5739 = vadd.f32 %v5738, %v5714
        %v5740 = vadd.f32 %v5739, %v5718
        %v5741 = vrot.slane %v5740, 4
        %v5742 = vadd.f32 %v5740, %v5741
        %v5743 = vrot.slane %v5742, 2
        %v5744 = vadd.f32 %v5742, %v5743
        %v5745 = vrot.slane %v5744, 1
        %v5746 = vadd.f32 %v5744, %v5745
        %v5747 = vadd.f32 %v5691, %v5695
        %v5748 = vadd.f32 %v5747, %v5699
        %v5749 = vadd.f32 %v5748, %v5703
        %v5750 = vadd.f32 %v5749, %v5707
        %v5751 = vadd.f32 %v5750, %v5711
        %v5752 = vadd.f32 %v5751, %v5715
        %v5753 = vadd.f32 %v5752, %v5719
        %v5754 = vrot.slane %v5753, 4
        %v5755 = vadd.f32 %v5753, %v5754
        %v5756 = vrot.slane %v5755, 2
        %v5757 = vadd.f32 %v5755, %v5756
        %v5758 = vrot.slane %v5757, 1
        %v5759 = vadd.f32 %v5757, %v5758
        %v5760 = vadd.f32 %v5692, %v5696
        %v5761 = vadd.f32 %v5760, %v5700
        %v5762 = vadd.f32 %v5761, %v5704
        %v5763 = vadd.f32 %v5762, %v5708
        %v5764 = vadd.f32 %v5763, %v5712
        %v5765 = vadd.f32 %v5764, %v5716
        %v5766 = vadd.f32 %v5765, %v5720
        %v5767 = vrot.slane %v5766, 4
        %v5768 = vadd.f32 %v5766, %v5767
        %v5769 = vrot.slane %v5768, 2
        %v5770 = vadd.f32 %v5768, %v5769
        %v5771 = vrot.slane %v5770, 1
        %v5772 = vadd.f32 %v5770, %v5771
        %vm5773 = vcmask 1040384
        %v5774 = vsel %vm5773, %v5649, %v5733
        %v5775 = vsel %vm5773, %v5662, %v5746
        %v5776 = vsel %vm5773, %v5675, %v5759
        %v5777 = vsel %vm5773, %v5688, %v5772
        %p5778 = scmp.eq.s32.totalorder %s24, 0
        // Predicated region
        $region45: #{tpu_custom_call.1} parent=31 // pred_check
          %p5779 = pneg %p5778
        $region46: #{tpu_custom_call.1} parent=31 // pred_check_branch
          %5781 = sbr.rel (%p5779) target = $region48
        $region47: #{tpu_custom_call.1} parent=31 // pred_region
          %5782 = vst [vmem:[#allocation9] sm:$0xff] 0.0
        $region48: #{tpu_custom_call.1} parent=31 // pred_fallthru
          _
        %v5783 = vld [vmem:[#allocation9] sm:$0xff]
        %v5788 = vrot.slane %v5775, 6
        %v5789 = vrot.slane %v5776, 4
        %v5790 = vrot.slane %v5777, 2
        %vm5791 = vcmask 1041408
        %v5792 = vsel %vm5791, %v5774, %v5788
        %vm5793 = vcmask 1045508
        %v5794 = vsel %vm5793, %v5789, %v5790
        %vm5795 = vcmask 1043456
        %v5796 = vsel %vm5795, %v5792, %v5794
        %v5798 = vadd.f32 %v5783, %v5796
        %5799 = vst [vmem:[#allocation9] sm:$0xff] %v5798
        %s5800 = sand.u32 %s100, 1
        %s5801 = scalar_lea.sflag [#allocation4], %s5800
        %s5802 = sand.u32 %s100, 1
        %s5803 = smul.addr %s5802, 256
        %s5804 = scalar_lea.vmem [#allocation8], %s5803
        // Predicated region
        $region49: #{tpu_custom_call.1} parent=31 // pred_check
          %p5805 = pneg %p110
        $region50: #{tpu_custom_call.1} parent=31 // pred_check_branch
          %5807 = sbr.rel (%p5805) target = $region52
        $region51: #{tpu_custom_call.1} parent=31 // pred_region
          %s5808 = smul.u32 8, %s24
          %5810 = vsyncadd %s5801, 0
          %s5811 = smul.addr %s5808, 4
          %s5812 = smul.addr %s5811, 8
          %s5813 = scalar_lea.hbm %s3, %s5812
          %s5814 = sshll.u32 %s5804, 4
          %s5815 = int_to_ptr.vmem [resolvable:$true] %s5814
          %s5816 = sshll.u32 %s5813, 4
          %s5817 = int_to_ptr.hbm [resolvable:$true] %s5816
          %5822 = dma.vmem_to_hbm [thread:$0]  %s5815, 4096, %s5817, %s5801, 512, 512, 32
        $region52: #{tpu_custom_call.1} parent=31 // pred_fallthru
          _
        // Predicated region
        $region53: #{tpu_custom_call.1} parent=31 // pred_check
          %p5823 = pneg %p131
        $region54: #{tpu_custom_call.1} parent=31 // pred_check_branch
          %5825 = sbr.rel (%p5823) target = $region56
        $region55: #{tpu_custom_call.1} parent=31 // pred_region
          %5827 = vsyncadd [#allocation10], 0
          %s5829 = sshll.u32 [#allocation9], 4
          %s5830 = int_to_ptr.vmem [resolvable:$true] %s5829
          %s5831 = sshll.u32 %s4, 4
          %s5832 = int_to_ptr.hbm [resolvable:$true] %s5831
          %5834 = dma.vmem_to_hbm [thread:$0]  %s5830, 128, %s5832, [#allocation10]
        $region56: #{tpu_custom_call.1} parent=31 // pred_fallthru
          _
        // Predicated region
        $region57: #{tpu_custom_call.1} parent=31 // pred_check
          %p5835 = pneg %p131
        $region58: #{tpu_custom_call.1} parent=31 // pred_check_branch
          %5837 = sbr.rel (%p5835) target = $region60
        $region59: #{tpu_custom_call.1} parent=31 // pred_region
          %5839 = dma.done [#allocation10], 128
        $region60: #{tpu_custom_call.1} parent=31 // pred_fallthru
          _
      $region32: #{tpu_custom_call.1} parent=5 // pred_fallthru
        _
      %p5840 = scmp.le.s32.totalorder 2, %s19
      // Predicated region
      $region61: #{tpu_custom_call.1} parent=5 // pred_check
        %p5841 = pneg %p5840
      $region62: #{tpu_custom_call.1} parent=5 // pred_check_branch
        %5843 = sbr.rel (%p5841) target = $region64
      $region63: #{tpu_custom_call.1} parent=5 // pred_region
        %s5844 = ssub.s32 %s19, 2
        // Predicated region
        $region65: #{tpu_custom_call.1} parent=63 // pred_check
          %p5845 = pneg %p116
        $region66: #{tpu_custom_call.1} parent=63 // pred_check_branch
          %5847 = sbr.rel (%p5845) target = $region68
        $region67: #{tpu_custom_call.1} parent=63 // pred_region
          %s5848 = sand.u32 %s101, 1
          %s5849 = scalar_lea.sflag [#allocation4], %s5848
          %s5850 = sand.u32 %s101, 1
          %s5851 = smul.addr %s5850, 256
          %s5852 = scalar_lea.vmem [#allocation8], %s5851
          %5854 = dma.done %s5849, 4096
        $region68: #{tpu_custom_call.1} parent=63 // pred_fallthru
          _
      $region64: #{tpu_custom_call.1} parent=5 // pred_fallthru
        _
    $region6: #{tpu_custom_call.1} parent=1 // loop_footer
      %s23 = sadd.s32 1, %s19
    $region7: #{tpu_custom_call.1} parent=1 // loop_footer_branch
      %18 = sbr.rel target = $region3
    $region8: #{tpu_custom_call.1} parent=1 // loop_exit
      _
    %5855 = vsyncpa [#allocation3], 1
    %s5856 = scalar_lea.sflag [#allocation3], 1
    %5857 = vsyncpa %s5856, 1
    %5858 = vsyncpa [#allocation6], 1
    %5859 = vsyncpa [#allocation4], 1
    %s5860 = scalar_lea.sflag [#allocation4], 1
    %5861 = vsyncpa %s5860, 1
    %5862 = vsyncpa [#allocation10], 1

</llo_original>
